<compile_context>
chip_gen: v7x
topology: tpu7x:2x2x1
jax: 0.10.0
libtpu: 0.0.40
codegen_flags: <defaults>
</compile_context>

<pallas_src>
import functools

import jax
import jax.numpy as jnp
from jax import lax
from jax.experimental import pallas as pl
from jax.experimental.pallas import tpu as pltpu

MASK_ID = 103
NEG = -1e9

# ---- small synthetic "bert" config (lane-dense: last dims multiples of 128) ----
VOCAB = 128          # must exceed MASK_ID=103
HIDDEN = 128
N_HEADS = 4
D_HEAD = HIDDEN // N_HEADS
FFN = 256
N_LAYERS = 2
MAX_LEN = 16


# ---------------------------------------------------------------------------
# shared numerics (usable inside and outside Pallas kernels)
# ---------------------------------------------------------------------------
def _ln(x, g, b, eps=1e-12):
    mu = jnp.mean(x, axis=-1, keepdims=True)
    var = jnp.mean((x - mu) ** 2, axis=-1, keepdims=True)
    return (x - mu) * lax.rsqrt(var + eps) * g + b


def _gelu(x):
    # TODO(synk): BERT uses the exact erf GELU; tanh approximation kept for
    # guaranteed Mosaic lowering (tiny numerical drift vs the PyTorch reference).
    return jax.nn.gelu(x, approximate=True)


# ---------------------------------------------------------------------------
# Pallas kernel 1: fully fused transformer encoder
#   grid = (batch_blocks, N_LAYERS); activation carried in VMEM scratch over layers
# ---------------------------------------------------------------------------
def _encoder_kernel(x_ref, bias_ref,
                    wqkv_ref, bqkv_ref, wo_ref, bo_ref, ln1g_ref, ln1b_ref,
                    w1_ref, b1_ref, w2_ref, b2_ref, ln2g_ref, ln2b_ref,
                    o_ref, xs_ref, *, n_heads, d_head, scale):
    layer = pl.program_id(1)
    bb, L, H = x_ref.shape

    # Load the activation into the resident f32 scratch at the first layer only.
    @pl.when(layer == 0)
    def _():
        xs_ref[...] = x_ref[...].reshape(bb * L, H).astype(jnp.float32)

    xf = xs_ref[...]                                   # (bb*L, H) f32
    xb = xf.astype(jnp.bfloat16)

    # Fused QKV projection: single full-width MXU dot -> (bb*L, 3H).
    qkv = jnp.dot(xb, wqkv_ref[0], preferred_element_type=jnp.float32) + bqkv_ref[0]

    # Attention: static per-sequence / per-head loops on small tiles.
    ctx_seqs = []
    for b in range(bb):
        r0 = b * L
        bias_b = bias_ref[b]                           # (1, L) additive mask, f32
        ctx_heads = []
        for h in range(n_heads):
            c0 = h * d_head
            q = qkv[r0:r0 + L, c0:c0 + d_head]                     # (L, Dh)
            k = qkv[r0:r0 + L, H + c0:H + c0 + d_head]
            v = qkv[r0:r0 + L, 2 * H + c0:2 * H + c0 + d_head]
            s = lax.dot_general(q, k, (((1,), (1,)), ((), ())),
                                preferred_element_type=jnp.float32) * scale + bias_b
            s = s - jnp.max(s, axis=-1, keepdims=True)
            p = jnp.exp(s)
            p = p * pl.reciprocal(jnp.sum(p, axis=-1, keepdims=True), approx=True)
            ctx_heads.append(jnp.dot(p, v, preferred_element_type=jnp.float32))
        ctx_seqs.append(jnp.concatenate(ctx_heads, axis=-1))       # (L, H)
    ctx = ctx_seqs[0] if bb == 1 else jnp.concatenate(ctx_seqs, axis=0)   # (bb*L, H)

    # Single full-width output projection.
    attn = jnp.dot(ctx.astype(jnp.bfloat16), wo_ref[0],
                   preferred_element_type=jnp.float32) + bo_ref[0]

    h1 = _ln(xf + attn, ln1g_ref[0], ln1b_ref[0])                  # (bb*L, H) f32
    ff = jnp.dot(h1.astype(jnp.bfloat16), w1_ref[0],
                 preferred_element_type=jnp.float32) + b1_ref[0]   # (bb*L, FFN)
    ff = _gelu(ff)
    ff = jnp.dot(ff.astype(jnp.bfloat16), w2_ref[0],
                 preferred_element_type=jnp.float32) + b2_ref[0]   # (bb*L, H)
    h2 = _ln(h1 + ff, ln2g_ref[0], ln2b_ref[0])

    xs_ref[...] = h2                                               # carry to next layer

    @pl.when(layer == pl.num_programs(1) - 1)
    def _():
        o_ref[...] = h2.reshape(bb, L, H).astype(o_ref.dtype)


def _pick_batch_block(B, L):
    """Rows-per-step ~128, but keep >=2 batch grid steps for v7x's 2 TensorCores."""
    bb = max(1, min(B, max(1, 128 // max(L, 1))))
    if B > 1:
        bb = max(1, min(bb, B // 2))
    while B % bb != 0:
        bb -= 1
    return bb


def encoder(params, x, bias):
    """x: (B, L, H) bf16; bias: (B, 1, L) f32 additive attention mask."""
    B, L, H = x.shape
    bb = _pick_batch_block(B, L)
    stk = params["stack"]
    weights = (stk["wqkv"], stk["bqkv"], stk["wo"], stk["bo"],
               stk["ln1_g"], stk["ln1_b"], stk["w1"], stk["b1"],
               stk["w2"], stk["b2"], stk["ln2_g"], stk["ln2_b"])
    # All stacked weights are 3D: (N_LAYERS, d1, d2); stream one layer per grid step.
    w_specs = [pl.BlockSpec((1,) + w.shape[1:], lambda b, l: (l, 0, 0)) for w in weights]
    return pl.pallas_call(
        functools.partial(_encoder_kernel, n_heads=N_HEADS, d_head=D_HEAD,
                          scale=1.0 / (D_HEAD ** 0.5)),
        grid=(B // bb, N_LAYERS),
        in_specs=[pl.BlockSpec((bb, L, H), lambda b, l: (b, 0, 0)),
                  pl.BlockSpec((bb, 1, L), lambda b, l: (b, 0, 0))] + w_specs,
        out_specs=pl.BlockSpec((bb, L, H), lambda b, l: (b, 0, 0)),
        out_shape=jax.ShapeDtypeStruct((B, L, H), x.dtype),
        scratch_shapes=[pltpu.VMEM((bb * L, H), jnp.float32)],
        compiler_params=pltpu.CompilerParams(
            dimension_semantics=("parallel", "arbitrary")),
    )(x, bias, *weights)


# ---------------------------------------------------------------------------
# Pallas kernel 2: fused LM head (blank rows only) + cloze option scoring / CE
# ---------------------------------------------------------------------------
def _head_cloze_kernel(x_ref, hw_ref, hb_ref, hg_ref, hbb_ref,
                       emb_ref, db_ref, opt_ref, ans_ref,
                       pred_ref, loss_ref):
    # head transform + LayerNorm (only on the padded blank rows)
    x = jnp.dot(x_ref[...], hw_ref[...], preferred_element_type=jnp.float32) + hb_ref[...]
    x = _gelu(x)
    x = _ln(x, hg_ref[...], hbb_ref[...])                                  # (N, H) f32
    # tied decoder: contract against word embedding without materializing a transpose
    logits = lax.dot_general(x.astype(emb_ref.dtype), emb_ref[...],
                             (((1,), (1,)), ((), ())),
                             preferred_element_type=jnp.float32) + db_ref[...]   # (N, V)

    opts = opt_ref[...]                                                   # (N, 4) int32
    ans = ans_ref[...]                                                    # (N, 1) int32
    N, V = logits.shape

    # option_score[n, j] = logits[n, opts[n, j]]   (single one-hot compare+reduce pass)
    vocab_iota = lax.broadcasted_iota(jnp.int32, (N, 4, V), 2)
    onehot = (vocab_iota == opts[:, :, None]).astype(jnp.float32)
    scores = jnp.sum(logits[:, None, :] * onehot, axis=-1)                # (N, 4)

    # prediction = argmax over the 4 option scores (first max wins, like torch)
    opt_iota = lax.broadcasted_iota(jnp.int32, (N, 4), 1)
    best = jnp.max(scores, axis=-1, keepdims=True)
    best_idx = jnp.min(jnp.where(scores >= best, opt_iota, 4),
                       axis=-1, keepdims=True)                            # (N, 1)

    # loss = CrossEntropy(full-vocab logits, answer token), reduction='none'
    tgt = jnp.sum(jnp.where(opt_iota == ans, scores, 0.0),
                  axis=-1, keepdims=True)                                 # logit at answer token
    m = jnp.max(logits, axis=-1, keepdims=True)
    lse = m + jnp.log(jnp.sum(jnp.exp(logits - m), axis=-1, keepdims=True))

    # Lane-dense, unmasked full-width stores (wrapper reads column 0).
    pred_ref[...] = jnp.broadcast_to(best_idx, pred_ref.shape)
    loss_ref[...] = jnp.broadcast_to(lse - tgt, loss_ref.shape)


def head_and_cloze(params, x_blank, opts, ans):
    n = x_blank.shape[0]                       # padded to a multiple of 8
    pred, loss = pl.pallas_call(
        _head_cloze_kernel,
        out_shape=(jax.ShapeDtypeStruct((n, 128), jnp.int32),
                   jax.ShapeDtypeStruct((n, 128), jnp.float32)),
    )(x_blank, params["head_w"], params["head_b"],
      params["head_ln_g"], params["head_ln_b"],
      params["word_emb"], params["dec_b"], opts, ans)
    return pred[:, 0], loss[:, 0]


# ---------------------------------------------------------------------------
# Small BERT-style masked LM (synthetic deterministic weights, bf16 matmul weights)
# ---------------------------------------------------------------------------
def init_params(key):
    keys = iter(jax.random.split(key, 32))

    def nrm(shape, dtype=jnp.bfloat16, scale=0.02):
        return (scale * jax.random.normal(next(keys), shape, jnp.float32)).astype(dtype)

    def zeros(shape):
        return jnp.zeros(shape, jnp.float32)

    def ones(shape):
        return jnp.ones(shape, jnp.float32)

    return {
        "word_emb": nrm((VOCAB, HIDDEN)),                       # bf16, tied decoder weight
        "pos_emb": nrm((MAX_LEN, HIDDEN), jnp.float32),
        "emb_ln_g": ones((1, HIDDEN)),
        "emb_ln_b": zeros((1, HIDDEN)),
        "head_w": nrm((HIDDEN, HIDDEN)),
        "head_b": zeros((1, HIDDEN)),
        "head_ln_g": ones((1, HIDDEN)),
        "head_ln_b": zeros((1, HIDDEN)),
        "dec_b": zeros((1, VOCAB)),
        # per-layer weights stacked on a leading layer axis for the fused encoder
        "stack": {
            "wqkv": nrm((N_LAYERS, HIDDEN, 3 * HIDDEN)),        # packed Q|K|V
            "bqkv": zeros((N_LAYERS, 1, 3 * HIDDEN)),
            "wo": nrm((N_LAYERS, HIDDEN, HIDDEN)),
            "bo": zeros((N_LAYERS, 1, HIDDEN)),
            "ln1_g": ones((N_LAYERS, 1, HIDDEN)),
            "ln1_b": zeros((N_LAYERS, 1, HIDDEN)),
            "w1": nrm((N_LAYERS, HIDDEN, FFN)),
            "b1": zeros((N_LAYERS, 1, FFN)),
            "w2": nrm((N_LAYERS, FFN, HIDDEN)),
            "b2": zeros((N_LAYERS, 1, HIDDEN)),
            "ln2_g": ones((N_LAYERS, 1, HIDDEN)),
            "ln2_b": zeros((N_LAYERS, 1, HIDDEN)),
        },
    }


def encode(params, article, attention_mask):
    """Token+position embeddings, LN, then the single fused encoder kernel."""
    B, L = article.shape
    tok = jnp.take(params["word_emb"].astype(jnp.float32), article, axis=0)   # (B, L, H)
    x = tok + params["pos_emb"][None, :L]
    x = _ln(x, params["emb_ln_g"], params["emb_ln_b"]).astype(jnp.bfloat16)
    bias = jnp.where(attention_mask, 0.0, NEG).astype(jnp.float32)[:, None, :]  # (B, 1, L)
    return encoder(params, x, bias)                                           # (B, L, H) bf16


# ---------------------------------------------------------------------------
# Model.forward equivalent (jit-compiled; no host syncs)
# ---------------------------------------------------------------------------
@jax.jit
def _forward_impl(params, article, options, answers):
    article = article.astype(jnp.int32)
    attention_mask = article > 99
    B, L = article.shape

    x = encode(params, article, attention_mask)                               # (B, L, H)

    # TODO(synk): the reference uses fully dynamic masked_select; here the blank
    # count is taken statically from options.shape (one 4-option row per blank),
    # which matches the CLOTH data layout and keeps the forward jit-able.
    n_blanks = options.shape[0] * options.shape[1]
    nb_pad = max(8, -(-n_blanks // 8) * 8)          # pad rows to a multiple of 8 sublanes
    pad = nb_pad - n_blanks

    blank_flat = (article == MASK_ID).reshape(-1)
    (blank_idx,) = jnp.nonzero(blank_flat, size=n_blanks, fill_value=0)
    x_blank = jnp.take(x.reshape(B * L, HIDDEN), blank_idx, axis=0)           # (NB, H)
    x_blank = jnp.pad(x_blank, ((0, pad), (0, 0)))                            # (NB_pad, H)

    opts = jnp.pad(options.reshape(-1, 4).astype(jnp.int32), ((0, pad), (0, 0)))
    if answers is None:
        ans = jnp.zeros((nb_pad, 1), jnp.int32)
    else:
        ans = jnp.pad(answers.reshape(-1, 1).astype(jnp.int32), ((0, pad), (0, 0)))

    pred, loss = head_and_cloze(params, x_blank, opts, ans)
    if answers is None:
        return pred[:n_blanks]       # per-blank argmax over the 4 options
    return loss[:n_blanks]           # per-blank CE loss, reduction='none'


def model_forward(params, article, options, answers=None):
    return _forward_impl(params, article, options, answers)


# ---------------------------------------------------------------------------
if __name__ == "__main__":
    key = jax.random.PRNGKey(0)
    k_par, k_art, k_opt, k_ans = jax.random.split(key, 4)

    params = init_params(k_par)

    B, L, NB = 2, MAX_LEN, 3
    # article tokens in [104, 127] (attention_mask True there, none hit MASK_ID)
    article = jax.random.randint(k_art, (B, L), 104, VOCAB, dtype=jnp.int32)
    # plant NB blank (MASK_ID) positions per example, and some padding (< 100)
    article = article.at[:, 2].set(MASK_ID)
    article = article.at[:, 7].set(MASK_ID)
    article = article.at[:, 12].set(MASK_ID)
    article = article.at[:, 14:].set(0)

    options = jax.random.randint(k_opt, (B, NB, 4), 1, VOCAB, dtype=jnp.int32)
    answers = jax.random.randint(k_ans, (B, NB), 0, 4, dtype=jnp.int32)

    prediction = model_forward(params, article, options)            # inference path
    loss = model_forward(params, article, options, answers)         # training path

    jax.block_until_ready(prediction)
    jax.block_until_ready(loss)

    assert prediction.shape == (B * NB,)
    assert loss.shape == (B * NB,)
    print("KERNEL_OK")
</pallas_src>

<mosaic_0001>
module attributes {stable_mosaic.version = 11 : i64} {
  func.func private @main(%arg0: i32) attributes {dimension_semantics = [#tpu.dimension_semantics<core_parallel>], iteration_bounds = array<i64: 2>, tpu.core_type = #tpu.core_type<sc_scalar_subcore>, window_params = []} {
    return
  }
}

module attributes {stable_mosaic.version = 11 : i64} {
  func.func private @main(%arg0: i32) attributes {dimension_semantics = [#tpu.dimension_semantics<core_parallel>], iteration_bounds = array<i64: 2>, tpu.core_type = #tpu.core_type<sc_scalar_subcore>, window_params = []} {
    return
  }
}

module attributes {stable_mosaic.version = 11 : i64} {
  func.func @_head_cloze_kernel(%arg0: memref<8x128xbf16, #tpu.memory_space<vmem>>, %arg1: memref<128x128xbf16, #tpu.memory_space<vmem>>, %arg2: memref<1x128xf32, #tpu.memory_space<vmem>>, %arg3: memref<1x128xf32, #tpu.memory_space<vmem>>, %arg4: memref<1x128xf32, #tpu.memory_space<vmem>>, %arg5: memref<128x128xbf16, #tpu.memory_space<vmem>>, %arg6: memref<1x128xf32, #tpu.memory_space<vmem>>, %arg7: memref<8x4xi32, #tpu.memory_space<vmem>>, %arg8: memref<8x1xi32, #tpu.memory_space<vmem>>, %arg9: memref<8x128xi32, #tpu.memory_space<vmem>>, %arg10: memref<8x128xf32, #tpu.memory_space<vmem>>) attributes {dimension_semantics = [], scalar_prefetch = 0 : i64, scratch_operands = 0 : i64, tpu.core_type = #tpu.core_type<tc>} {
    %c0 = arith.constant 0 : index
    %c0_0 = arith.constant 0 : index
    %0 = vector.load %arg0[%c0, %c0_0] : memref<8x128xbf16, #tpu.memory_space<vmem>>, vector<8x128xbf16>
    %c0_1 = arith.constant 0 : index
    %c0_2 = arith.constant 0 : index
    %1 = vector.load %arg1[%c0_1, %c0_2] : memref<128x128xbf16, #tpu.memory_space<vmem>>, vector<128x128xbf16>
    %cst = arith.constant dense<0.000000e+00> : vector<8x128xf32>
    %2 = tpu.matmul %0, %1, %cst {dimension_numbers = #tpu.dot_dimension_numbers<[1], [0], [0], [1], [0, 0, 1, 1], [], []>} : vector<8x128xbf16>, vector<128x128xbf16>, vector<8x128xf32> -> vector<8x128xf32>
    %c0_3 = arith.constant 0 : index
    %c0_4 = arith.constant 0 : index
    %3 = vector.load %arg2[%c0_3, %c0_4] : memref<1x128xf32, #tpu.memory_space<vmem>>, vector<1x128xf32>
    %4 = vector.broadcast %3 : vector<1x128xf32> to vector<8x128xf32>
    %5 = arith.addf %2, %4 : vector<8x128xf32>
    %6 = arith.mulf %5, %5 : vector<8x128xf32>
    %7 = arith.mulf %5, %6 : vector<8x128xf32>
    %cst_5 = arith.constant 4.471500e-02 : f32
    %8 = vector.broadcast %cst_5 : f32 to vector<8x128xf32>
    %9 = arith.mulf %8, %7 : vector<8x128xf32>
    %10 = arith.addf %5, %9 : vector<8x128xf32>
    %cst_6 = arith.constant 0.797884583 : f32
    %11 = vector.broadcast %cst_6 : f32 to vector<8x128xf32>
    %12 = arith.mulf %11, %10 : vector<8x128xf32>
    %13 = math.tanh %12 : vector<8x128xf32>
    %cst_7 = arith.constant 1.000000e+00 : f32
    %14 = vector.broadcast %cst_7 : f32 to vector<8x128xf32>
    %15 = arith.addf %14, %13 : vector<8x128xf32>
    %cst_8 = arith.constant 5.000000e-01 : f32
    %16 = vector.broadcast %cst_8 : f32 to vector<8x128xf32>
    %17 = arith.mulf %16, %15 : vector<8x128xf32>
    %18 = arith.mulf %5, %17 : vector<8x128xf32>
    %c0_9 = arith.constant 0 : index
    %c0_10 = arith.constant 0 : index
    %19 = vector.load %arg3[%c0_9, %c0_10] : memref<1x128xf32, #tpu.memory_space<vmem>>, vector<1x128xf32>
    %c0_11 = arith.constant 0 : index
    %c0_12 = arith.constant 0 : index
    %20 = vector.load %arg4[%c0_11, %c0_12] : memref<1x128xf32, #tpu.memory_space<vmem>>, vector<1x128xf32>
    %cst_13 = arith.constant dense<0.000000e+00> : vector<8xf32>
    %21 = vector.multi_reduction <add>, %18, %cst_13 [1] : vector<8x128xf32> to vector<8xf32>
    %22 = vector.shape_cast %21 : vector<8xf32> to vector<8x1xf32>
    %cst_14 = arith.constant 1.280000e+02 : f32
    %23 = vector.broadcast %cst_14 : f32 to vector<8x1xf32>
    %24 = arith.divf %22, %23 : vector<8x1xf32>
    %25 = vector.broadcast %24 : vector<8x1xf32> to vector<8x128xf32>
    %26 = arith.subf %18, %25 : vector<8x128xf32>
    %27 = arith.mulf %26, %26 : vector<8x128xf32>
    %cst_15 = arith.constant dense<0.000000e+00> : vector<8xf32>
    %28 = vector.multi_reduction <add>, %27, %cst_15 [1] : vector<8x128xf32> to vector<8xf32>
    %29 = vector.shape_cast %28 : vector<8xf32> to vector<8x1xf32>
    %cst_16 = arith.constant 1.280000e+02 : f32
    %30 = vector.broadcast %cst_16 : f32 to vector<8x1xf32>
    %31 = arith.divf %29, %30 : vector<8x1xf32>
    %32 = vector.broadcast %24 : vector<8x1xf32> to vector<8x128xf32>
    %33 = arith.subf %18, %32 : vector<8x128xf32>
    %cst_17 = arith.constant 9.99999996E-13 : f32
    %34 = vector.broadcast %cst_17 : f32 to vector<8x1xf32>
    %35 = arith.addf %31, %34 : vector<8x1xf32>
    %36 = math.rsqrt %35 : vector<8x1xf32>
    %37 = vector.broadcast %36 : vector<8x1xf32> to vector<8x128xf32>
    %38 = arith.mulf %33, %37 : vector<8x128xf32>
    %39 = vector.broadcast %19 : vector<1x128xf32> to vector<8x128xf32>
    %40 = arith.mulf %38, %39 : vector<8x128xf32>
    %41 = vector.broadcast %20 : vector<1x128xf32> to vector<8x128xf32>
    %42 = arith.addf %40, %41 : vector<8x128xf32>
    %43 = arith.truncf %42 : vector<8x128xf32> to vector<8x128xbf16>
    %c0_18 = arith.constant 0 : index
    %c0_19 = arith.constant 0 : index
    %44 = vector.load %arg5[%c0_18, %c0_19] : memref<128x128xbf16, #tpu.memory_space<vmem>>, vector<128x128xbf16>
    %cst_20 = arith.constant dense<0.000000e+00> : vector<8x128xf32>
    %45 = tpu.matmul %43, %44, %cst_20 {dimension_numbers = #tpu.dot_dimension_numbers<[1], [1], [0], [0], [0, 0, 1, 0], [], []>} : vector<8x128xbf16>, vector<128x128xbf16>, vector<8x128xf32> -> vector<8x128xf32>
    %c0_21 = arith.constant 0 : index
    %c0_22 = arith.constant 0 : index
    %46 = vector.load %arg6[%c0_21, %c0_22] : memref<1x128xf32, #tpu.memory_space<vmem>>, vector<1x128xf32>
    %47 = vector.broadcast %46 : vector<1x128xf32> to vector<8x128xf32>
    %48 = arith.addf %45, %47 : vector<8x128xf32>
    %c0_23 = arith.constant 0 : index
    %c0_24 = arith.constant 0 : index
    %49 = vector.load %arg7[%c0_23, %c0_24] : memref<8x4xi32, #tpu.memory_space<vmem>>, vector<8x4xi32>
    %c0_25 = arith.constant 0 : index
    %c0_26 = arith.constant 0 : index
    %50 = vector.load %arg8[%c0_25, %c0_26] : memref<8x1xi32, #tpu.memory_space<vmem>>, vector<8x1xi32>
    %51 = tpu.iota {dimensions = array<i32: 2>} : vector<8x4x128xi32>
    %52 = vector.shape_cast %49 : vector<8x4xi32> to vector<8x4x1xi32>
    %53 = vector.broadcast %52 : vector<8x4x1xi32> to vector<8x4x128xi32>
    %54 = arith.cmpi eq, %51, %53 : vector<8x4x128xi32>
    %55 = arith.extui %54 : vector<8x4x128xi1> to vector<8x4x128xi32>
    %56 = arith.sitofp %55 : vector<8x4x128xi32> to vector<8x4x128xf32>
    %57 = vector.shape_cast %48 : vector<8x128xf32> to vector<8x1x128xf32>
    %58 = vector.broadcast %57 : vector<8x1x128xf32> to vector<8x4x128xf32>
    %59 = arith.mulf %58, %56 : vector<8x4x128xf32>
    %cst_27 = arith.constant dense<0.000000e+00> : vector<8x4xf32>
    %60 = vector.multi_reduction <add>, %59, %cst_27 [2] : vector<8x4x128xf32> to vector<8x4xf32>
    %61 = tpu.iota {dimensions = array<i32: 1>} : vector<8x4xi32>
    %cst_28 = arith.constant dense<0xFF800000> : vector<8xf32>
    %62 = vector.multi_reduction <maximumf>, %60, %cst_28 [1] : vector<8x4xf32> to vector<8xf32>
    %63 = vector.shape_cast %62 : vector<8xf32> to vector<8x1xf32>
    %64 = vector.broadcast %63 : vector<8x1xf32> to vector<8x4xf32>
    %65 = arith.cmpf oge, %60, %64 : vector<8x4xf32>
    %c4_i32 = arith.constant 4 : i32
    %66 = vector.broadcast %c4_i32 : i32 to vector<8x4xi32>
    %67 = arith.select %65, %61, %66 : vector<8x4xi1>, vector<8x4xi32>
    %cst_29 = arith.constant dense<2147483647> : vector<8xi32>
    %68 = vector.multi_reduction <minsi>, %67, %cst_29 [1] : vector<8x4xi32> to vector<8xi32>
    %69 = vector.shape_cast %68 : vector<8xi32> to vector<8x1xi32>
    %70 = vector.broadcast %50 : vector<8x1xi32> to vector<8x4xi32>
    %71 = arith.cmpi eq, %61, %70 : vector<8x4xi32>
    %cst_30 = arith.constant 0.000000e+00 : f32
    %72 = vector.broadcast %cst_30 : f32 to vector<8x4xf32>
    %73 = arith.select %71, %60, %72 : vector<8x4xi1>, vector<8x4xf32>
    %cst_31 = arith.constant dense<0.000000e+00> : vector<8xf32>
    %74 = vector.multi_reduction <add>, %73, %cst_31 [1] : vector<8x4xf32> to vector<8xf32>
    %75 = vector.shape_cast %74 : vector<8xf32> to vector<8x1xf32>
    %cst_32 = arith.constant dense<0xFF800000> : vector<8xf32>
    %76 = vector.multi_reduction <maximumf>, %48, %cst_32 [1] : vector<8x128xf32> to vector<8xf32>
    %77 = vector.shape_cast %76 : vector<8xf32> to vector<8x1xf32>
    %78 = vector.broadcast %77 : vector<8x1xf32> to vector<8x128xf32>
    %79 = arith.subf %48, %78 : vector<8x128xf32>
    %80 = math.exp %79 : vector<8x128xf32>
    %cst_33 = arith.constant dense<0.000000e+00> : vector<8xf32>
    %81 = vector.multi_reduction <add>, %80, %cst_33 [1] : vector<8x128xf32> to vector<8xf32>
    %82 = vector.shape_cast %81 : vector<8xf32> to vector<8x1xf32>
    %83 = math.log %82 : vector<8x1xf32>
    %84 = arith.addf %77, %83 : vector<8x1xf32>
    %85 = vector.shape_cast %69 : vector<8x1xi32> to vector<8x1xi32>
    %86 = vector.broadcast %85 : vector<8x1xi32> to vector<8x128xi32>
    %c0_34 = arith.constant 0 : index
    %c0_35 = arith.constant 0 : index
    %87 = vector.load %arg9[%c0_34, %c0_35] : memref<8x128xi32, #tpu.memory_space<vmem>>, vector<8x128xi32>
    tpu.vector_store %arg9[%c0_34, %c0_35], %86 {strides = array<i32>} : memref<8x128xi32, #tpu.memory_space<vmem>>, vector<8x128xi32>,
    %88 = arith.subf %84, %75 : vector<8x1xf32>
    %89 = vector.shape_cast %88 : vector<8x1xf32> to vector<8x1xf32>
    %90 = vector.broadcast %89 : vector<8x1xf32> to vector<8x128xf32>
    %c0_36 = arith.constant 0 : index
    %c0_37 = arith.constant 0 : index
    %91 = vector.load %arg10[%c0_36, %c0_37] : memref<8x128xf32, #tpu.memory_space<vmem>>, vector<8x128xf32>
    tpu.vector_store %arg10[%c0_36, %c0_37], %90 {strides = array<i32>} : memref<8x128xf32, #tpu.memory_space<vmem>>, vector<8x128xf32>,
    return
  }
}

module attributes {stable_mosaic.version = 11 : i64} {
  func.func @_encoder_kernel(%arg0: i32, %arg1: i32, %arg2: memref<1x16x128xbf16, #tpu.memory_space<vmem>>, %arg3: memref<1x1x16xf32, #tpu.memory_space<vmem>>, %arg4: memref<1x128x384xbf16, #tpu.memory_space<vmem>>, %arg5: memref<1x1x384xf32, #tpu.memory_space<vmem>>, %arg6: memref<1x128x128xbf16, #tpu.memory_space<vmem>>, %arg7: memref<1x1x128xf32, #tpu.memory_space<vmem>>, %arg8: memref<1x1x128xf32, #tpu.memory_space<vmem>>, %arg9: memref<1x1x128xf32, #tpu.memory_space<vmem>>, %arg10: memref<1x128x256xbf16, #tpu.memory_space<vmem>>, %arg11: memref<1x1x256xf32, #tpu.memory_space<vmem>>, %arg12: memref<1x256x128xbf16, #tpu.memory_space<vmem>>, %arg13: memref<1x1x128xf32, #tpu.memory_space<vmem>>, %arg14: memref<1x1x128xf32, #tpu.memory_space<vmem>>, %arg15: memref<1x1x128xf32, #tpu.memory_space<vmem>>, %arg16: memref<1x16x128xbf16, #tpu.memory_space<vmem>>, %arg17: memref<16x128xf32, #tpu.memory_space<vmem>>) attributes {dimension_semantics = [#tpu.dimension_semantics<parallel>, #tpu.dimension_semantics<arbitrary>], iteration_bounds = array<i64: 2, 2>, scalar_prefetch = 0 : i64, scratch_operands = 1 : i64, tpu.core_type = #tpu.core_type<tc>, window_params = [{transform_indices = @transform_0, window_bounds = array<i64: 1, 16, 128>}, {transform_indices = @transform_1, window_bounds = array<i64: 1, 1, 16>}, {transform_indices = @transform_2, window_bounds = array<i64: 1, 128, 384>}, {transform_indices = @transform_3, window_bounds = array<i64: 1, 1, 384>}, {transform_indices = @transform_4, window_bounds = array<i64: 1, 128, 128>}, {transform_indices = @transform_5, window_bounds = array<i64: 1, 1, 128>}, {transform_indices = @transform_6, window_bounds = array<i64: 1, 1, 128>}, {transform_indices = @transform_7, window_bounds = array<i64: 1, 1, 128>}, {transform_indices = @transform_8, window_bounds = array<i64: 1, 128, 256>}, {transform_indices = @transform_9, window_bounds = array<i64: 1, 1, 256>}, {transform_indices = @transform_10, window_bounds = array<i64: 1, 256, 128>}, {transform_indices = @transform_11, window_bounds = array<i64: 1, 1, 128>}, {transform_indices = @transform_12, window_bounds = array<i64: 1, 1, 128>}, {transform_indices = @transform_13, window_bounds = array<i64: 1, 1, 128>}, {transform_indices = @transform_14, window_bounds = array<i64: 1, 16, 128>}]} {
    %c0_i32 = arith.constant 0 : i32
    %0 = arith.cmpi eq, %arg1, %c0_i32 : i32
    %1 = arith.extui %0 : i1 to i32
    %c0_i32_0 = arith.constant 0 : i32
    %2 = arith.cmpi ne, %1, %c0_i32_0 : i32
    scf.if %2 {
      %c0_81 = arith.constant 0 : index
      %c0_82 = arith.constant 0 : index
      %c0_83 = arith.constant 0 : index
      %186 = vector.load %arg2[%c0_81, %c0_82, %c0_83] : memref<1x16x128xbf16, #tpu.memory_space<vmem>>, vector<1x16x128xbf16>
      %187 = vector.shape_cast %186 : vector<1x16x128xbf16> to vector<16x128xbf16>
      %188 = arith.extf %187 : vector<16x128xbf16> to vector<16x128xf32>
      %c0_84 = arith.constant 0 : index
      %c0_85 = arith.constant 0 : index
      %189 = vector.load %arg17[%c0_84, %c0_85] : memref<16x128xf32, #tpu.memory_space<vmem>>, vector<16x128xf32>
      tpu.vector_store %arg17[%c0_84, %c0_85], %188 {strides = array<i32>} : memref<16x128xf32, #tpu.memory_space<vmem>>, vector<16x128xf32>,
    } else {
    }
    %c0 = arith.constant 0 : index
    %c0_1 = arith.constant 0 : index
    %3 = vector.load %arg17[%c0, %c0_1] : memref<16x128xf32, #tpu.memory_space<vmem>>, vector<16x128xf32>
    %4 = arith.truncf %3 : vector<16x128xf32> to vector<16x128xbf16>
    %c0_2 = arith.constant 0 : index
    %c0_3 = arith.constant 0 : index
    %c0_4 = arith.constant 0 : index
    %5 = vector.load %arg4[%c0_2, %c0_3, %c0_4] : memref<1x128x384xbf16, #tpu.memory_space<vmem>>, vector<1x128x384xbf16>
    %6 = vector.shape_cast %5 : vector<1x128x384xbf16> to vector<128x384xbf16>
    %cst = arith.constant dense<0.000000e+00> : vector<16x384xf32>
    %7 = tpu.matmul %4, %6, %cst {dimension_numbers = #tpu.dot_dimension_numbers<[1], [0], [0], [1], [0, 0, 1, 1], [], []>} : vector<16x128xbf16>, vector<128x384xbf16>, vector<16x384xf32> -> vector<16x384xf32>
    %c0_5 = arith.constant 0 : index
    %c0_6 = arith.constant 0 : index
    %c0_7 = arith.constant 0 : index
    %8 = vector.load %arg5[%c0_5, %c0_6, %c0_7] : memref<1x1x384xf32, #tpu.memory_space<vmem>>, vector<1x1x384xf32>
    %9 = vector.shape_cast %8 : vector<1x1x384xf32> to vector<1x384xf32>
    %10 = vector.broadcast %9 : vector<1x384xf32> to vector<16x384xf32>
    %11 = arith.addf %7, %10 : vector<16x384xf32>
    %c0_8 = arith.constant 0 : index
    %c0_9 = arith.constant 0 : index
    %c0_10 = arith.constant 0 : index
    %12 = vector.load %arg3[%c0_8, %c0_9, %c0_10] : memref<1x1x16xf32, #tpu.memory_space<vmem>>, vector<1x1x16xf32>
    %13 = vector.shape_cast %12 : vector<1x1x16xf32> to vector<1x16xf32>
    %14 = vector.extract_strided_slice %11 {offsets = [0, 0], sizes = [16, 32], strides = [1, 1]} : vector<16x384xf32> to vector<16x32xf32>
    %15 = vector.extract_strided_slice %11 {offsets = [0, 128], sizes = [16, 32], strides = [1, 1]} : vector<16x384xf32> to vector<16x32xf32>
    %16 = vector.extract_strided_slice %11 {offsets = [0, 256], sizes = [16, 32], strides = [1, 1]} : vector<16x384xf32> to vector<16x32xf32>
    %cst_11 = arith.constant dense<0.000000e+00> : vector<16x16xf32>
    %17 = tpu.matmul %14, %15, %cst_11 {dimension_numbers = #tpu.dot_dimension_numbers<[1], [1], [0], [0], [0, 0, 1, 0], [], []>} : vector<16x32xf32>, vector<16x32xf32>, vector<16x16xf32> -> vector<16x16xf32>
    %cst_12 = arith.constant 0.176776692 : f32
    %18 = vector.broadcast %cst_12 : f32 to vector<16x16xf32>
    %19 = arith.mulf %17, %18 : vector<16x16xf32>
    %20 = vector.broadcast %13 : vector<1x16xf32> to vector<16x16xf32>
    %21 = arith.addf %19, %20 : vector<16x16xf32>
    %cst_13 = arith.constant dense<0xFF800000> : vector<16xf32>
    %22 = vector.multi_reduction <maximumf>, %21, %cst_13 [1] : vector<16x16xf32> to vector<16xf32>
    %23 = vector.shape_cast %22 : vector<16xf32> to vector<16x1xf32>
    %24 = vector.broadcast %23 : vector<16x1xf32> to vector<16x16xf32>
    %25 = arith.subf %21, %24 : vector<16x16xf32>
    %26 = math.exp %25 : vector<16x16xf32>
    %cst_14 = arith.constant dense<0.000000e+00> : vector<16xf32>
    %27 = vector.multi_reduction <add>, %26, %cst_14 [1] : vector<16x16xf32> to vector<16xf32>
    %28 = vector.shape_cast %27 : vector<16xf32> to vector<16x1xf32>
    %29 = tpu.reciprocal %28 {approx = true} : vector<16x1xf32> -> vector<16x1xf32>
    %30 = vector.broadcast %29 : vector<16x1xf32> to vector<16x16xf32>
    %31 = arith.mulf %26, %30 : vector<16x16xf32>
    %cst_15 = arith.constant dense<0.000000e+00> : vector<16x32xf32>
    %32 = tpu.matmul %31, %16, %cst_15 {dimension_numbers = #tpu.dot_dimension_numbers<[1], [0], [0], [1], [0, 0, 1, 1], [], []>} : vector<16x16xf32>, vector<16x32xf32>, vector<16x32xf32> -> vector<16x32xf32>
    %33 = vector.extract_strided_slice %11 {offsets = [0, 32], sizes = [16, 32], strides = [1, 1]} : vector<16x384xf32> to vector<16x32xf32>
    %34 = vector.extract_strided_slice %11 {offsets = [0, 160], sizes = [16, 32], strides = [1, 1]} : vector<16x384xf32> to vector<16x32xf32>
    %35 = vector.extract_strided_slice %11 {offsets = [0, 288], sizes = [16, 32], strides = [1, 1]} : vector<16x384xf32> to vector<16x32xf32>
    %cst_16 = arith.constant dense<0.000000e+00> : vector<16x16xf32>
    %36 = tpu.matmul %33, %34, %cst_16 {dimension_numbers = #tpu.dot_dimension_numbers<[1], [1], [0], [0], [0, 0, 1, 0], [], []>} : vector<16x32xf32>, vector<16x32xf32>, vector<16x16xf32> -> vector<16x16xf32>
    %cst_17 = arith.constant 0.176776692 : f32
    %37 = vector.broadcast %cst_17 : f32 to vector<16x16xf32>
    %38 = arith.mulf %36, %37 : vector<16x16xf32>
    %39 = vector.broadcast %13 : vector<1x16xf32> to vector<16x16xf32>
    %40 = arith.addf %38, %39 : vector<16x16xf32>
    %cst_18 = arith.constant dense<0xFF800000> : vector<16xf32>
    %41 = vector.multi_reduction <maximumf>, %40, %cst_18 [1] : vector<16x16xf32> to vector<16xf32>
    %42 = vector.shape_cast %41 : vector<16xf32> to vector<16x1xf32>
    %43 = vector.broadcast %42 : vector<16x1xf32> to vector<16x16xf32>
    %44 = arith.subf %40, %43 : vector<16x16xf32>
    %45 = math.exp %44 : vector<16x16xf32>
    %cst_19 = arith.constant dense<0.000000e+00> : vector<16xf32>
    %46 = vector.multi_reduction <add>, %45, %cst_19 [1] : vector<16x16xf32> to vector<16xf32>
    %47 = vector.shape_cast %46 : vector<16xf32> to vector<16x1xf32>
    %48 = tpu.reciprocal %47 {approx = true} : vector<16x1xf32> -> vector<16x1xf32>
    %49 = vector.broadcast %48 : vector<16x1xf32> to vector<16x16xf32>
    %50 = arith.mulf %45, %49 : vector<16x16xf32>
    %cst_20 = arith.constant dense<0.000000e+00> : vector<16x32xf32>
    %51 = tpu.matmul %50, %35, %cst_20 {dimension_numbers = #tpu.dot_dimension_numbers<[1], [0], [0], [1], [0, 0, 1, 1], [], []>} : vector<16x16xf32>, vector<16x32xf32>, vector<16x32xf32> -> vector<16x32xf32>
    %52 = vector.extract_strided_slice %11 {offsets = [0, 64], sizes = [16, 32], strides = [1, 1]} : vector<16x384xf32> to vector<16x32xf32>
    %53 = vector.extract_strided_slice %11 {offsets = [0, 192], sizes = [16, 32], strides = [1, 1]} : vector<16x384xf32> to vector<16x32xf32>
    %54 = vector.extract_strided_slice %11 {offsets = [0, 320], sizes = [16, 32], strides = [1, 1]} : vector<16x384xf32> to vector<16x32xf32>
    %cst_21 = arith.constant dense<0.000000e+00> : vector<16x16xf32>
    %55 = tpu.matmul %52, %53, %cst_21 {dimension_numbers = #tpu.dot_dimension_numbers<[1], [1], [0], [0], [0, 0, 1, 0], [], []>} : vector<16x32xf32>, vector<16x32xf32>, vector<16x16xf32> -> vector<16x16xf32>
    %cst_22 = arith.constant 0.176776692 : f32
    %56 = vector.broadcast %cst_22 : f32 to vector<16x16xf32>
    %57 = arith.mulf %55, %56 : vector<16x16xf32>
    %58 = vector.broadcast %13 : vector<1x16xf32> to vector<16x16xf32>
    %59 = arith.addf %57, %58 : vector<16x16xf32>
    %cst_23 = arith.constant dense<0xFF800000> : vector<16xf32>
    %60 = vector.multi_reduction <maximumf>, %59, %cst_23 [1] : vector<16x16xf32> to vector<16xf32>
    %61 = vector.shape_cast %60 : vector<16xf32> to vector<16x1xf32>
    %62 = vector.broadcast %61 : vector<16x1xf32> to vector<16x16xf32>
    %63 = arith.subf %59, %62 : vector<16x16xf32>
    %64 = math.exp %63 : vector<16x16xf32>
    %cst_24 = arith.constant dense<0.000000e+00> : vector<16xf32>
    %65 = vector.multi_reduction <add>, %64, %cst_24 [1] : vector<16x16xf32> to vector<16xf32>
    %66 = vector.shape_cast %65 : vector<16xf32> to vector<16x1xf32>
    %67 = tpu.reciprocal %66 {approx = true} : vector<16x1xf32> -> vector<16x1xf32>
    %68 = vector.broadcast %67 : vector<16x1xf32> to vector<16x16xf32>
    %69 = arith.mulf %64, %68 : vector<16x16xf32>
    %cst_25 = arith.constant dense<0.000000e+00> : vector<16x32xf32>
    %70 = tpu.matmul %69, %54, %cst_25 {dimension_numbers = #tpu.dot_dimension_numbers<[1], [0], [0], [1], [0, 0, 1, 1], [], []>} : vector<16x16xf32>, vector<16x32xf32>, vector<16x32xf32> -> vector<16x32xf32>
    %71 = vector.extract_strided_slice %11 {offsets = [0, 96], sizes = [16, 32], strides = [1, 1]} : vector<16x384xf32> to vector<16x32xf32>
    %72 = vector.extract_strided_slice %11 {offsets = [0, 224], sizes = [16, 32], strides = [1, 1]} : vector<16x384xf32> to vector<16x32xf32>
    %73 = vector.extract_strided_slice %11 {offsets = [0, 352], sizes = [16, 32], strides = [1, 1]} : vector<16x384xf32> to vector<16x32xf32>
    %cst_26 = arith.constant dense<0.000000e+00> : vector<16x16xf32>
    %74 = tpu.matmul %71, %72, %cst_26 {dimension_numbers = #tpu.dot_dimension_numbers<[1], [1], [0], [0], [0, 0, 1, 0], [], []>} : vector<16x32xf32>, vector<16x32xf32>, vector<16x16xf32> -> vector<16x16xf32>
    %cst_27 = arith.constant 0.176776692 : f32
    %75 = vector.broadcast %cst_27 : f32 to vector<16x16xf32>
    %76 = arith.mulf %74, %75 : vector<16x16xf32>
    %77 = vector.broadcast %13 : vector<1x16xf32> to vector<16x16xf32>
    %78 = arith.addf %76, %77 : vector<16x16xf32>
    %cst_28 = arith.constant dense<0xFF800000> : vector<16xf32>
    %79 = vector.multi_reduction <maximumf>, %78, %cst_28 [1] : vector<16x16xf32> to vector<16xf32>
    %80 = vector.shape_cast %79 : vector<16xf32> to vector<16x1xf32>
    %81 = vector.broadcast %80 : vector<16x1xf32> to vector<16x16xf32>
    %82 = arith.subf %78, %81 : vector<16x16xf32>
    %83 = math.exp %82 : vector<16x16xf32>
    %cst_29 = arith.constant dense<0.000000e+00> : vector<16xf32>
    %84 = vector.multi_reduction <add>, %83, %cst_29 [1] : vector<16x16xf32> to vector<16xf32>
    %85 = vector.shape_cast %84 : vector<16xf32> to vector<16x1xf32>
    %86 = tpu.reciprocal %85 {approx = true} : vector<16x1xf32> -> vector<16x1xf32>
    %87 = vector.broadcast %86 : vector<16x1xf32> to vector<16x16xf32>
    %88 = arith.mulf %83, %87 : vector<16x16xf32>
    %cst_30 = arith.constant dense<0.000000e+00> : vector<16x32xf32>
    %89 = tpu.matmul %88, %73, %cst_30 {dimension_numbers = #tpu.dot_dimension_numbers<[1], [0], [0], [1], [0, 0, 1, 1], [], []>} : vector<16x16xf32>, vector<16x32xf32>, vector<16x32xf32> -> vector<16x32xf32>
    %90 = tpu.concatenate %32, %51, %70, %89 in 1 : vector<16x32xf32>, vector<16x32xf32>, vector<16x32xf32>, vector<16x32xf32> -> vector<16x128xf32>
    %91 = arith.truncf %90 : vector<16x128xf32> to vector<16x128xbf16>
    %c0_31 = arith.constant 0 : index
    %c0_32 = arith.constant 0 : index
    %c0_33 = arith.constant 0 : index
    %92 = vector.load %arg6[%c0_31, %c0_32, %c0_33] : memref<1x128x128xbf16, #tpu.memory_space<vmem>>, vector<1x128x128xbf16>
    %93 = vector.shape_cast %92 : vector<1x128x128xbf16> to vector<128x128xbf16>
    %cst_34 = arith.constant dense<0.000000e+00> : vector<16x128xf32>
    %94 = tpu.matmul %91, %93, %cst_34 {dimension_numbers = #tpu.dot_dimension_numbers<[1], [0], [0], [1], [0, 0, 1, 1], [], []>} : vector<16x128xbf16>, vector<128x128xbf16>, vector<16x128xf32> -> vector<16x128xf32>
    %c0_35 = arith.constant 0 : index
    %c0_36 = arith.constant 0 : index
    %c0_37 = arith.constant 0 : index
    %95 = vector.load %arg7[%c0_35, %c0_36, %c0_37] : memref<1x1x128xf32, #tpu.memory_space<vmem>>, vector<1x1x128xf32>
    %96 = vector.shape_cast %95 : vector<1x1x128xf32> to vector<1x128xf32>
    %97 = vector.broadcast %96 : vector<1x128xf32> to vector<16x128xf32>
    %98 = arith.addf %94, %97 : vector<16x128xf32>
    %99 = arith.addf %3, %98 : vector<16x128xf32>
    %c0_38 = arith.constant 0 : index
    %c0_39 = arith.constant 0 : index
    %c0_40 = arith.constant 0 : index
    %100 = vector.load %arg8[%c0_38, %c0_39, %c0_40] : memref<1x1x128xf32, #tpu.memory_space<vmem>>, vector<1x1x128xf32>
    %101 = vector.shape_cast %100 : vector<1x1x128xf32> to vector<1x128xf32>
    %c0_41 = arith.constant 0 : index
    %c0_42 = arith.constant 0 : index
    %c0_43 = arith.constant 0 : index
    %102 = vector.load %arg9[%c0_41, %c0_42, %c0_43] : memref<1x1x128xf32, #tpu.memory_space<vmem>>, vector<1x1x128xf32>
    %103 = vector.shape_cast %102 : vector<1x1x128xf32> to vector<1x128xf32>
    %cst_44 = arith.constant dense<0.000000e+00> : vector<16xf32>
    %104 = vector.multi_reduction <add>, %99, %cst_44 [1] : vector<16x128xf32> to vector<16xf32>
    %105 = vector.shape_cast %104 : vector<16xf32> to vector<16x1xf32>
    %cst_45 = arith.constant 1.280000e+02 : f32
    %106 = vector.broadcast %cst_45 : f32 to vector<16x1xf32>
    %107 = arith.divf %105, %106 : vector<16x1xf32>
    %108 = vector.broadcast %107 : vector<16x1xf32> to vector<16x128xf32>
    %109 = arith.subf %99, %108 : vector<16x128xf32>
    %110 = arith.mulf %109, %109 : vector<16x128xf32>
    %cst_46 = arith.constant dense<0.000000e+00> : vector<16xf32>
    %111 = vector.multi_reduction <add>, %110, %cst_46 [1] : vector<16x128xf32> to vector<16xf32>
    %112 = vector.shape_cast %111 : vector<16xf32> to vector<16x1xf32>
    %cst_47 = arith.constant 1.280000e+02 : f32
    %113 = vector.broadcast %cst_47 : f32 to vector<16x1xf32>
    %114 = arith.divf %112, %113 : vector<16x1xf32>
    %115 = vector.broadcast %107 : vector<16x1xf32> to vector<16x128xf32>
    %116 = arith.subf %99, %115 : vector<16x128xf32>
    %cst_48 = arith.constant 9.99999996E-13 : f32
    %117 = vector.broadcast %cst_48 : f32 to vector<16x1xf32>
    %118 = arith.addf %114, %117 : vector<16x1xf32>
    %119 = math.rsqrt %118 : vector<16x1xf32>
    %120 = vector.broadcast %119 : vector<16x1xf32> to vector<16x128xf32>
    %121 = arith.mulf %116, %120 : vector<16x128xf32>
    %122 = vector.broadcast %101 : vector<1x128xf32> to vector<16x128xf32>
    %123 = arith.mulf %121, %122 : vector<16x128xf32>
    %124 = vector.broadcast %103 : vector<1x128xf32> to vector<16x128xf32>
    %125 = arith.addf %123, %124 : vector<16x128xf32>
    %126 = arith.truncf %125 : vector<16x128xf32> to vector<16x128xbf16>
    %c0_49 = arith.constant 0 : index
    %c0_50 = arith.constant 0 : index
    %c0_51 = arith.constant 0 : index
    %127 = vector.load %arg10[%c0_49, %c0_50, %c0_51] : memref<1x128x256xbf16, #tpu.memory_space<vmem>>, vector<1x128x256xbf16>
    %128 = vector.shape_cast %127 : vector<1x128x256xbf16> to vector<128x256xbf16>
    %cst_52 = arith.constant dense<0.000000e+00> : vector<16x256xf32>
    %129 = tpu.matmul %126, %128, %cst_52 {dimension_numbers = #tpu.dot_dimension_numbers<[1], [0], [0], [1], [0, 0, 1, 1], [], []>} : vector<16x128xbf16>, vector<128x256xbf16>, vector<16x256xf32> -> vector<16x256xf32>
    %c0_53 = arith.constant 0 : index
    %c0_54 = arith.constant 0 : index
    %c0_55 = arith.constant 0 : index
    %130 = vector.load %arg11[%c0_53, %c0_54, %c0_55] : memref<1x1x256xf32, #tpu.memory_space<vmem>>, vector<1x1x256xf32>
    %131 = vector.shape_cast %130 : vector<1x1x256xf32> to vector<1x256xf32>
    %132 = vector.broadcast %131 : vector<1x256xf32> to vector<16x256xf32>
    %133 = arith.addf %129, %132 : vector<16x256xf32>
    %134 = arith.mulf %133, %133 : vector<16x256xf32>
    %135 = arith.mulf %133, %134 : vector<16x256xf32>
    %cst_56 = arith.constant 4.471500e-02 : f32
    %136 = vector.broadcast %cst_56 : f32 to vector<16x256xf32>
    %137 = arith.mulf %136, %135 : vector<16x256xf32>
    %138 = arith.addf %133, %137 : vector<16x256xf32>
    %cst_57 = arith.constant 0.797884583 : f32
    %139 = vector.broadcast %cst_57 : f32 to vector<16x256xf32>
    %140 = arith.mulf %139, %138 : vector<16x256xf32>
    %141 = math.tanh %140 : vector<16x256xf32>
    %cst_58 = arith.constant 1.000000e+00 : f32
    %142 = vector.broadcast %cst_58 : f32 to vector<16x256xf32>
    %143 = arith.addf %142, %141 : vector<16x256xf32>
    %cst_59 = arith.constant 5.000000e-01 : f32
    %144 = vector.broadcast %cst_59 : f32 to vector<16x256xf32>
    %145 = arith.mulf %144, %143 : vector<16x256xf32>
    %146 = arith.mulf %133, %145 : vector<16x256xf32>
    %147 = arith.truncf %146 : vector<16x256xf32> to vector<16x256xbf16>
    %c0_60 = arith.constant 0 : index
    %c0_61 = arith.constant 0 : index
    %c0_62 = arith.constant 0 : index
    %148 = vector.load %arg12[%c0_60, %c0_61, %c0_62] : memref<1x256x128xbf16, #tpu.memory_space<vmem>>, vector<1x256x128xbf16>
    %149 = vector.shape_cast %148 : vector<1x256x128xbf16> to vector<256x128xbf16>
    %cst_63 = arith.constant dense<0.000000e+00> : vector<16x128xf32>
    %150 = tpu.matmul %147, %149, %cst_63 {dimension_numbers = #tpu.dot_dimension_numbers<[1], [0], [0], [1], [0, 0, 1, 1], [], []>} : vector<16x256xbf16>, vector<256x128xbf16>, vector<16x128xf32> -> vector<16x128xf32>
    %c0_64 = arith.constant 0 : index
    %c0_65 = arith.constant 0 : index
    %c0_66 = arith.constant 0 : index
    %151 = vector.load %arg13[%c0_64, %c0_65, %c0_66] : memref<1x1x128xf32, #tpu.memory_space<vmem>>, vector<1x1x128xf32>
    %152 = vector.shape_cast %151 : vector<1x1x128xf32> to vector<1x128xf32>
    %153 = vector.broadcast %152 : vector<1x128xf32> to vector<16x128xf32>
    %154 = arith.addf %150, %153 : vector<16x128xf32>
    %155 = arith.addf %125, %154 : vector<16x128xf32>
    %c0_67 = arith.constant 0 : index
    %c0_68 = arith.constant 0 : index
    %c0_69 = arith.constant 0 : index
    %156 = vector.load %arg14[%c0_67, %c0_68, %c0_69] : memref<1x1x128xf32, #tpu.memory_space<vmem>>, vector<1x1x128xf32>
    %157 = vector.shape_cast %156 : vector<1x1x128xf32> to vector<1x128xf32>
    %c0_70 = arith.constant 0 : index
    %c0_71 = arith.constant 0 : index
    %c0_72 = arith.constant 0 : index
    %158 = vector.load %arg15[%c0_70, %c0_71, %c0_72] : memref<1x1x128xf32, #tpu.memory_space<vmem>>, vector<1x1x128xf32>
    %159 = vector.shape_cast %158 : vector<1x1x128xf32> to vector<1x128xf32>
    %cst_73 = arith.constant dense<0.000000e+00> : vector<16xf32>
    %160 = vector.multi_reduction <add>, %155, %cst_73 [1] : vector<16x128xf32> to vector<16xf32>
    %161 = vector.shape_cast %160 : vector<16xf32> to vector<16x1xf32>
    %cst_74 = arith.constant 1.280000e+02 : f32
    %162 = vector.broadcast %cst_74 : f32 to vector<16x1xf32>
    %163 = arith.divf %161, %162 : vector<16x1xf32>
    %164 = vector.broadcast %163 : vector<16x1xf32> to vector<16x128xf32>
    %165 = arith.subf %155, %164 : vector<16x128xf32>
    %166 = arith.mulf %165, %165 : vector<16x128xf32>
    %cst_75 = arith.constant dense<0.000000e+00> : vector<16xf32>
    %167 = vector.multi_reduction <add>, %166, %cst_75 [1] : vector<16x128xf32> to vector<16xf32>
    %168 = vector.shape_cast %167 : vector<16xf32> to vector<16x1xf32>
    %cst_76 = arith.constant 1.280000e+02 : f32
    %169 = vector.broadcast %cst_76 : f32 to vector<16x1xf32>
    %170 = arith.divf %168, %169 : vector<16x1xf32>
    %171 = vector.broadcast %163 : vector<16x1xf32> to vector<16x128xf32>
    %172 = arith.subf %155, %171 : vector<16x128xf32>
    %cst_77 = arith.constant 9.99999996E-13 : f32
    %173 = vector.broadcast %cst_77 : f32 to vector<16x1xf32>
    %174 = arith.addf %170, %173 : vector<16x1xf32>
    %175 = math.rsqrt %174 : vector<16x1xf32>
    %176 = vector.broadcast %175 : vector<16x1xf32> to vector<16x128xf32>
    %177 = arith.mulf %172, %176 : vector<16x128xf32>
    %178 = vector.broadcast %157 : vector<1x128xf32> to vector<16x128xf32>
    %179 = arith.mulf %177, %178 : vector<16x128xf32>
    %180 = vector.broadcast %159 : vector<1x128xf32> to vector<16x128xf32>
    %181 = arith.addf %179, %180 : vector<16x128xf32>
    %c0_78 = arith.constant 0 : index
    %c0_79 = arith.constant 0 : index
    %182 = vector.load %arg17[%c0_78, %c0_79] : memref<16x128xf32, #tpu.memory_space<vmem>>, vector<16x128xf32>
    tpu.vector_store %arg17[%c0_78, %c0_79], %181 {strides = array<i32>} : memref<16x128xf32, #tpu.memory_space<vmem>>, vector<16x128xf32>,
    %c1_i32 = arith.constant 1 : i32
    %183 = arith.cmpi eq, %arg1, %c1_i32 : i32
    %184 = arith.extui %183 : i1 to i32
    %c0_i32_80 = arith.constant 0 : i32
    %185 = arith.cmpi ne, %184, %c0_i32_80 : i32
    scf.if %185 {
      %186 = vector.shape_cast %181 : vector<16x128xf32> to vector<1x16x128xf32>
      %187 = arith.truncf %186 : vector<1x16x128xf32> to vector<1x16x128xbf16>
      %c0_81 = arith.constant 0 : index
      %c0_82 = arith.constant 0 : index
      %c0_83 = arith.constant 0 : index
      %188 = vector.load %arg16[%c0_81, %c0_82, %c0_83] : memref<1x16x128xbf16, #tpu.memory_space<vmem>>, vector<1x16x128xbf16>
      tpu.vector_store %arg16[%c0_81, %c0_82, %c0_83], %187 {strides = array<i32>} : memref<1x16x128xbf16, #tpu.memory_space<vmem>>, vector<1x16x128xbf16>,
    } else {
    }
    return
  }
  func.func @transform_0(%arg0: i32, %arg1: i32) -> (i32, i32, i32) {
    %c0_i32 = arith.constant 0 : i32
    %c0_i32_0 = arith.constant 0 : i32
    %c0_i32_1 = arith.constant 0 : i32
    return %arg0, %c0_i32, %c0_i32_0 : i32, i32, i32
  }
  func.func @transform_1(%arg0: i32, %arg1: i32) -> (i32, i32, i32) {
    %c0_i32 = arith.constant 0 : i32
    %c0_i32_0 = arith.constant 0 : i32
    %c0_i32_1 = arith.constant 0 : i32
    return %arg0, %c0_i32, %c0_i32_0 : i32, i32, i32
  }
  func.func @transform_2(%arg0: i32, %arg1: i32) -> (i32, i32, i32) {
    %c0_i32 = arith.constant 0 : i32
    %c0_i32_0 = arith.constant 0 : i32
    %c0_i32_1 = arith.constant 0 : i32
    return %arg1, %c0_i32, %c0_i32_0 : i32, i32, i32
  }
  func.func @transform_3(%arg0: i32, %arg1: i32) -> (i32, i32, i32) {
    %c0_i32 = arith.constant 0 : i32
    %c0_i32_0 = arith.constant 0 : i32
    %c0_i32_1 = arith.constant 0 : i32
    return %arg1, %c0_i32, %c0_i32_0 : i32, i32, i32
  }
  func.func @transform_4(%arg0: i32, %arg1: i32) -> (i32, i32, i32) {
    %c0_i32 = arith.constant 0 : i32
    %c0_i32_0 = arith.constant 0 : i32
    %c0_i32_1 = arith.constant 0 : i32
    return %arg1, %c0_i32, %c0_i32_0 : i32, i32, i32
  }
  func.func @transform_5(%arg0: i32, %arg1: i32) -> (i32, i32, i32) {
    %c0_i32 = arith.constant 0 : i32
    %c0_i32_0 = arith.constant 0 : i32
    %c0_i32_1 = arith.constant 0 : i32
    return %arg1, %c0_i32, %c0_i32_0 : i32, i32, i32
  }
  func.func @transform_6(%arg0: i32, %arg1: i32) -> (i32, i32, i32) {
    %c0_i32 = arith.constant 0 : i32
    %c0_i32_0 = arith.constant 0 : i32
    %c0_i32_1 = arith.constant 0 : i32
    return %arg1, %c0_i32, %c0_i32_0 : i32, i32, i32
  }
  func.func @transform_7(%arg0: i32, %arg1: i32) -> (i32, i32, i32) {
    %c0_i32 = arith.constant 0 : i32
    %c0_i32_0 = arith.constant 0 : i32
    %c0_i32_1 = arith.constant 0 : i32
    return %arg1, %c0_i32, %c0_i32_0 : i32, i32, i32
  }
  func.func @transform_8(%arg0: i32, %arg1: i32) -> (i32, i32, i32) {
    %c0_i32 = arith.constant 0 : i32
    %c0_i32_0 = arith.constant 0 : i32
    %c0_i32_1 = arith.constant 0 : i32
    return %arg1, %c0_i32, %c0_i32_0 : i32, i32, i32
  }
  func.func @transform_9(%arg0: i32, %arg1: i32) -> (i32, i32, i32) {
    %c0_i32 = arith.constant 0 : i32
    %c0_i32_0 = arith.constant 0 : i32
    %c0_i32_1 = arith.constant 0 : i32
    return %arg1, %c0_i32, %c0_i32_0 : i32, i32, i32
  }
  func.func @transform_10(%arg0: i32, %arg1: i32) -> (i32, i32, i32) {
    %c0_i32 = arith.constant 0 : i32
    %c0_i32_0 = arith.constant 0 : i32
    %c0_i32_1 = arith.constant 0 : i32
    return %arg1, %c0_i32, %c0_i32_0 : i32, i32, i32
  }
  func.func @transform_11(%arg0: i32, %arg1: i32) -> (i32, i32, i32) {
    %c0_i32 = arith.constant 0 : i32
    %c0_i32_0 = arith.constant 0 : i32
    %c0_i32_1 = arith.constant 0 : i32
    return %arg1, %c0_i32, %c0_i32_0 : i32, i32, i32
  }
  func.func @transform_12(%arg0: i32, %arg1: i32) -> (i32, i32, i32) {
    %c0_i32 = arith.constant 0 : i32
    %c0_i32_0 = arith.constant 0 : i32
    %c0_i32_1 = arith.constant 0 : i32
    return %arg1, %c0_i32, %c0_i32_0 : i32, i32, i32
  }
  func.func @transform_13(%arg0: i32, %arg1: i32) -> (i32, i32, i32) {
    %c0_i32 = arith.constant 0 : i32
    %c0_i32_0 = arith.constant 0 : i32
    %c0_i32_1 = arith.constant 0 : i32
    return %arg1, %c0_i32, %c0_i32_0 : i32, i32, i32
  }
  func.func @transform_14(%arg0: i32, %arg1: i32) -> (i32, i32, i32) {
    %c0_i32 = arith.constant 0 : i32
    %c0_i32_0 = arith.constant 0 : i32
    %c0_i32_1 = arith.constant 0 : i32
    return %arg0, %c0_i32, %c0_i32_0 : i32, i32, i32
  }
}

</mosaic_0001>

<llo_original>
// kernel: _forward_impl.3
$region0: #{_forward_impl.3}
  #allocation0 [shape = 'u32[]', space=smem, size = 0x4, offset = 0x4, fixed_abs, tag = 'smem constant byte address 0x4 - core index']
  #allocation1 [shape = 'u32[144,128]{1,0:T(1,128)}', space=vmem, size = 0x12000, scoped, tag = 'internal scratch']
  %s0 = inlined_call_operand.vmem [shape: bf16[8,128], index: 0, kind: input, shape index: {}]
  %s1 = inlined_call_operand.vmem [shape: bf16[128,128], index: 1, kind: input, shape index: {}]
  %s2 = inlined_call_operand.vmem [shape: f32[1,128], index: 2, kind: input, shape index: {}]
  %s3 = inlined_call_operand.vmem [shape: f32[1,128], index: 3, kind: input, shape index: {}]
  %s4 = inlined_call_operand.vmem [shape: f32[1,128], index: 4, kind: input, shape index: {}]
  %s5 = inlined_call_operand.vmem [shape: bf16[128,128], index: 5, kind: input, shape index: {}]
  %s6 = inlined_call_operand.vmem [shape: f32[1,128], index: 6, kind: input, shape index: {}]
  %s7 = inlined_call_operand.vmem [shape: s32[8,4], index: 7, kind: input, shape index: {}]
  %s8 = inlined_call_operand.vmem [shape: s32[8,1], index: 8, kind: input, shape index: {}]
  %s9 = inlined_call_operand.vmem [shape: s32[8,128], index: 9, kind: output, shape index: {0}]
  %s10 = inlined_call_operand.hbm [shape: f32[8,128], index: 10, kind: output, shape index: {1}]
  %11 = xla_tuple %s9, %s10
  %s12 = sld [smem:[#allocation0]]
  $region54: #{_forward_impl.3} parent=0
    _
  %s14 = ssub.s32 1, %s12
  %s15 = scalar_select 0, %s14, %s12
  $region1: #{_forward_impl.3} parent=0
    #allocation2 [shape = 'u8[4096]{0}', space=vmem, size = 0x1000, scoped, tag = 'output window, operand 1, single buffered']
    #allocation3 [shape = 's32[1]{0}', space=sflag, size = 0x4, scoped, tag = 'scoped memory for _forward_impl.3']
    %16 = vsyncpa [#allocation3], 0
    // Predicated region
    $region2: #{_forward_impl.3} parent=1 // pred_check
      _
    $region3: #{_forward_impl.3} parent=1 // pred_check_branch
      %18 = sbr.rel (0) target = $region5
    $region4: #{_forward_impl.3} parent=1 // pred_region
      _
    $region5: #{_forward_impl.3} parent=1 // pred_fallthru
      _
    // Predicated region
    $region6: #{_forward_impl.3} parent=1 // pred_check
      _
    $region7: #{_forward_impl.3} parent=1 // pred_check_branch
      %20 = sbr.rel (0) target = $region9
    $region8: #{_forward_impl.3} parent=1 // pred_region
      _
    $region9: #{_forward_impl.3} parent=1 // pred_fallthru
      _
    // Predicated region
    $region10: #{_forward_impl.3} parent=1 // pred_check
      _
    $region11: #{_forward_impl.3} parent=1 // pred_check_branch
      %22 = sbr.rel (0) target = $region13
    $region12: #{_forward_impl.3} parent=1 // pred_region
      _
    $region13: #{_forward_impl.3} parent=1 // pred_fallthru
      _
    // Predicated region
    $region14: #{_forward_impl.3} parent=1 // pred_check
      _
    $region15: #{_forward_impl.3} parent=1 // pred_check_branch
      %24 = sbr.rel (0) target = $region17
    $region16: #{_forward_impl.3} parent=1 // pred_region
      _
    $region17: #{_forward_impl.3} parent=1 // pred_fallthru
      _
    // Predicated region
    $region18: #{_forward_impl.3} parent=1 // pred_check
      _
    $region19: #{_forward_impl.3} parent=1 // pred_check_branch
      %26 = sbr.rel (0) target = $region21
    $region20: #{_forward_impl.3} parent=1 // pred_region
      _
    $region21: #{_forward_impl.3} parent=1 // pred_fallthru
      _
    // Predicated region
    $region22: #{_forward_impl.3} parent=1 // pred_check
      _
    $region23: #{_forward_impl.3} parent=1 // pred_check_branch
      %28 = sbr.rel (0) target = $region25
    $region24: #{_forward_impl.3} parent=1 // pred_region
      _
    $region25: #{_forward_impl.3} parent=1 // pred_fallthru
      _
    // Predicated region
    $region26: #{_forward_impl.3} parent=1 // pred_check
      _
    $region27: #{_forward_impl.3} parent=1 // pred_check_branch
      %30 = sbr.rel (0) target = $region29
    $region28: #{_forward_impl.3} parent=1 // pred_region
      _
    $region29: #{_forward_impl.3} parent=1 // pred_fallthru
      _
    // Predicated region
    $region30: #{_forward_impl.3} parent=1 // pred_check
      _
    $region31: #{_forward_impl.3} parent=1 // pred_check_branch
      %32 = sbr.rel (0) target = $region33
    $region32: #{_forward_impl.3} parent=1 // pred_region
      _
    $region33: #{_forward_impl.3} parent=1 // pred_fallthru
      _
    // Predicated region
    $region34: #{_forward_impl.3} parent=1 // pred_check
      _
    $region35: #{_forward_impl.3} parent=1 // pred_check_branch
      %34 = sbr.rel (0) target = $region37
    $region36: #{_forward_impl.3} parent=1 // pred_region
      _
    $region37: #{_forward_impl.3} parent=1 // pred_fallthru
      _
    %v36 = vld [vmem:[%s0] sm:$0xf]
    %v37 = vld [vmem:[%s1] sm:$0xf]
    %v38 = vld [vmem:[%s1 + $0x4] sm:$0xf]
    %v39 = vld [vmem:[%s1 + $0x8] sm:$0xf]
    %v40 = vld [vmem:[%s1 + $0xc] sm:$0xf]
    %v41 = vld [vmem:[%s1 + $0x10] sm:$0xf]
    %v42 = vld [vmem:[%s1 + $0x14] sm:$0xf]
    %v43 = vld [vmem:[%s1 + $0x18] sm:$0xf]
    %v44 = vld [vmem:[%s1 + $0x1c] sm:$0xf]
    %v45 = vld [vmem:[%s1 + $0x20] sm:$0xf]
    %v46 = vld [vmem:[%s1 + $0x24] sm:$0xf]
    %v47 = vld [vmem:[%s1 + $0x28] sm:$0xf]
    %v48 = vld [vmem:[%s1 + $0x2c] sm:$0xf]
    %v49 = vld [vmem:[%s1 + $0x30] sm:$0xf]
    %v50 = vld [vmem:[%s1 + $0x34] sm:$0xf]
    %v51 = vld [vmem:[%s1 + $0x38] sm:$0xf]
    %v52 = vld [vmem:[%s1 + $0x3c] sm:$0xf]
    %v53 = vld [vmem:[%s2] sm:$0x1]
    %v55 = vlaneseq
    %v56 = vshrl.u32 %v55, 7
    %v57 = vsub.s32 0, %v56
    %v58 = vrot.slane %v53, %v57
    %v76 = vunpack.c.l.b16 %v37
    %v77 = vunpack.c.l.b16 %v38
    %v78 = vunpack.c.l.b16 %v39
    %v79 = vunpack.c.l.b16 %v40
    %v80 = vunpack.c.l.b16 %v41
    %v81 = vunpack.c.l.b16 %v42
    %v82 = vunpack.c.l.b16 %v43
    %v83 = vunpack.c.l.b16 %v44
    %v84 = vunpack.c.l.b16 %v45
    %v85 = vunpack.c.l.b16 %v46
    %v86 = vunpack.c.l.b16 %v47
    %v87 = vunpack.c.l.b16 %v48
    %v88 = vunpack.c.l.b16 %v49
    %v89 = vunpack.c.l.b16 %v50
    %v90 = vunpack.c.l.b16 %v51
    %v91 = vunpack.c.l.b16 %v52
    %v92 = vpack.c.b16 %v77, %v76
    %v93 = vpack.c.b16 %v79, %v78
    %v94 = vpack.c.b16 %v81, %v80
    %v95 = vpack.c.b16 %v83, %v82
    %v96 = vpack.c.b16 %v85, %v84
    %v97 = vpack.c.b16 %v87, %v86
    %v98 = vpack.c.b16 %v89, %v88
    %v99 = vpack.c.b16 %v91, %v90
    %108 = vmatprep.subr.bf16.mxu0 0
    %109 = vmatpush1.bf16.msra.mxu0 %v92
    %110 = vmatprep.subr.bf16.mxu0 0
    %111 = vmatpush1.bf16.msra.mxu0 %v93
    %112 = vmatprep.subr.bf16.mxu0 0
    %113 = vmatpush1.bf16.msra.mxu0 %v94
    %114 = vmatprep.subr.bf16.mxu0 0
    %115 = vmatpush1.bf16.msra.mxu0 %v95
    %116 = vmatprep.subr.bf16.mxu0 0
    %117 = vmatpush1.bf16.msra.mxu0 %v96
    %118 = vmatprep.subr.bf16.mxu0 0
    %119 = vmatpush1.bf16.msra.mxu0 %v97
    %120 = vmatprep.subr.bf16.mxu0 0
    %121 = vmatpush1.bf16.msra.mxu0 %v98
    %122 = vmatprep.subr.bf16.mxu0 0
    %123 = vmatpush1.bf16.msra.mxu0 %v99
    %124 = vmatprep.subr.bf16.mxu0 0
    %125 = vmatpush1.bf16.msra.mxu0 0
    %126 = vmatprep.subr.bf16.mxu0 0
    %127 = vmatpush1.bf16.msra.mxu0 0
    %128 = vmatprep.subr.bf16.mxu0 0
    %129 = vmatpush1.bf16.msra.mxu0 0
    %130 = vmatprep.subr.bf16.mxu0 0
    %131 = vmatpush1.bf16.msra.mxu0 0
    %132 = vmatprep.subr.bf16.mxu0 0
    %133 = vmatpush1.bf16.msra.mxu0 0
    %134 = vmatprep.subr.bf16.mxu0 0
    %135 = vmatpush1.bf16.msra.mxu0 0
    %136 = vmatprep.subr.bf16.mxu0 0
    %137 = vmatpush1.bf16.msra.mxu0 0
    %138 = vmatprep.subr.bf16.mxu0 0
    %139 = vmatpush1.bf16.msra.mxu0 0
    %140 = vmatprep.mubr.bf16.mxu0 0
    %141 = vmatmul.mubr.bf16.gmra.mrb[0].mxu0 %v36
    %v142 = vpop.f32.mrb[0].mxu0
    %v143 = vadd.f32 %v58, %v142
    %v144 = vpop.f32.mrb[0].mxu0
    %v145 = vpop.f32.mrb[0].mxu0
    %v146 = vpop.f32.mrb[0].mxu0
    %147 = vdwg.mxu0
    %v148 = vmul.f32 %v143, %v143
    %v149 = vmul.f32 %v143, %v148
    %v150 = vmul.f32 %v149, 0.044715
    %v151 = vadd.f32 %v143, %v150
    %v152 = vmul.f32 %v151, 0.7978846
    %v153 = vtanh.pop %v152
    %v154 = vadd.f32 %v153, 1.0
    %v155 = vmul.f32 %v154, 0.5
    %v156 = vmul.f32 %v143, %v155
    %v157 = vld [vmem:[%s3] sm:$0x1]
    %v158 = vld [vmem:[%s4] sm:$0x1]
    %159 = vadd.xlane.f32.xlu0 %v156
    %v160 = vpop.xlane.xlu0 %159
    %v161 = vrcp.pop 128.0
    %v162 = vmul.f32 %v160, %v161
    %v163 = vsub.f32 %v156, %v162
    %v164 = vmul.f32 %v163, %v163
    %165 = vadd.xlane.f32.xlu0 %v164
    %v166 = vpop.xlane.xlu0 %165
    %v167 = vmul.f32 %v166, %v161
    %v168 = vadd.f32 %v167, 1e-12
    %v169 = vrsqrt.pop %v168
    %v170 = vmul.f32 %v163, %v169
    %v172 = vlaneseq
    %v173 = vshrl.u32 %v172, 7
    %v174 = vsub.s32 0, %v173
    %v175 = vrot.slane %v157, %v174
    %v177 = vmul.f32 %v170, %v175
    %v179 = vlaneseq
    %v180 = vshrl.u32 %v179, 7
    %v181 = vsub.s32 0, %v180
    %v182 = vrot.slane %v158, %v181
    %v184 = vadd.f32 %v177, %v182
    %v185 = vpack.c.bf16 %v184, %v184
    %v186 = vld [vmem:[%s5] sm:$0xf]
    %v187 = vld [vmem:[%s5 + $0x4] sm:$0xf]
    %v188 = vld [vmem:[%s5 + $0x8] sm:$0xf]
    %v189 = vld [vmem:[%s5 + $0xc] sm:$0xf]
    %v190 = vld [vmem:[%s5 + $0x10] sm:$0xf]
    %v191 = vld [vmem:[%s5 + $0x14] sm:$0xf]
    %v192 = vld [vmem:[%s5 + $0x18] sm:$0xf]
    %v193 = vld [vmem:[%s5 + $0x1c] sm:$0xf]
    %v194 = vld [vmem:[%s5 + $0x20] sm:$0xf]
    %v195 = vld [vmem:[%s5 + $0x24] sm:$0xf]
    %v196 = vld [vmem:[%s5 + $0x28] sm:$0xf]
    %v197 = vld [vmem:[%s5 + $0x2c] sm:$0xf]
    %v198 = vld [vmem:[%s5 + $0x30] sm:$0xf]
    %v199 = vld [vmem:[%s5 + $0x34] sm:$0xf]
    %v200 = vld [vmem:[%s5 + $0x38] sm:$0xf]
    %v201 = vld [vmem:[%s5 + $0x3c] sm:$0xf]
    %v202 = vld [vmem:[%s6] sm:$0x1]
    %v204 = vlaneseq
    %v205 = vshrl.u32 %v204, 7
    %v206 = vsub.s32 0, %v205
    %v207 = vrot.slane %v202, %v206
    %v225 = vunpack.c.l.b16 %v186
    %v226 = vunpack.c.l.b16 %v187
    %v227 = vunpack.c.l.b16 %v188
    %v228 = vunpack.c.l.b16 %v189
    %v229 = vunpack.c.l.b16 %v190
    %v230 = vunpack.c.l.b16 %v191
    %v231 = vunpack.c.l.b16 %v192
    %v232 = vunpack.c.l.b16 %v193
    %v233 = vunpack.c.l.b16 %v194
    %v234 = vunpack.c.l.b16 %v195
    %v235 = vunpack.c.l.b16 %v196
    %v236 = vunpack.c.l.b16 %v197
    %v237 = vunpack.c.l.b16 %v198
    %v238 = vunpack.c.l.b16 %v199
    %v239 = vunpack.c.l.b16 %v200
    %v240 = vunpack.c.l.b16 %v201
    %v241 = vpack.c.b16 %v226, %v225
    %v242 = vpack.c.b16 %v228, %v227
    %v243 = vpack.c.b16 %v230, %v229
    %v244 = vpack.c.b16 %v232, %v231
    %v245 = vpack.c.b16 %v234, %v233
    %v246 = vpack.c.b16 %v236, %v235
    %v247 = vpack.c.b16 %v238, %v237
    %v248 = vpack.c.b16 %v240, %v239
    %257 = vmatprep.subr.bf16.mxu0 0
    %258 = vmatpush1.bf16.xpose.msra.mxu0 %v241
    %259 = vmatprep.subr.bf16.mxu0 0
    %260 = vmatpush1.bf16.xpose.msra.mxu0 %v242
    %261 = vmatprep.subr.bf16.mxu0 0
    %262 = vmatpush1.bf16.xpose.msra.mxu0 %v243
    %263 = vmatprep.subr.bf16.mxu0 0
    %264 = vmatpush1.bf16.xpose.msra.mxu0 %v244
    %265 = vmatprep.subr.bf16.mxu0 0
    %266 = vmatpush1.bf16.xpose.msra.mxu0 %v245
    %267 = vmatprep.subr.bf16.mxu0 0
    %268 = vmatpush1.bf16.xpose.msra.mxu0 %v246
    %269 = vmatprep.subr.bf16.mxu0 0
    %270 = vmatpush1.bf16.xpose.msra.mxu0 %v247
    %271 = vmatprep.subr.bf16.mxu0 0
    %272 = vmatpush1.bf16.xpose.msra.mxu0 %v248
    %273 = vmatprep.subr.bf16.mxu0 0
    %274 = vmatpush1.bf16.xpose.msra.mxu0 0
    %275 = vmatprep.subr.bf16.mxu0 0
    %276 = vmatpush1.bf16.xpose.msra.mxu0 0
    %277 = vmatprep.subr.bf16.mxu0 0
    %278 = vmatpush1.bf16.xpose.msra.mxu0 0
    %279 = vmatprep.subr.bf16.mxu0 0
    %280 = vmatpush1.bf16.xpose.msra.mxu0 0
    %281 = vmatprep.subr.bf16.mxu0 0
    %282 = vmatpush1.bf16.xpose.msra.mxu0 0
    %283 = vmatprep.subr.bf16.mxu0 0
    %284 = vmatpush1.bf16.xpose.msra.mxu0 0
    %285 = vmatprep.subr.bf16.mxu0 0
    %286 = vmatpush1.bf16.xpose.msra.mxu0 0
    %287 = vmatprep.subr.bf16.mxu0 0
    %288 = vmatpush1.bf16.xpose.msra.mxu0 0
    %289 = vmatprep.mubr.bf16.mxu0 0
    %290 = vmatmul.mubr.bf16.gmra.mrb[0].mxu0 %v185
    %v291 = vpop.f32.mrb[0].mxu0
    %v292 = vadd.f32 %v207, %v291
    %v293 = vpop.f32.mrb[0].mxu0
    %v294 = vpop.f32.mrb[0].mxu0
    %v295 = vpop.f32.mrb[0].mxu0
    %296 = vdwg.mxu0
    %v297 = vld [vmem:[%s7] sm:$0xff]
    %v298 = vld [vmem:[%s8] sm:$0xff]
    %v299 = vlaneseq
    %v300 = vand.u32 %v299, 127
    %v301 = vlaneseq
    %v302 = vshrl.u32 %v301, 7
    %v303 = vsub.s32 0, %v302
    %v304 = vrot.slane %v297, %v303
    %306 = vbcast.lane.b32.xlu0 %v304, 256
    %v307 = vpop.permute.xlu0 %306
    %v308 = vlaneseq
    %v309 = vshrl.u32 %v308, 7
    %v310 = vsub.s32 1, %v309
    %v311 = vrot.slane %v297, %v310
    %313 = vbcast.lane.b32.xlu0 %v311, 256
    %v314 = vpop.permute.xlu0 %313
    %v315 = vlaneseq
    %v316 = vshrl.u32 %v315, 7
    %v317 = vsub.s32 2, %v316
    %v318 = vrot.slane %v297, %v317
    %320 = vbcast.lane.b32.xlu0 %v318, 256
    %v321 = vpop.permute.xlu0 %320
    %v322 = vlaneseq
    %v323 = vshrl.u32 %v322, 7
    %v324 = vsub.s32 3, %v323
    %v325 = vrot.slane %v297, %v324
    %327 = vbcast.lane.b32.xlu0 %v325, 256
    %v328 = vpop.permute.xlu0 %327
    %v329 = vlaneseq
    %v330 = vshrl.u32 %v329, 7
    %v331 = vsub.s32 4, %v330
    %v332 = vrot.slane %v297, %v331
    %334 = vbcast.lane.b32.xlu0 %v332, 256
    %v335 = vpop.permute.xlu0 %334
    %v336 = vlaneseq
    %v337 = vshrl.u32 %v336, 7
    %v338 = vsub.s32 5, %v337
    %v339 = vrot.slane %v297, %v338
    %341 = vbcast.lane.b32.xlu0 %v339, 256
    %v342 = vpop.permute.xlu0 %341
    %v343 = vlaneseq
    %v344 = vshrl.u32 %v343, 7
    %v345 = vsub.s32 6, %v344
    %v346 = vrot.slane %v297, %v345
    %348 = vbcast.lane.b32.xlu0 %v346, 256
    %v349 = vpop.permute.xlu0 %348
    %v350 = vlaneseq
    %v351 = vshrl.u32 %v350, 7
    %v352 = vsub.s32 7, %v351
    %v353 = vrot.slane %v297, %v352
    %355 = vbcast.lane.b32.xlu0 %v353, 256
    %v356 = vpop.permute.xlu0 %355
    %vm357 = vcmp.eq.s32.totalorder %v300, %v307
    %vm358 = vcmp.eq.s32.totalorder %v300, %v314
    %vm359 = vcmp.eq.s32.totalorder %v300, %v321
    %vm360 = vcmp.eq.s32.totalorder %v300, %v328
    %vm361 = vcmp.eq.s32.totalorder %v300, %v335
    %vm362 = vcmp.eq.s32.totalorder %v300, %v342
    %vm363 = vcmp.eq.s32.totalorder %v300, %v349
    %vm364 = vcmp.eq.s32.totalorder %v300, %v356
    %v365 = vsel %vm357, 1, 0
    %v366 = vsel %vm358, 1, 0
    %v367 = vsel %vm359, 1, 0
    %v368 = vsel %vm360, 1, 0
    %v369 = vsel %vm361, 1, 0
    %v370 = vsel %vm362, 1, 0
    %v371 = vsel %vm363, 1, 0
    %v372 = vsel %vm364, 1, 0
    %v373 = vcvt.s32.f32 %v365
    %v374 = vcvt.s32.f32 %v366
    %v375 = vcvt.s32.f32 %v367
    %v376 = vcvt.s32.f32 %v368
    %v377 = vcvt.s32.f32 %v369
    %v378 = vcvt.s32.f32 %v370
    %v379 = vcvt.s32.f32 %v371
    %v380 = vcvt.s32.f32 %v372
    %v382 = vcombine.high %v292, %v292
    %v384 = vunpack.c.l.s4 1966171168
    %v385 = vunpack.c.0.s8 %v384
    %v386 = vlaneseq
    %v387 = vshrl.u32 %v386, 7
    %v388 = vsub.s32 %v385, %v387
    %v389 = vrot.slane %v292, %v388
    %v391 = vunpack.c.l.s4 1966171168
    %v392 = vunpack.c.0.s8 %v391
    %v393 = vlaneseq
    %v394 = vshrl.u32 %v393, 7
    %v395 = vsub.s32 %v392, %v394
    %v396 = vrot.slane %v382, %v395
    %v397 = vcombine.high %v389, %v389
    %v398 = vcombine.high %v396, %v396
    %v400 = vunpack.c.l.s4 1966171168
    %v401 = vunpack.c.0.s8 %v400
    %v402 = vlaneseq
    %v403 = vshrl.u32 %v402, 7
    %v404 = vsub.s32 %v401, %v403
    %v405 = vrot.slane %v389, %v404
    %v407 = vunpack.c.l.s4 1966171168
    %v408 = vunpack.c.0.s8 %v407
    %v409 = vlaneseq
    %v410 = vshrl.u32 %v409, 7
    %v411 = vsub.s32 %v408, %v410
    %v412 = vrot.slane %v396, %v411
    %v414 = vunpack.c.l.s4 1966171168
    %v415 = vunpack.c.0.s8 %v414
    %v416 = vlaneseq
    %v417 = vshrl.u32 %v416, 7
    %v418 = vsub.s32 %v415, %v417
    %v419 = vrot.slane %v397, %v418
    %v421 = vunpack.c.l.s4 1966171168
    %v422 = vunpack.c.0.s8 %v421
    %v423 = vlaneseq
    %v424 = vshrl.u32 %v423, 7
    %v425 = vsub.s32 %v422, %v424
    %v426 = vrot.slane %v398, %v425
    %v427 = vcombine.high %v405, %v405
    %v428 = vcombine.high %v412, %v412
    %v429 = vcombine.high %v419, %v419
    %v430 = vcombine.high %v426, %v426
    %v431 = vlaneseq
    %v432 = vshrl.u32 %v431, 7
    %v433 = vsub.s32 0, %v432
    %v434 = vrot.slane %v405, %v433
    %v435 = vlaneseq
    %v436 = vshrl.u32 %v435, 7
    %v437 = vsub.s32 0, %v436
    %v438 = vrot.slane %v419, %v437
    %v439 = vlaneseq
    %v440 = vshrl.u32 %v439, 7
    %v441 = vsub.s32 0, %v440
    %v442 = vrot.slane %v427, %v441
    %v443 = vlaneseq
    %v444 = vshrl.u32 %v443, 7
    %v445 = vsub.s32 0, %v444
    %v446 = vrot.slane %v429, %v445
    %v447 = vlaneseq
    %v448 = vshrl.u32 %v447, 7
    %v449 = vsub.s32 0, %v448
    %v450 = vrot.slane %v412, %v449
    %v451 = vlaneseq
    %v452 = vshrl.u32 %v451, 7
    %v453 = vsub.s32 0, %v452
    %v454 = vrot.slane %v426, %v453
    %v455 = vlaneseq
    %v456 = vshrl.u32 %v455, 7
    %v457 = vsub.s32 0, %v456
    %v458 = vrot.slane %v428, %v457
    %v459 = vlaneseq
    %v460 = vshrl.u32 %v459, 7
    %v461 = vsub.s32 0, %v460
    %v462 = vrot.slane %v430, %v461
    %v471 = vmul.f32 %v434, %v373
    %v472 = vmul.f32 %v438, %v374
    %v473 = vmul.f32 %v442, %v375
    %v474 = vmul.f32 %v446, %v376
    %v475 = vmul.f32 %v450, %v377
    %v476 = vmul.f32 %v454, %v378
    %v477 = vmul.f32 %v458, %v379
    %v478 = vmul.f32 %v462, %v380
    %vm479 = vcmask 1043456
    %v480 = vsel %vm479, %v471, 0.0
    %481 = vadd.xlane.f32.xlu0 %v480
    %v482 = vpop.xlane.xlu0 %481
    %v483 = vsel %vm479, %v472, 0.0
    %484 = vadd.xlane.f32.xlu0 %v483
    %v485 = vpop.xlane.xlu0 %484
    %v486 = vsel %vm479, %v473, 0.0
    %487 = vadd.xlane.f32.xlu0 %v486
    %v488 = vpop.xlane.xlu0 %487
    %v489 = vsel %vm479, %v474, 0.0
    %490 = vadd.xlane.f32.xlu0 %v489
    %v491 = vpop.xlane.xlu0 %490
    %v492 = vsel %vm479, %v475, 0.0
    %493 = vadd.xlane.f32.xlu0 %v492
    %v494 = vpop.xlane.xlu0 %493
    %v495 = vsel %vm479, %v476, 0.0
    %496 = vadd.xlane.f32.xlu0 %v495
    %v497 = vpop.xlane.xlu0 %496
    %v498 = vsel %vm479, %v477, 0.0
    %499 = vadd.xlane.f32.xlu0 %v498
    %v500 = vpop.xlane.xlu0 %499
    %v501 = vsel %vm479, %v478, 0.0
    %502 = vadd.xlane.f32.xlu0 %v501
    %v503 = vpop.xlane.xlu0 %502
    %v512 = vlaneseq
    %v513 = vshrl.u32 %v512, 7
    %v514 = vsub.s32 %v300, %v513
    %v515 = vrot.slane %v482, %v514
    %v516 = vlaneseq
    %v517 = vshrl.u32 %v516, 7
    %v518 = vsub.s32 %v300, %v517
    %v519 = vrot.slane %v485, %v518
    %v520 = vlaneseq
    %v521 = vshrl.u32 %v520, 7
    %v522 = vsub.s32 %v300, %v521
    %v523 = vrot.slane %v488, %v522
    %v524 = vlaneseq
    %v525 = vshrl.u32 %v524, 7
    %v526 = vsub.s32 %v300, %v525
    %v527 = vrot.slane %v491, %v526
    %v528 = vlaneseq
    %v529 = vshrl.u32 %v528, 7
    %v530 = vsub.s32 %v300, %v529
    %v531 = vrot.slane %v494, %v530
    %v532 = vlaneseq
    %v533 = vshrl.u32 %v532, 7
    %v534 = vsub.s32 %v300, %v533
    %v535 = vrot.slane %v497, %v534
    %v536 = vlaneseq
    %v537 = vshrl.u32 %v536, 7
    %v538 = vsub.s32 %v300, %v537
    %v539 = vrot.slane %v500, %v538
    %v540 = vlaneseq
    %v541 = vshrl.u32 %v540, 7
    %v542 = vsub.s32 %v300, %v541
    %v543 = vrot.slane %v503, %v542
    %vm544 = vcmask 1041409
    %v545 = vsel %vm544, %v519, %v515
    %vm546 = vcmask 1042434
    %v547 = vsel %vm546, %v523, %v545
    %vm548 = vcmask 1043459
    %v549 = vsel %vm548, %v527, %v547
    %vm550 = vcmask 1044484
    %v551 = vsel %vm550, %v531, %v549
    %vm552 = vcmask 1045509
    %v553 = vsel %vm552, %v535, %v551
    %vm554 = vcmask 1046534
    %v555 = vsel %vm554, %v539, %v553
    %vm556 = vcmask 1047559
    %v557 = vsel %vm556, %v543, %v555
    %vm559 = vcmask 31744
    %v560 = vsel %vm559, %v557, -inf
    %561 = vmax.xlane.f32.xlu0 %v560
    %v562 = vpop.xlane.xlu0 %561
    %v564 = vlaneseq
    %v565 = vshrl.u32 %v564, 7
    %v566 = vsub.s32 0, %v565
    %v567 = vrot.slane %v562, %v566
    %v568 = vlaneseq
    %v569 = vshrl.u32 %v568, 7
    %v570 = vsub.s32 1, %v569
    %v571 = vrot.slane %v562, %v570
    %v572 = vlaneseq
    %v573 = vshrl.u32 %v572, 7
    %v574 = vsub.s32 2, %v573
    %v575 = vrot.slane %v562, %v574
    %v576 = vlaneseq
    %v577 = vshrl.u32 %v576, 7
    %v578 = vsub.s32 3, %v577
    %v579 = vrot.slane %v562, %v578
    %v580 = vlaneseq
    %v581 = vshrl.u32 %v580, 7
    %v582 = vsub.s32 4, %v581
    %v583 = vrot.slane %v562, %v582
    %v584 = vlaneseq
    %v585 = vshrl.u32 %v584, 7
    %v586 = vsub.s32 5, %v585
    %v587 = vrot.slane %v562, %v586
    %v588 = vlaneseq
    %v589 = vshrl.u32 %v588, 7
    %v590 = vsub.s32 6, %v589
    %v591 = vrot.slane %v562, %v590
    %v592 = vlaneseq
    %v593 = vshrl.u32 %v592, 7
    %v594 = vsub.s32 7, %v593
    %v595 = vrot.slane %v562, %v594
    %vm604 = vcmp.ge.f32.partialorder %v482, %v567
    %vm605 = vcmp.ge.f32.partialorder %v485, %v571
    %vm606 = vcmp.ge.f32.partialorder %v488, %v575
    %vm607 = vcmp.ge.f32.partialorder %v491, %v579
    %vm608 = vcmp.ge.f32.partialorder %v494, %v583
    %vm609 = vcmp.ge.f32.partialorder %v497, %v587
    %vm610 = vcmp.ge.f32.partialorder %v500, %v591
    %vm611 = vcmp.ge.f32.partialorder %v503, %v595
    %613 = vbcast.lane.b32.xlu0 %v300, 256
    %v614 = vpop.permute.xlu0 %613
    %v615 = vsel %vm604, %v614, 4
    %v616 = vsel %vm605, %v614, 4
    %v617 = vsel %vm606, %v614, 4
    %v618 = vsel %vm607, %v614, 4
    %v619 = vsel %vm608, %v614, 4
    %v620 = vsel %vm609, %v614, 4
    %v621 = vsel %vm610, %v614, 4
    %v622 = vsel %vm611, %v614, 4
    %623 = vset.pattern.permute.xlu0 0
    %624 = vperm.xlu0 %623, %v615
    %v625 = vpop.permute.xlu0 %624
    %626 = vset.pattern.permute.xlu0 0
    %627 = vperm.xlu0 %626, %v616
    %v628 = vpop.permute.xlu0 %627
    %629 = vset.pattern.permute.xlu0 0
    %630 = vperm.xlu0 %629, %v617
    %v631 = vpop.permute.xlu0 %630
    %632 = vset.pattern.permute.xlu0 0
    %633 = vperm.xlu0 %632, %v618
    %v634 = vpop.permute.xlu0 %633
    %635 = vset.pattern.permute.xlu0 0
    %636 = vperm.xlu0 %635, %v619
    %v637 = vpop.permute.xlu0 %636
    %638 = vset.pattern.permute.xlu0 0
    %639 = vperm.xlu0 %638, %v620
    %v640 = vpop.permute.xlu0 %639
    %641 = vset.pattern.permute.xlu0 0
    %642 = vperm.xlu0 %641, %v621
    %v643 = vpop.permute.xlu0 %642
    %644 = vset.pattern.permute.xlu0 0
    %645 = vperm.xlu0 %644, %v622
    %v646 = vpop.permute.xlu0 %645
    %v647 = vlaneseq
    %v648 = vshrl.u32 %v647, 7
    %v649 = vsub.s32 %v300, %v648
    %v650 = vrot.slane %v625, %v649
    %v651 = vlaneseq
    %v652 = vshrl.u32 %v651, 7
    %v653 = vsub.s32 %v300, %v652
    %v654 = vrot.slane %v628, %v653
    %v655 = vlaneseq
    %v656 = vshrl.u32 %v655, 7
    %v657 = vsub.s32 %v300, %v656
    %v658 = vrot.slane %v631, %v657
    %v659 = vlaneseq
    %v660 = vshrl.u32 %v659, 7
    %v661 = vsub.s32 %v300, %v660
    %v662 = vrot.slane %v634, %v661
    %v663 = vlaneseq
    %v664 = vshrl.u32 %v663, 7
    %v665 = vsub.s32 %v300, %v664
    %v666 = vrot.slane %v637, %v665
    %v667 = vlaneseq
    %v668 = vshrl.u32 %v667, 7
    %v669 = vsub.s32 %v300, %v668
    %v670 = vrot.slane %v640, %v669
    %v671 = vlaneseq
    %v672 = vshrl.u32 %v671, 7
    %v673 = vsub.s32 %v300, %v672
    %v674 = vrot.slane %v643, %v673
    %v675 = vlaneseq
    %v676 = vshrl.u32 %v675, 7
    %v677 = vsub.s32 %v300, %v676
    %v678 = vrot.slane %v646, %v677
    %v679 = vsel %vm544, %v654, %v650
    %v680 = vsel %vm546, %v658, %v679
    %v681 = vsel %vm548, %v662, %v680
    %v682 = vsel %vm550, %v666, %v681
    %v683 = vsel %vm552, %v670, %v682
    %v684 = vsel %vm554, %v674, %v683
    %v685 = vsel %vm556, %v678, %v684
    %v686 = vsel %vm559, %v685, 2147483647
    %v687 = vand.u32 %v686, 65535
    %v688 = vshra.s32 %v686, 16
    %v689 = vcvt.s32.f32 %v687
    %v690 = vcvt.s32.f32 %v688
    %691 = vmin.xlane.f32.xlu0 %v690
    %v692 = vpop.xlane.xlu0 %691
    %vm693 = vcmp.eq.f32.partialorder %v690, %v692
    %v694 = vsel %vm693, %v689, inf
    %695 = vmin.xlane.f32.xlu0 %v694
    %v696 = vpop.xlane.xlu0 %695
    %v697 = vcvt.f32.s32 %v696
    %v698 = vcvt.f32.s32 %v692
    %v699 = vshll.u32 %v698, 16
    %v700 = vadd.s32 %v699, %v697
    %701 = vset.pattern.permute.xlu0 0
    %702 = vperm.xlu0 %701, %v298
    %v703 = vpop.permute.xlu0 %702
    %vm704 = vcmp.eq.s32.totalorder %v300, %v703
    %v705 = vsel %vm704, %v557, 0.0
    %v706 = vsel %vm559, %v705, 0.0
    %707 = vadd.xlane.f32.xlu0 %v706
    %v708 = vpop.xlane.xlu0 %707
    %709 = vmax.xlane.f32.xlu0 %v292
    %v710 = vpop.xlane.xlu0 %709
    %v711 = vsub.f32 %v292, %v710
    %v712 = vmul.f32 %v711, 1.442695
    %v713 = vpow.pop %v712
    %714 = vadd.xlane.f32.xlu0 %v713
    %v715 = vpop.xlane.xlu0 %714
    %v716 = vlog2.pop %v715
    %v717 = vmul.f32 %v716, 0.6931472
    %v718 = vadd.f32 %v710, %v717
    %719 = vst [vmem:[%s9] sm:$0xff] %v700
    %v720 = vsub.f32 %v718, %v708
    %721 = vst [vmem:[#allocation2] sm:$0xff] %v720
    // Predicated region
    $region38: #{_forward_impl.3} parent=1 // pred_check
      _
    $region39: #{_forward_impl.3} parent=1 // pred_check_branch
      %723 = sbr.rel (0) target = $region41
    $region40: #{_forward_impl.3} parent=1 // pred_region
      _
    $region41: #{_forward_impl.3} parent=1 // pred_fallthru
      _
    // Predicated region
    $region42: #{_forward_impl.3} parent=1 // pred_check
      _
    $region43: #{_forward_impl.3} parent=1 // pred_check_branch
      %725 = sbr.rel (0) target = $region45
    $region44: #{_forward_impl.3} parent=1 // pred_region
      %s727 = ssub.s32 128, 128
      %728 = vsyncadd [#allocation3], %s727
      %s730 = sshll.u32 [#allocation2], 4
      %s731 = int_to_ptr.vmem [resolvable:$true] %s730
      %733 = dma.vmem_to_hbm [thread:$0]  %s731, 128, %s10, [#allocation3]
    $region45: #{_forward_impl.3} parent=1 // pred_fallthru
      _
    // Predicated region
    $region46: #{_forward_impl.3} parent=1 // pred_check
      _
    $region47: #{_forward_impl.3} parent=1 // pred_check_branch
      %735 = sbr.rel (0) target = $region49
    $region48: #{_forward_impl.3} parent=1 // pred_region
      _
    $region49: #{_forward_impl.3} parent=1 // pred_fallthru
      _
    // Predicated region
    $region50: #{_forward_impl.3} parent=1 // pred_check
      _
    $region51: #{_forward_impl.3} parent=1 // pred_check_branch
      %737 = sbr.rel (0) target = $region53
    $region52: #{_forward_impl.3} parent=1 // pred_region
      %738 = dma.done [#allocation3], 128
    $region53: #{_forward_impl.3} parent=1 // pred_fallthru
      _
    %739 = vsyncpa [#allocation3], 1

// kernel: _forward_impl.2
$region0: #{_forward_impl.2}
  #allocation0 [shape = 'u32[]', space=smem, size = 0x4, offset = 0x4, fixed_abs, tag = 'smem constant byte address 0x4 - core index']
  #allocation1 [shape = 'u32[144,128]{1,0:T(1,128)}', space=vmem, size = 0x12000, scoped, tag = 'internal scratch']
  #allocation2 [shape = 'f32[16,128]{1,0:T(8,128)}', space=vmem, size = 0x2000, scoped, tag = 'scratch operand']
  %s0 = inlined_call_operand.vmem [shape: bf16[2,16,128], index: 0, kind: input, shape index: {}]
  %s1 = inlined_call_operand.vmem [shape: f32[2,1,16], index: 1, kind: input, shape index: {}]
  %s2 = inlined_call_operand.vmem [shape: bf16[2,128,384], index: 2, kind: input, shape index: {}]
  %s3 = inlined_call_operand.vmem [shape: f32[2,1,384], index: 3, kind: input, shape index: {}]
  %s4 = inlined_call_operand.vmem [shape: bf16[2,128,128], index: 4, kind: input, shape index: {}]
  %s5 = inlined_call_operand.vmem [shape: f32[2,1,128], index: 5, kind: input, shape index: {}]
  %s6 = inlined_call_operand.vmem [shape: f32[2,1,128], index: 6, kind: input, shape index: {}]
  %s7 = inlined_call_operand.vmem [shape: f32[2,1,128], index: 7, kind: input, shape index: {}]
  %s8 = inlined_call_operand.vmem [shape: bf16[2,128,256], index: 8, kind: input, shape index: {}]
  %s9 = inlined_call_operand.vmem [shape: f32[2,1,256], index: 9, kind: input, shape index: {}]
  %s10 = inlined_call_operand.vmem [shape: bf16[2,256,128], index: 10, kind: input, shape index: {}]
  %s11 = inlined_call_operand.vmem [shape: f32[2,1,128], index: 11, kind: input, shape index: {}]
  %s12 = inlined_call_operand.vmem [shape: f32[2,1,128], index: 12, kind: input, shape index: {}]
  %s13 = inlined_call_operand.vmem [shape: f32[2,1,128], index: 13, kind: input, shape index: {}]
  %s14 = inlined_call_operand.vmem [shape: bf16[2,16,128], index: 14, kind: output, shape index: {}]
  %s15 = sld [smem:[#allocation0]]
  $region97: #{_forward_impl.2} parent=0
    _
  %s17 = ssub.s32 1, %s15
  %s18 = scalar_select 0, %s17, %s15
  loop: start=0, step=1, limit=6
  $region2: #{_forward_impl.2} parent=0 // loop_pre_header
    _
  $region3: #{_forward_impl.2} parent=0 // loop_header
    %s20 = sphi 0, %s24
    %p21 = scmp.ge.s32.totalorder %s20, 6
    %s27 = sphi 0, %s39
    %s28 = sphi 0, %s35
    %s29 = sphi 0, %s27
    %s30 = sphi 0, %s28
    %s31 = sphi 0, %s29
    %s32 = sphi 0, %s30
    %s42 = sphi 0, %s44
    %s45 = sphi 0, %s42
    %s46 = sphi 0, %s45
    %s62 = sphi 0, %s46
    %s68 = sphi 0, %s70
    %s71 = sphi 0, %s68
    %s72 = sphi 0, %s71
    %s88 = sphi 0, %s72
    %s94 = sphi 0, %s96
    %s97 = sphi 0, %s94
    %s98 = sphi 0, %s97
    %s114 = sphi 0, %s98
    %s120 = sphi 0, %s122
    %s123 = sphi 0, %s120
    %s124 = sphi 0, %s123
    %s140 = sphi 0, %s124
    %s146 = sphi 0, %s148
    %s149 = sphi 0, %s146
    %s150 = sphi 0, %s149
    %s166 = sphi 0, %s150
    %s172 = sphi 0, %s174
    %s175 = sphi 0, %s172
    %s176 = sphi 0, %s175
    %s192 = sphi 0, %s176
    %s198 = sphi 0, %s200
    %s201 = sphi 0, %s198
    %s202 = sphi 0, %s201
    %s218 = sphi 0, %s202
    %s224 = sphi 0, %s226
    %s227 = sphi 0, %s224
    %s228 = sphi 0, %s227
    %s244 = sphi 0, %s228
    %s250 = sphi 0, %s252
    %s253 = sphi 0, %s250
    %s254 = sphi 0, %s253
    %s270 = sphi 0, %s254
    %s276 = sphi 0, %s278
    %s279 = sphi 0, %s276
    %s280 = sphi 0, %s279
    %s296 = sphi 0, %s280
    %s302 = sphi 0, %s304
    %s305 = sphi 0, %s302
    %s306 = sphi 0, %s305
    %s322 = sphi 0, %s306
    %s328 = sphi 0, %s330
    %s331 = sphi 0, %s328
    %s332 = sphi 0, %s331
    %s348 = sphi 0, %s332
    %s354 = sphi 0, %s356
    %s357 = sphi 0, %s354
    %s358 = sphi 0, %s357
    %s374 = sphi 0, %s358
    %s380 = sphi 0, %s382
    %s383 = sphi 0, %s380
    %s384 = sphi 0, %s383
    %s400 = sphi 0, %s384
    %s406 = sphi 0, %s408
    %s409 = sphi 0, %s406
    %s410 = sphi 0, %s409
    %s426 = sphi 0, %s410
  $region4: #{_forward_impl.2} parent=0 // loop_header_branch
    %23 = sbr.rel (%p21) target = $region8
  $region5: #{_forward_impl.2} parent=0 // loop_body
    %s25 = ssub.s32 %s20, 1
    %s26 = ssub.s32 %s20, 2
    %s33 = sadd.s32 1, %s28
    %p34 = scmp.ge.s32.totalorder %s33, 2
    %s35 = scalar_select %p34, 0, %s33
    %s36 = sadd.s32 1, %s27
    %s37 = scalar_select %p34, %s36, %s27
    %p38 = scmp.ge.s32.totalorder %s37, 2
    %s39 = scalar_select %p38, 0, %s37
    %s40 = ssub.s32 %s27, %s39
    %p41 = scmp.eq.s32.totalorder %s40, 0
    %s43 = sadd.s32 %s42, 1
    %s44 = scalar_select %p41, %s42, %s43
    %p47 = pneg %p41
    %p48 = scmp.eq.s32.totalorder %s20, 3
    %p49 = por %p47, %p48
    %p50 = scmp.ne.s32.totalorder %s42, %s45
    %p51 = scmp.eq.s32.totalorder %s20, 0
    %p52 = por %p50, %p51
    %p53 = scmp.ne.s32.totalorder %s42, %s45
    %p54 = scmp.eq.s32.totalorder %s25, 3
    %p55 = por %p53, %p54
    %p56 = scmp.ne.s32.totalorder %s45, %s46
    %p57 = scmp.eq.s32.totalorder %s25, 0
    %p58 = por %p56, %p57
    %p59 = scmp.ne.s32.totalorder %s45, %s46
    %p60 = scmp.eq.s32.totalorder %s26, 3
    %p61 = por %p59, %p60
    %p63 = scmp.ne.s32.totalorder %s46, %s62
    %p64 = scmp.eq.s32.totalorder %s26, 0
    %p65 = por %p63, %p64
    %s66 = ssub.s32 %s27, %s39
    %p67 = scmp.eq.s32.totalorder %s66, 0
    %s69 = sadd.s32 %s68, 1
    %s70 = scalar_select %p67, %s68, %s69
    %p73 = pneg %p67
    %p74 = scmp.eq.s32.totalorder %s20, 3
    %p75 = por %p73, %p74
    %p76 = scmp.ne.s32.totalorder %s68, %s71
    %p77 = scmp.eq.s32.totalorder %s20, 0
    %p78 = por %p76, %p77
    %p79 = scmp.ne.s32.totalorder %s68, %s71
    %p80 = scmp.eq.s32.totalorder %s25, 3
    %p81 = por %p79, %p80
    %p82 = scmp.ne.s32.totalorder %s71, %s72
    %p83 = scmp.eq.s32.totalorder %s25, 0
    %p84 = por %p82, %p83
    %p85 = scmp.ne.s32.totalorder %s71, %s72
    %p86 = scmp.eq.s32.totalorder %s26, 3
    %p87 = por %p85, %p86
    %p89 = scmp.ne.s32.totalorder %s72, %s88
    %p90 = scmp.eq.s32.totalorder %s26, 0
    %p91 = por %p89, %p90
    %s92 = ssub.s32 %s28, %s35
    %p93 = scmp.eq.s32.totalorder %s92, 0
    %s95 = sadd.s32 %s94, 1
    %s96 = scalar_select %p93, %s94, %s95
    %p99 = pneg %p93
    %p100 = scmp.eq.s32.totalorder %s20, 3
    %p101 = por %p99, %p100
    %p102 = scmp.ne.s32.totalorder %s94, %s97
    %p103 = scmp.eq.s32.totalorder %s20, 0
    %p104 = por %p102, %p103
    %p105 = scmp.ne.s32.totalorder %s94, %s97
    %p106 = scmp.eq.s32.totalorder %s25, 3
    %p107 = por %p105, %p106
    %p108 = scmp.ne.s32.totalorder %s97, %s98
    %p109 = scmp.eq.s32.totalorder %s25, 0
    %p110 = por %p108, %p109
    %p111 = scmp.ne.s32.totalorder %s97, %s98
    %p112 = scmp.eq.s32.totalorder %s26, 3
    %p113 = por %p111, %p112
    %p115 = scmp.ne.s32.totalorder %s98, %s114
    %p116 = scmp.eq.s32.totalorder %s26, 0
    %p117 = por %p115, %p116
    %s118 = ssub.s32 %s28, %s35
    %p119 = scmp.eq.s32.totalorder %s118, 0
    %s121 = sadd.s32 %s120, 1
    %s122 = scalar_select %p119, %s120, %s121
    %p125 = pneg %p119
    %p126 = scmp.eq.s32.totalorder %s20, 3
    %p127 = por %p125, %p126
    %p128 = scmp.ne.s32.totalorder %s120, %s123
    %p129 = scmp.eq.s32.totalorder %s20, 0
    %p130 = por %p128, %p129
    %p131 = scmp.ne.s32.totalorder %s120, %s123
    %p132 = scmp.eq.s32.totalorder %s25, 3
    %p133 = por %p131, %p132
    %p134 = scmp.ne.s32.totalorder %s123, %s124
    %p135 = scmp.eq.s32.totalorder %s25, 0
    %p136 = por %p134, %p135
    %p137 = scmp.ne.s32.totalorder %s123, %s124
    %p138 = scmp.eq.s32.totalorder %s26, 3
    %p139 = por %p137, %p138
    %p141 = scmp.ne.s32.totalorder %s124, %s140
    %p142 = scmp.eq.s32.totalorder %s26, 0
    %p143 = por %p141, %p142
    %s144 = ssub.s32 %s28, %s35
    %p145 = scmp.eq.s32.totalorder %s144, 0
    %s147 = sadd.s32 %s146, 1
    %s148 = scalar_select %p145, %s146, %s147
    %p151 = pneg %p145
    %p152 = scmp.eq.s32.totalorder %s20, 3
    %p153 = por %p151, %p152
    %p154 = scmp.ne.s32.totalorder %s146, %s149
    %p155 = scmp.eq.s32.totalorder %s20, 0
    %p156 = por %p154, %p155
    %p157 = scmp.ne.s32.totalorder %s146, %s149
    %p158 = scmp.eq.s32.totalorder %s25, 3
    %p159 = por %p157, %p158
    %p160 = scmp.ne.s32.totalorder %s149, %s150
    %p161 = scmp.eq.s32.totalorder %s25, 0
    %p162 = por %p160, %p161
    %p163 = scmp.ne.s32.totalorder %s149, %s150
    %p164 = scmp.eq.s32.totalorder %s26, 3
    %p165 = por %p163, %p164
    %p167 = scmp.ne.s32.totalorder %s150, %s166
    %p168 = scmp.eq.s32.totalorder %s26, 0
    %p169 = por %p167, %p168
    %s170 = ssub.s32 %s28, %s35
    %p171 = scmp.eq.s32.totalorder %s170, 0
    %s173 = sadd.s32 %s172, 1
    %s174 = scalar_select %p171, %s172, %s173
    %p177 = pneg %p171
    %p178 = scmp.eq.s32.totalorder %s20, 3
    %p179 = por %p177, %p178
    %p180 = scmp.ne.s32.totalorder %s172, %s175
    %p181 = scmp.eq.s32.totalorder %s20, 0
    %p182 = por %p180, %p181
    %p183 = scmp.ne.s32.totalorder %s172, %s175
    %p184 = scmp.eq.s32.totalorder %s25, 3
    %p185 = por %p183, %p184
    %p186 = scmp.ne.s32.totalorder %s175, %s176
    %p187 = scmp.eq.s32.totalorder %s25, 0
    %p188 = por %p186, %p187
    %p189 = scmp.ne.s32.totalorder %s175, %s176
    %p190 = scmp.eq.s32.totalorder %s26, 3
    %p191 = por %p189, %p190
    %p193 = scmp.ne.s32.totalorder %s176, %s192
    %p194 = scmp.eq.s32.totalorder %s26, 0
    %p195 = por %p193, %p194
    %s196 = ssub.s32 %s28, %s35
    %p197 = scmp.eq.s32.totalorder %s196, 0
    %s199 = sadd.s32 %s198, 1
    %s200 = scalar_select %p197, %s198, %s199
    %p203 = pneg %p197
    %p204 = scmp.eq.s32.totalorder %s20, 3
    %p205 = por %p203, %p204
    %p206 = scmp.ne.s32.totalorder %s198, %s201
    %p207 = scmp.eq.s32.totalorder %s20, 0
    %p208 = por %p206, %p207
    %p209 = scmp.ne.s32.totalorder %s198, %s201
    %p210 = scmp.eq.s32.totalorder %s25, 3
    %p211 = por %p209, %p210
    %p212 = scmp.ne.s32.totalorder %s201, %s202
    %p213 = scmp.eq.s32.totalorder %s25, 0
    %p214 = por %p212, %p213
    %p215 = scmp.ne.s32.totalorder %s201, %s202
    %p216 = scmp.eq.s32.totalorder %s26, 3
    %p217 = por %p215, %p216
    %p219 = scmp.ne.s32.totalorder %s202, %s218
    %p220 = scmp.eq.s32.totalorder %s26, 0
    %p221 = por %p219, %p220
    %s222 = ssub.s32 %s28, %s35
    %p223 = scmp.eq.s32.totalorder %s222, 0
    %s225 = sadd.s32 %s224, 1
    %s226 = scalar_select %p223, %s224, %s225
    %p229 = pneg %p223
    %p230 = scmp.eq.s32.totalorder %s20, 3
    %p231 = por %p229, %p230
    %p232 = scmp.ne.s32.totalorder %s224, %s227
    %p233 = scmp.eq.s32.totalorder %s20, 0
    %p234 = por %p232, %p233
    %p235 = scmp.ne.s32.totalorder %s224, %s227
    %p236 = scmp.eq.s32.totalorder %s25, 3
    %p237 = por %p235, %p236
    %p238 = scmp.ne.s32.totalorder %s227, %s228
    %p239 = scmp.eq.s32.totalorder %s25, 0
    %p240 = por %p238, %p239
    %p241 = scmp.ne.s32.totalorder %s227, %s228
    %p242 = scmp.eq.s32.totalorder %s26, 3
    %p243 = por %p241, %p242
    %p245 = scmp.ne.s32.totalorder %s228, %s244
    %p246 = scmp.eq.s32.totalorder %s26, 0
    %p247 = por %p245, %p246
    %s248 = ssub.s32 %s28, %s35
    %p249 = scmp.eq.s32.totalorder %s248, 0
    %s251 = sadd.s32 %s250, 1
    %s252 = scalar_select %p249, %s250, %s251
    %p255 = pneg %p249
    %p256 = scmp.eq.s32.totalorder %s20, 3
    %p257 = por %p255, %p256
    %p258 = scmp.ne.s32.totalorder %s250, %s253
    %p259 = scmp.eq.s32.totalorder %s20, 0
    %p260 = por %p258, %p259
    %p261 = scmp.ne.s32.totalorder %s250, %s253
    %p262 = scmp.eq.s32.totalorder %s25, 3
    %p263 = por %p261, %p262
    %p264 = scmp.ne.s32.totalorder %s253, %s254
    %p265 = scmp.eq.s32.totalorder %s25, 0
    %p266 = por %p264, %p265
    %p267 = scmp.ne.s32.totalorder %s253, %s254
    %p268 = scmp.eq.s32.totalorder %s26, 3
    %p269 = por %p267, %p268
    %p271 = scmp.ne.s32.totalorder %s254, %s270
    %p272 = scmp.eq.s32.totalorder %s26, 0
    %p273 = por %p271, %p272
    %s274 = ssub.s32 %s28, %s35
    %p275 = scmp.eq.s32.totalorder %s274, 0
    %s277 = sadd.s32 %s276, 1
    %s278 = scalar_select %p275, %s276, %s277
    %p281 = pneg %p275
    %p282 = scmp.eq.s32.totalorder %s20, 3
    %p283 = por %p281, %p282
    %p284 = scmp.ne.s32.totalorder %s276, %s279
    %p285 = scmp.eq.s32.totalorder %s20, 0
    %p286 = por %p284, %p285
    %p287 = scmp.ne.s32.totalorder %s276, %s279
    %p288 = scmp.eq.s32.totalorder %s25, 3
    %p289 = por %p287, %p288
    %p290 = scmp.ne.s32.totalorder %s279, %s280
    %p291 = scmp.eq.s32.totalorder %s25, 0
    %p292 = por %p290, %p291
    %p293 = scmp.ne.s32.totalorder %s279, %s280
    %p294 = scmp.eq.s32.totalorder %s26, 3
    %p295 = por %p293, %p294
    %p297 = scmp.ne.s32.totalorder %s280, %s296
    %p298 = scmp.eq.s32.totalorder %s26, 0
    %p299 = por %p297, %p298
    %s300 = ssub.s32 %s28, %s35
    %p301 = scmp.eq.s32.totalorder %s300, 0
    %s303 = sadd.s32 %s302, 1
    %s304 = scalar_select %p301, %s302, %s303
    %p307 = pneg %p301
    %p308 = scmp.eq.s32.totalorder %s20, 3
    %p309 = por %p307, %p308
    %p310 = scmp.ne.s32.totalorder %s302, %s305
    %p311 = scmp.eq.s32.totalorder %s20, 0
    %p312 = por %p310, %p311
    %p313 = scmp.ne.s32.totalorder %s302, %s305
    %p314 = scmp.eq.s32.totalorder %s25, 3
    %p315 = por %p313, %p314
    %p316 = scmp.ne.s32.totalorder %s305, %s306
    %p317 = scmp.eq.s32.totalorder %s25, 0
    %p318 = por %p316, %p317
    %p319 = scmp.ne.s32.totalorder %s305, %s306
    %p320 = scmp.eq.s32.totalorder %s26, 3
    %p321 = por %p319, %p320
    %p323 = scmp.ne.s32.totalorder %s306, %s322
    %p324 = scmp.eq.s32.totalorder %s26, 0
    %p325 = por %p323, %p324
    %s326 = ssub.s32 %s28, %s35
    %p327 = scmp.eq.s32.totalorder %s326, 0
    %s329 = sadd.s32 %s328, 1
    %s330 = scalar_select %p327, %s328, %s329
    %p333 = pneg %p327
    %p334 = scmp.eq.s32.totalorder %s20, 3
    %p335 = por %p333, %p334
    %p336 = scmp.ne.s32.totalorder %s328, %s331
    %p337 = scmp.eq.s32.totalorder %s20, 0
    %p338 = por %p336, %p337
    %p339 = scmp.ne.s32.totalorder %s328, %s331
    %p340 = scmp.eq.s32.totalorder %s25, 3
    %p341 = por %p339, %p340
    %p342 = scmp.ne.s32.totalorder %s331, %s332
    %p343 = scmp.eq.s32.totalorder %s25, 0
    %p344 = por %p342, %p343
    %p345 = scmp.ne.s32.totalorder %s331, %s332
    %p346 = scmp.eq.s32.totalorder %s26, 3
    %p347 = por %p345, %p346
    %p349 = scmp.ne.s32.totalorder %s332, %s348
    %p350 = scmp.eq.s32.totalorder %s26, 0
    %p351 = por %p349, %p350
    %s352 = ssub.s32 %s28, %s35
    %p353 = scmp.eq.s32.totalorder %s352, 0
    %s355 = sadd.s32 %s354, 1
    %s356 = scalar_select %p353, %s354, %s355
    %p359 = pneg %p353
    %p360 = scmp.eq.s32.totalorder %s20, 3
    %p361 = por %p359, %p360
    %p362 = scmp.ne.s32.totalorder %s354, %s357
    %p363 = scmp.eq.s32.totalorder %s20, 0
    %p364 = por %p362, %p363
    %p365 = scmp.ne.s32.totalorder %s354, %s357
    %p366 = scmp.eq.s32.totalorder %s25, 3
    %p367 = por %p365, %p366
    %p368 = scmp.ne.s32.totalorder %s357, %s358
    %p369 = scmp.eq.s32.totalorder %s25, 0
    %p370 = por %p368, %p369
    %p371 = scmp.ne.s32.totalorder %s357, %s358
    %p372 = scmp.eq.s32.totalorder %s26, 3
    %p373 = por %p371, %p372
    %p375 = scmp.ne.s32.totalorder %s358, %s374
    %p376 = scmp.eq.s32.totalorder %s26, 0
    %p377 = por %p375, %p376
    %s378 = ssub.s32 %s28, %s35
    %p379 = scmp.eq.s32.totalorder %s378, 0
    %s381 = sadd.s32 %s380, 1
    %s382 = scalar_select %p379, %s380, %s381
    %p385 = pneg %p379
    %p386 = scmp.eq.s32.totalorder %s20, 3
    %p387 = por %p385, %p386
    %p388 = scmp.ne.s32.totalorder %s380, %s383
    %p389 = scmp.eq.s32.totalorder %s20, 0
    %p390 = por %p388, %p389
    %p391 = scmp.ne.s32.totalorder %s380, %s383
    %p392 = scmp.eq.s32.totalorder %s25, 3
    %p393 = por %p391, %p392
    %p394 = scmp.ne.s32.totalorder %s383, %s384
    %p395 = scmp.eq.s32.totalorder %s25, 0
    %p396 = por %p394, %p395
    %p397 = scmp.ne.s32.totalorder %s383, %s384
    %p398 = scmp.eq.s32.totalorder %s26, 3
    %p399 = por %p397, %p398
    %p401 = scmp.ne.s32.totalorder %s384, %s400
    %p402 = scmp.eq.s32.totalorder %s26, 0
    %p403 = por %p401, %p402
    %s404 = ssub.s32 %s27, %s39
    %p405 = scmp.eq.s32.totalorder %s404, 0
    %s407 = sadd.s32 %s406, 1
    %s408 = scalar_select %p405, %s406, %s407
    %p411 = pneg %p405
    %p412 = scmp.eq.s32.totalorder %s20, 3
    %p413 = por %p411, %p412
    %p414 = scmp.ne.s32.totalorder %s406, %s409
    %p415 = scmp.eq.s32.totalorder %s20, 0
    %p416 = por %p414, %p415
    %p417 = scmp.ne.s32.totalorder %s406, %s409
    %p418 = scmp.eq.s32.totalorder %s25, 3
    %p419 = por %p417, %p418
    %p420 = scmp.ne.s32.totalorder %s409, %s410
    %p421 = scmp.eq.s32.totalorder %s25, 0
    %p422 = por %p420, %p421
    %p423 = scmp.ne.s32.totalorder %s409, %s410
    %p424 = scmp.eq.s32.totalorder %s26, 3
    %p425 = por %p423, %p424
    %p427 = scmp.ne.s32.totalorder %s410, %s426
    %p428 = scmp.eq.s32.totalorder %s26, 0
    %p429 = por %p427, %p428
    %p430 = scmp.le.s32.totalorder 1, %s20
    %p431 = scmp.lt.s32.totalorder %s20, 5
    %p432 = pnand %p430, %p431
    %p433 = pneg %p432
    // Predicated region
    $region9: #{_forward_impl.2} parent=5 // pred_check
      _
    $region10: #{_forward_impl.2} parent=5 // pred_check_branch
      %435 = sbr.rel (%p432) target = $region12
    $region11: #{_forward_impl.2} parent=5 // pred_region
      %s436 = ssub.s32 %s20, 1
    $region12: #{_forward_impl.2} parent=5 // pred_fallthru
      _
    %p437 = scmp.lt.s32.totalorder %s20, 4
    // Predicated region
    $region13: #{_forward_impl.2} parent=5 // pred_check
      %p438 = pneg %p437
    $region14: #{_forward_impl.2} parent=5 // pred_check_branch
      %440 = sbr.rel (%p438) target = $region16
    $region15: #{_forward_impl.2} parent=5 // pred_region
      // Predicated region
      $region17: #{_forward_impl.2} parent=15 // pred_check
        %p441 = pneg %p52
      $region18: #{_forward_impl.2} parent=15 // pred_check_branch
        %443 = sbr.rel (%p441) target = $region20
      $region19: #{_forward_impl.2} parent=15 // pred_region
        %p444 = scmp.lt.s32.totalorder %s27, 1
        %s445 = scalar_select %p444, %s27, 1
        %s446 = smul.addr %s445, 2
        %s447 = smul.addr %s446, 4
        %s448 = scalar_lea.vmem %s0, %s447
      $region20: #{_forward_impl.2} parent=15 // pred_fallthru
        _
      // Predicated region
      $region21: #{_forward_impl.2} parent=15 // pred_check
        %p449 = pneg %p78
      $region22: #{_forward_impl.2} parent=15 // pred_check_branch
        %451 = sbr.rel (%p449) target = $region24
      $region23: #{_forward_impl.2} parent=15 // pred_region
        %p452 = scmp.lt.s32.totalorder %s27, 1
        %s453 = scalar_select %p452, %s27, 1
        %s454 = scalar_lea.vmem %s1, %s453
      $region24: #{_forward_impl.2} parent=15 // pred_fallthru
        _
      // Predicated region
      $region25: #{_forward_impl.2} parent=15 // pred_check
        %p455 = pneg %p104
      $region26: #{_forward_impl.2} parent=15 // pred_check_branch
        %457 = sbr.rel (%p455) target = $region28
      $region27: #{_forward_impl.2} parent=15 // pred_region
        %p458 = scmp.lt.s32.totalorder %s28, 1
        %s459 = scalar_select %p458, %s28, 1
        %s460 = smul.addr %s459, 48
        %s461 = smul.addr %s460, 4
        %s462 = scalar_lea.vmem %s2, %s461
      $region28: #{_forward_impl.2} parent=15 // pred_fallthru
        _
      // Predicated region
      $region29: #{_forward_impl.2} parent=15 // pred_check
        %p463 = pneg %p130
      $region30: #{_forward_impl.2} parent=15 // pred_check_branch
        %465 = sbr.rel (%p463) target = $region32
      $region31: #{_forward_impl.2} parent=15 // pred_region
        %p466 = scmp.lt.s32.totalorder %s28, 1
        %s467 = scalar_select %p466, %s28, 1
        %s468 = smul.addr %s467, 3
        %s469 = scalar_lea.vmem %s3, %s468
      $region32: #{_forward_impl.2} parent=15 // pred_fallthru
        _
      // Predicated region
      $region33: #{_forward_impl.2} parent=15 // pred_check
        %p470 = pneg %p156
      $region34: #{_forward_impl.2} parent=15 // pred_check_branch
        %472 = sbr.rel (%p470) target = $region36
      $region35: #{_forward_impl.2} parent=15 // pred_region
        %p473 = scmp.lt.s32.totalorder %s28, 1
        %s474 = scalar_select %p473, %s28, 1
        %s475 = smul.addr %s474, 16
        %s476 = smul.addr %s475, 4
        %s477 = scalar_lea.vmem %s4, %s476
      $region36: #{_forward_impl.2} parent=15 // pred_fallthru
        _
      // Predicated region
      $region37: #{_forward_impl.2} parent=15 // pred_check
        %p478 = pneg %p182
      $region38: #{_forward_impl.2} parent=15 // pred_check_branch
        %480 = sbr.rel (%p478) target = $region40
      $region39: #{_forward_impl.2} parent=15 // pred_region
        %p481 = scmp.lt.s32.totalorder %s28, 1
        %s482 = scalar_select %p481, %s28, 1
        %s483 = scalar_lea.vmem %s5, %s482
      $region40: #{_forward_impl.2} parent=15 // pred_fallthru
        _
      // Predicated region
      $region41: #{_forward_impl.2} parent=15 // pred_check
        %p484 = pneg %p208
      $region42: #{_forward_impl.2} parent=15 // pred_check_branch
        %486 = sbr.rel (%p484) target = $region44
      $region43: #{_forward_impl.2} parent=15 // pred_region
        %p487 = scmp.lt.s32.totalorder %s28, 1
        %s488 = scalar_select %p487, %s28, 1
        %s489 = scalar_lea.vmem %s6, %s488
      $region44: #{_forward_impl.2} parent=15 // pred_fallthru
        _
      // Predicated region
      $region45: #{_forward_impl.2} parent=15 // pred_check
        %p490 = pneg %p234
      $region46: #{_forward_impl.2} parent=15 // pred_check_branch
        %492 = sbr.rel (%p490) target = $region48
      $region47: #{_forward_impl.2} parent=15 // pred_region
        %p493 = scmp.lt.s32.totalorder %s28, 1
        %s494 = scalar_select %p493, %s28, 1
        %s495 = scalar_lea.vmem %s7, %s494
      $region48: #{_forward_impl.2} parent=15 // pred_fallthru
        _
      // Predicated region
      $region49: #{_forward_impl.2} parent=15 // pred_check
        %p496 = pneg %p260
      $region50: #{_forward_impl.2} parent=15 // pred_check_branch
        %498 = sbr.rel (%p496) target = $region52
      $region51: #{_forward_impl.2} parent=15 // pred_region
        %p499 = scmp.lt.s32.totalorder %s28, 1
        %s500 = scalar_select %p499, %s28, 1
        %s501 = smul.addr %s500, 32
        %s502 = smul.addr %s501, 4
        %s503 = scalar_lea.vmem %s8, %s502
      $region52: #{_forward_impl.2} parent=15 // pred_fallthru
        _
      // Predicated region
      $region53: #{_forward_impl.2} parent=15 // pred_check
        %p504 = pneg %p286
      $region54: #{_forward_impl.2} parent=15 // pred_check_branch
        %506 = sbr.rel (%p504) target = $region56
      $region55: #{_forward_impl.2} parent=15 // pred_region
        %p507 = scmp.lt.s32.totalorder %s28, 1
        %s508 = scalar_select %p507, %s28, 1
        %s509 = smul.addr %s508, 2
        %s510 = scalar_lea.vmem %s9, %s509
      $region56: #{_forward_impl.2} parent=15 // pred_fallthru
        _
      // Predicated region
      $region57: #{_forward_impl.2} parent=15 // pred_check
        %p511 = pneg %p312
      $region58: #{_forward_impl.2} parent=15 // pred_check_branch
        %513 = sbr.rel (%p511) target = $region60
      $region59: #{_forward_impl.2} parent=15 // pred_region
        %p514 = scmp.lt.s32.totalorder %s28, 1
        %s515 = scalar_select %p514, %s28, 1
        %s516 = smul.addr %s515, 32
        %s517 = smul.addr %s516, 4
        %s518 = scalar_lea.vmem %s10, %s517
      $region60: #{_forward_impl.2} parent=15 // pred_fallthru
        _
      // Predicated region
      $region61: #{_forward_impl.2} parent=15 // pred_check
        %p519 = pneg %p338
      $region62: #{_forward_impl.2} parent=15 // pred_check_branch
        %521 = sbr.rel (%p519) target = $region64
      $region63: #{_forward_impl.2} parent=15 // pred_region
        %p522 = scmp.lt.s32.totalorder %s28, 1
        %s523 = scalar_select %p522, %s28, 1
        %s524 = scalar_lea.vmem %s11, %s523
      $region64: #{_forward_impl.2} parent=15 // pred_fallthru
        _
      // Predicated region
      $region65: #{_forward_impl.2} parent=15 // pred_check
        %p525 = pneg %p364
      $region66: #{_forward_impl.2} parent=15 // pred_check_branch
        %527 = sbr.rel (%p525) target = $region68
      $region67: #{_forward_impl.2} parent=15 // pred_region
        %p528 = scmp.lt.s32.totalorder %s28, 1
        %s529 = scalar_select %p528, %s28, 1
        %s530 = scalar_lea.vmem %s12, %s529
      $region68: #{_forward_impl.2} parent=15 // pred_fallthru
        _
      // Predicated region
      $region69: #{_forward_impl.2} parent=15 // pred_check
        %p531 = pneg %p390
      $region70: #{_forward_impl.2} parent=15 // pred_check_branch
        %533 = sbr.rel (%p531) target = $region72
      $region71: #{_forward_impl.2} parent=15 // pred_region
        %p534 = scmp.lt.s32.totalorder %s28, 1
        %s535 = scalar_select %p534, %s28, 1
        %s536 = scalar_lea.vmem %s13, %s535
      $region72: #{_forward_impl.2} parent=15 // pred_fallthru
        _
    $region16: #{_forward_impl.2} parent=5 // pred_fallthru
      _
    %p537 = scmp.le.s32.totalorder 1, %s20
    %p538 = scmp.lt.s32.totalorder %s20, 5
    %p539 = pnand %p537, %p538
    %p540 = pneg %p539
    // Predicated region
    $region73: #{_forward_impl.2} parent=5 // pred_check
      _
    $region74: #{_forward_impl.2} parent=5 // pred_check_branch
      %542 = sbr.rel (%p539) target = $region76
    $region75: #{_forward_impl.2} parent=5 // pred_region
      %s543 = ssub.s32 %s20, 1
      %p544 = scmp.lt.s32.totalorder %s29, 1
      %s545 = scalar_select %p544, %s29, 1
      %s546 = smul.addr %s545, 2
      %s547 = smul.addr %s546, 4
      %s548 = scalar_lea.vmem %s0, %s547
      %p549 = pneg %p58
      %p550 = pneg %p55
      %p551 = scmp.lt.s32.totalorder %s29, 1
      %s552 = scalar_select %p551, %s29, 1
      %s553 = scalar_lea.vmem %s1, %s552
      %p554 = pneg %p84
      %p555 = pneg %p81
      %p556 = scmp.lt.s32.totalorder %s30, 1
      %s557 = scalar_select %p556, %s30, 1
      %s558 = smul.addr %s557, 48
      %s559 = smul.addr %s558, 4
      %s560 = scalar_lea.vmem %s2, %s559
      %p561 = pneg %p110
      %p562 = pneg %p107
      %p563 = scmp.lt.s32.totalorder %s30, 1
      %s564 = scalar_select %p563, %s30, 1
      %s565 = smul.addr %s564, 3
      %s566 = scalar_lea.vmem %s3, %s565
      %p567 = pneg %p136
      %p568 = pneg %p133
      %p569 = scmp.lt.s32.totalorder %s30, 1
      %s570 = scalar_select %p569, %s30, 1
      %s571 = smul.addr %s570, 16
      %s572 = smul.addr %s571, 4
      %s573 = scalar_lea.vmem %s4, %s572
      %p574 = pneg %p162
      %p575 = pneg %p159
      %p576 = scmp.lt.s32.totalorder %s30, 1
      %s577 = scalar_select %p576, %s30, 1
      %s578 = scalar_lea.vmem %s5, %s577
      %p579 = pneg %p188
      %p580 = pneg %p185
      %p581 = scmp.lt.s32.totalorder %s30, 1
      %s582 = scalar_select %p581, %s30, 1
      %s583 = scalar_lea.vmem %s6, %s582
      %p584 = pneg %p214
      %p585 = pneg %p211
      %p586 = scmp.lt.s32.totalorder %s30, 1
      %s587 = scalar_select %p586, %s30, 1
      %s588 = scalar_lea.vmem %s7, %s587
      %p589 = pneg %p240
      %p590 = pneg %p237
      %p591 = scmp.lt.s32.totalorder %s30, 1
      %s592 = scalar_select %p591, %s30, 1
      %s593 = smul.addr %s592, 32
      %s594 = smul.addr %s593, 4
      %s595 = scalar_lea.vmem %s8, %s594
      %p596 = pneg %p266
      %p597 = pneg %p263
      %p598 = scmp.lt.s32.totalorder %s30, 1
      %s599 = scalar_select %p598, %s30, 1
      %s600 = smul.addr %s599, 2
      %s601 = scalar_lea.vmem %s9, %s600
      %p602 = pneg %p292
      %p603 = pneg %p289
      %p604 = scmp.lt.s32.totalorder %s30, 1
      %s605 = scalar_select %p604, %s30, 1
      %s606 = smul.addr %s605, 32
      %s607 = smul.addr %s606, 4
      %s608 = scalar_lea.vmem %s10, %s607
      %p609 = pneg %p318
      %p610 = pneg %p315
      %p611 = scmp.lt.s32.totalorder %s30, 1
      %s612 = scalar_select %p611, %s30, 1
      %s613 = scalar_lea.vmem %s11, %s612
      %p614 = pneg %p344
      %p615 = pneg %p341
      %p616 = scmp.lt.s32.totalorder %s30, 1
      %s617 = scalar_select %p616, %s30, 1
      %s618 = scalar_lea.vmem %s12, %s617
      %p619 = pneg %p370
      %p620 = pneg %p367
      %p621 = scmp.lt.s32.totalorder %s30, 1
      %s622 = scalar_select %p621, %s30, 1
      %s623 = scalar_lea.vmem %s13, %s622
      %p624 = pneg %p396
      %p625 = pneg %p393
      %p626 = pneg %p422
      %p627 = pneg %p419
      %p628 = scmp.lt.s32.totalorder %s29, 1
      %s629 = scalar_select %p628, %s29, 1
      %s630 = smul.addr %s629, 2
      %s631 = smul.addr %s630, 4
      %s632 = scalar_lea.vmem %s14, %s631
      %p633 = scmp.lt.s32.totalorder %s29, 1
      %s634 = scalar_select %p633, %s29, 1
      %s635 = smul.addr %s634, 2
      %s636 = smul.addr %s635, 4
      %s637 = scalar_lea.vmem %s0, %s636
      %p638 = scmp.lt.s32.totalorder %s29, 1
      %s639 = scalar_select %p638, %s29, 1
      %s640 = scalar_lea.vmem %s1, %s639
      %p641 = scmp.lt.s32.totalorder %s30, 1
      %s642 = scalar_select %p641, %s30, 1
      %s643 = smul.addr %s642, 48
      %s644 = smul.addr %s643, 4
      %s645 = scalar_lea.vmem %s2, %s644
      %p646 = scmp.lt.s32.totalorder %s30, 1
      %s647 = scalar_select %p646, %s30, 1
      %s648 = smul.addr %s647, 3
      %s649 = scalar_lea.vmem %s3, %s648
      %p650 = scmp.lt.s32.totalorder %s30, 1
      %s651 = scalar_select %p650, %s30, 1
      %s652 = smul.addr %s651, 16
      %s653 = smul.addr %s652, 4
      %s654 = scalar_lea.vmem %s4, %s653
      %p655 = scmp.lt.s32.totalorder %s30, 1
      %s656 = scalar_select %p655, %s30, 1
      %s657 = scalar_lea.vmem %s5, %s656
      %p658 = scmp.lt.s32.totalorder %s30, 1
      %s659 = scalar_select %p658, %s30, 1
      %s660 = scalar_lea.vmem %s6, %s659
      %p661 = scmp.lt.s32.totalorder %s30, 1
      %s662 = scalar_select %p661, %s30, 1
      %s663 = scalar_lea.vmem %s7, %s662
      %p664 = scmp.lt.s32.totalorder %s30, 1
      %s665 = scalar_select %p664, %s30, 1
      %s666 = smul.addr %s665, 32
      %s667 = smul.addr %s666, 4
      %s668 = scalar_lea.vmem %s8, %s667
      %p669 = scmp.lt.s32.totalorder %s30, 1
      %s670 = scalar_select %p669, %s30, 1
      %s671 = smul.addr %s670, 2
      %s672 = scalar_lea.vmem %s9, %s671
      %p673 = scmp.lt.s32.totalorder %s30, 1
      %s674 = scalar_select %p673, %s30, 1
      %s675 = smul.addr %s674, 32
      %s676 = smul.addr %s675, 4
      %s677 = scalar_lea.vmem %s10, %s676
      %p678 = scmp.lt.s32.totalorder %s30, 1
      %s679 = scalar_select %p678, %s30, 1
      %s680 = scalar_lea.vmem %s11, %s679
      %p681 = scmp.lt.s32.totalorder %s30, 1
      %s682 = scalar_select %p681, %s30, 1
      %s683 = scalar_lea.vmem %s12, %s682
      %p684 = scmp.lt.s32.totalorder %s30, 1
      %s685 = scalar_select %p684, %s30, 1
      %s686 = scalar_lea.vmem %s13, %s685
      %p687 = scmp.lt.s32.totalorder %s29, 1
      %s688 = scalar_select %p687, %s29, 1
      %s689 = smul.addr %s688, 2
      %s690 = smul.addr %s689, 4
      %s691 = scalar_lea.vmem %s14, %s690
      %p693 = scmp.eq.s32.totalorder %s30, 0
      // Predicated region
      $region77: #{_forward_impl.2} parent=75 // pred_check
        %p694 = pneg %p693
      $region78: #{_forward_impl.2} parent=75 // pred_check_branch
        %696 = sbr.rel (%p694) target = $region80
      $region79: #{_forward_impl.2} parent=75 // pred_region
        %v697 = vld [vmem:[%s637] sm:$0xf]
        %v698 = vld [vmem:[%s637 + $0x4] sm:$0xf]
        %v699 = vunpack.c.l.bf16 %v697
        %v700 = vunpack.c.l.bf16 %v698
        %701 = vst [vmem:[#allocation2] sm:$0xff] %v699
        %702 = vst [vmem:[#allocation2 + $0x8] sm:$0xff] %v700
      $region80: #{_forward_impl.2} parent=75 // pred_fallthru
        _
      %v703 = vld [vmem:[#allocation2] sm:$0xff]
      %v704 = vld [vmem:[#allocation2 + $0x8] sm:$0xff]
      %v705 = vpack.c.bf16 %v704, %v703
      %v706 = vld [vmem:[%s645] sm:$0xff]
      %v707 = vld [vmem:[%s645 + $0x8] sm:$0xf]
      %v708 = vld [vmem:[%s645 + $0xc] sm:$0xff]
      %v709 = vld [vmem:[%s645 + $0x14] sm:$0xf]
      %v710 = vld [vmem:[%s645 + $0x18] sm:$0xff]
      %v711 = vld [vmem:[%s645 + $0x20] sm:$0xf]
      %v712 = vld [vmem:[%s645 + $0x24] sm:$0xff]
      %v713 = vld [vmem:[%s645 + $0x2c] sm:$0xf]
      %v714 = vld [vmem:[%s645 + $0x30] sm:$0xff]
      %v715 = vld [vmem:[%s645 + $0x38] sm:$0xf]
      %v716 = vld [vmem:[%s645 + $0x3c] sm:$0xff]
      %v717 = vld [vmem:[%s645 + $0x44] sm:$0xf]
      %v718 = vld [vmem:[%s645 + $0x48] sm:$0xff]
      %v719 = vld [vmem:[%s645 + $0x50] sm:$0xf]
      %v720 = vld [vmem:[%s645 + $0x54] sm:$0xff]
      %v721 = vld [vmem:[%s645 + $0x5c] sm:$0xf]
      %v722 = vld [vmem:[%s645 + $0x60] sm:$0xff]
      %v723 = vld [vmem:[%s645 + $0x68] sm:$0xf]
      %v724 = vld [vmem:[%s645 + $0x6c] sm:$0xff]
      %v725 = vld [vmem:[%s645 + $0x74] sm:$0xf]
      %v726 = vld [vmem:[%s645 + $0x78] sm:$0xff]
      %v727 = vld [vmem:[%s645 + $0x80] sm:$0xf]
      %v728 = vld [vmem:[%s645 + $0x84] sm:$0xff]
      %v729 = vld [vmem:[%s645 + $0x8c] sm:$0xf]
      %v730 = vld [vmem:[%s645 + $0x90] sm:$0xff]
      %v731 = vld [vmem:[%s645 + $0x98] sm:$0xf]
      %v732 = vld [vmem:[%s645 + $0x9c] sm:$0xff]
      %v733 = vld [vmem:[%s645 + $0xa4] sm:$0xf]
      %v734 = vld [vmem:[%s645 + $0xa8] sm:$0xff]
      %v735 = vld [vmem:[%s645 + $0xb0] sm:$0xf]
      %v736 = vld [vmem:[%s645 + $0xb4] sm:$0xff]
      %v737 = vld [vmem:[%s645 + $0xbc] sm:$0xf]
      %v738 = vld [vmem:[%s649] sm:$0x7]
      %v740 = vlaneseq
      %v741 = vshrl.u32 %v740, 7
      %v742 = vsub.s32 0, %v741
      %v743 = vrot.slane %v738, %v742
      %v744 = vlaneseq
      %v745 = vshrl.u32 %v744, 7
      %v746 = vsub.s32 1, %v745
      %v747 = vrot.slane %v738, %v746
      %v748 = vlaneseq
      %v749 = vshrl.u32 %v748, 7
      %v750 = vsub.s32 2, %v749
      %v751 = vrot.slane %v738, %v750
      %v787 = vunpack.c.l.b16 %v706
      %v788 = vunpack.c.h.b16 %v706
      %v789 = vunpack.c.l.b16 %v707
      %v790 = vunpack.c.l.b16 %v708
      %v791 = vunpack.c.h.b16 %v708
      %v792 = vunpack.c.l.b16 %v709
      %v793 = vunpack.c.l.b16 %v710
      %v794 = vunpack.c.h.b16 %v710
      %v795 = vunpack.c.l.b16 %v711
      %v796 = vunpack.c.l.b16 %v712
      %v797 = vunpack.c.h.b16 %v712
      %v798 = vunpack.c.l.b16 %v713
      %v799 = vunpack.c.l.b16 %v714
      %v800 = vunpack.c.h.b16 %v714
      %v801 = vunpack.c.l.b16 %v715
      %v802 = vunpack.c.l.b16 %v716
      %v803 = vunpack.c.h.b16 %v716
      %v804 = vunpack.c.l.b16 %v717
      %v805 = vunpack.c.l.b16 %v718
      %v806 = vunpack.c.h.b16 %v718
      %v807 = vunpack.c.l.b16 %v719
      %v808 = vunpack.c.l.b16 %v720
      %v809 = vunpack.c.h.b16 %v720
      %v810 = vunpack.c.l.b16 %v721
      %v811 = vunpack.c.l.b16 %v722
      %v812 = vunpack.c.h.b16 %v722
      %v813 = vunpack.c.l.b16 %v723
      %v814 = vunpack.c.l.b16 %v724
      %v815 = vunpack.c.h.b16 %v724
      %v816 = vunpack.c.l.b16 %v725
      %v817 = vunpack.c.l.b16 %v726
      %v818 = vunpack.c.h.b16 %v726
      %v819 = vunpack.c.l.b16 %v727
      %v820 = vunpack.c.l.b16 %v728
      %v821 = vunpack.c.h.b16 %v728
      %v822 = vunpack.c.l.b16 %v729
      %v823 = vunpack.c.l.b16 %v730
      %v824 = vunpack.c.h.b16 %v730
      %v825 = vunpack.c.l.b16 %v731
      %v826 = vunpack.c.l.b16 %v732
      %v827 = vunpack.c.h.b16 %v732
      %v828 = vunpack.c.l.b16 %v733
      %v829 = vunpack.c.l.b16 %v734
      %v830 = vunpack.c.h.b16 %v734
      %v831 = vunpack.c.l.b16 %v735
      %v832 = vunpack.c.l.b16 %v736
      %v833 = vunpack.c.h.b16 %v736
      %v834 = vunpack.c.l.b16 %v737
      %v835 = vpack.c.b16 %v790, %v787
      %v836 = vpack.c.b16 %v791, %v788
      %v837 = vpack.c.b16 %v792, %v789
      %v838 = vpack.c.b16 %v796, %v793
      %v839 = vpack.c.b16 %v797, %v794
      %v840 = vpack.c.b16 %v798, %v795
      %v841 = vpack.c.b16 %v802, %v799
      %v842 = vpack.c.b16 %v803, %v800
      %v843 = vpack.c.b16 %v804, %v801
      %v844 = vpack.c.b16 %v808, %v805
      %v845 = vpack.c.b16 %v809, %v806
      %v846 = vpack.c.b16 %v810, %v807
      %v847 = vpack.c.b16 %v814, %v811
      %v848 = vpack.c.b16 %v815, %v812
      %v849 = vpack.c.b16 %v816, %v813
      %v850 = vpack.c.b16 %v820, %v817
      %v851 = vpack.c.b16 %v821, %v818
      %v852 = vpack.c.b16 %v822, %v819
      %v853 = vpack.c.b16 %v826, %v823
      %v854 = vpack.c.b16 %v827, %v824
      %v855 = vpack.c.b16 %v828, %v825
      %v856 = vpack.c.b16 %v832, %v829
      %v857 = vpack.c.b16 %v833, %v830
      %v858 = vpack.c.b16 %v834, %v831
      %883 = vmatprep.subr.bf16.mxu0 %v836
      %884 = vmatpush1.bf16.msra.mxu0 %v835
      %885 = vmatprep.subr.bf16.mxu0 %v839
      %886 = vmatpush1.bf16.msra.mxu0 %v838
      %887 = vmatprep.subr.bf16.mxu0 %v842
      %888 = vmatpush1.bf16.msra.mxu0 %v841
      %889 = vmatprep.subr.bf16.mxu0 %v845
      %890 = vmatpush1.bf16.msra.mxu0 %v844
      %891 = vmatprep.subr.bf16.mxu0 %v848
      %892 = vmatpush1.bf16.msra.mxu0 %v847
      %893 = vmatprep.subr.bf16.mxu0 %v851
      %894 = vmatpush1.bf16.msra.mxu0 %v850
      %895 = vmatprep.subr.bf16.mxu0 %v854
      %896 = vmatpush1.bf16.msra.mxu0 %v853
      %897 = vmatprep.subr.bf16.mxu0 %v857
      %898 = vmatpush1.bf16.msra.mxu0 %v856
      %899 = vmatprep.subr.bf16.mxu0 0
      %900 = vmatpush1.bf16.msra.mxu0 0
      %901 = vmatprep.subr.bf16.mxu0 0
      %902 = vmatpush1.bf16.msra.mxu0 0
      %903 = vmatprep.subr.bf16.mxu0 0
      %904 = vmatpush1.bf16.msra.mxu0 0
      %905 = vmatprep.subr.bf16.mxu0 0
      %906 = vmatpush1.bf16.msra.mxu0 0
      %907 = vmatprep.subr.bf16.mxu0 0
      %908 = vmatpush1.bf16.msra.mxu0 0
      %909 = vmatprep.subr.bf16.mxu0 0
      %910 = vmatpush1.bf16.msra.mxu0 0
      %911 = vmatprep.subr.bf16.mxu0 0
      %912 = vmatpush1.bf16.msra.mxu0 0
      %913 = vmatprep.subr.bf16.mxu0 0
      %914 = vmatpush1.bf16.msra.mxu0 0
      %915 = vmatprep.mubr.bf16.mxu0 0
      %916 = vmatmul.mubr.bf16.gmra.mrb[0].mxu0 %v705
      %v917 = vpop.f32.mrb[0].mxu0
      %v918 = vadd.f32 %v743, %v917
      %v919 = vpop.f32.mrb[0].mxu0
      %v920 = vadd.f32 %v747, %v919
      %v921 = vpop.f32.mrb[0].mxu0
      %v922 = vadd.f32 %v743, %v921
      %v923 = vpop.f32.mrb[0].mxu0
      %v924 = vadd.f32 %v747, %v923
      %925 = vdwg.mxu0
      %926 = vmatprep.subr.bf16.mxu0 0
      %927 = vmatpush1.bf16.msra.mxu0 %v837
      %928 = vmatprep.subr.bf16.mxu0 0
      %929 = vmatpush1.bf16.msra.mxu0 %v840
      %930 = vmatprep.subr.bf16.mxu0 0
      %931 = vmatpush1.bf16.msra.mxu0 %v843
      %932 = vmatprep.subr.bf16.mxu0 0
      %933 = vmatpush1.bf16.msra.mxu0 %v846
      %934 = vmatprep.subr.bf16.mxu0 0
      %935 = vmatpush1.bf16.msra.mxu0 %v849
      %936 = vmatprep.subr.bf16.mxu0 0
      %937 = vmatpush1.bf16.msra.mxu0 %v852
      %938 = vmatprep.subr.bf16.mxu0 0
      %939 = vmatpush1.bf16.msra.mxu0 %v855
      %940 = vmatprep.subr.bf16.mxu0 0
      %941 = vmatpush1.bf16.msra.mxu0 %v858
      %942 = vmatprep.subr.bf16.mxu0 0
      %943 = vmatpush1.bf16.msra.mxu0 0
      %944 = vmatprep.subr.bf16.mxu0 0
      %945 = vmatpush1.bf16.msra.mxu0 0
      %946 = vmatprep.subr.bf16.mxu0 0
      %947 = vmatpush1.bf16.msra.mxu0 0
      %948 = vmatprep.subr.bf16.mxu0 0
      %949 = vmatpush1.bf16.msra.mxu0 0
      %950 = vmatprep.subr.bf16.mxu0 0
      %951 = vmatpush1.bf16.msra.mxu0 0
      %952 = vmatprep.subr.bf16.mxu0 0
      %953 = vmatpush1.bf16.msra.mxu0 0
      %954 = vmatprep.subr.bf16.mxu0 0
      %955 = vmatpush1.bf16.msra.mxu0 0
      %956 = vmatprep.subr.bf16.mxu0 0
      %957 = vmatpush1.bf16.msra.mxu0 0
      %958 = vmatprep.mubr.bf16.mxu0 0
      %959 = vmatmul.mubr.bf16.gmra.mrb[0].mxu0 %v705
      %v960 = vpop.f32.mrb[0].mxu0
      %v961 = vadd.f32 %v751, %v960
      %v962 = vpop.f32.mrb[0].mxu0
      %v963 = vpop.f32.mrb[0].mxu0
      %v964 = vadd.f32 %v751, %v963
      %v965 = vpop.f32.mrb[0].mxu0
      %966 = vdwg.mxu0
      %v967 = vld [vmem:[%s640] sm:$0x1]
      %vm968 = vcmask 261120
      %v970 = vsel %vm968, %v918, 0
      %v973 = vsel %vm968, %v922, 0
      %v976 = vsel %vm968, %v920, 0
      %v979 = vsel %vm968, %v924, 0
      %981 = vmatprep.subr.mxu0 0.0
      %982 = vmatpush1.xpose.msra.mxu0 %v976
      %983 = vmatprep.subr.mxu0 0.0
      %984 = vmatpush1.xpose.msra.mxu0 %v979
      %985 = vmatprep.subr.mxu0 0.0
      %986 = vmatpush1.xpose.msra.mxu0 0.0
      %987 = vmatprep.subr.mxu0 0.0
      %988 = vmatpush1.xpose.msra.mxu0 0.0
      %989 = vmatprep.subr.mxu0 0.0
      %990 = vmatpush1.xpose.msra.mxu0 0.0
      %991 = vmatprep.subr.mxu0 0.0
      %992 = vmatpush1.xpose.msra.mxu0 0.0
      %993 = vmatprep.subr.mxu0 0.0
      %994 = vmatpush1.xpose.msra.mxu0 0.0
      %995 = vmatprep.subr.mxu0 0.0
      %996 = vmatpush1.xpose.msra.mxu0 0.0
      %997 = vmatprep.subr.mxu0 0.0
      %998 = vmatpush1.xpose.msra.mxu0 0.0
      %999 = vmatprep.subr.mxu0 0.0
      %1000 = vmatpush1.xpose.msra.mxu0 0.0
      %1001 = vmatprep.subr.mxu0 0.0
      %1002 = vmatpush1.xpose.msra.mxu0 0.0
      %1003 = vmatprep.subr.mxu0 0.0
      %1004 = vmatpush1.xpose.msra.mxu0 0.0
      %1005 = vmatprep.subr.mxu0 0.0
      %1006 = vmatpush1.xpose.msra.mxu0 0.0
      %1007 = vmatprep.subr.mxu0 0.0
      %1008 = vmatpush1.xpose.msra.mxu0 0.0
      %1009 = vmatprep.subr.mxu0 0.0
      %1010 = vmatpush1.xpose.msra.mxu0 0.0
      %1011 = vmatprep.subr.mxu0 0.0
      %1012 = vmatpush1.xpose.msra.mxu0 0.0
      %1013 = vmatprep.subr.mxu0 0.0
      %1014 = vmatpush1.xpose.msra.mxu0 0.0
      %1015 = vmatprep.subr.mxu0 0.0
      %1016 = vmatpush1.xpose.msra.mxu0 0.0
      %1017 = vmatprep.subr.mxu0 0.0
      %1018 = vmatpush1.xpose.msra.mxu0 0.0
      %1019 = vmatprep.subr.mxu0 0.0
      %1020 = vmatpush1.xpose.msra.mxu0 0.0
      %1021 = vmatprep.subr.mxu0 0.0
      %1022 = vmatpush1.xpose.msra.mxu0 0.0
      %1023 = vmatprep.subr.mxu0 0.0
      %1024 = vmatpush1.xpose.msra.mxu0 0.0
      %1025 = vmatprep.subr.mxu0 0.0
      %1026 = vmatpush1.xpose.msra.mxu0 0.0
      %1027 = vmatprep.subr.mxu0 0.0
      %1028 = vmatpush1.xpose.msra.mxu0 0.0
      %1029 = vmatprep.subr.mxu0 0.0
      %1030 = vmatpush1.xpose.msra.mxu0 0.0
      %1031 = vmatprep.subr.mxu0 0.0
      %1032 = vmatpush1.xpose.msra.mxu0 0.0
      %1033 = vmatprep.subr.mxu0 0.0
      %1034 = vmatpush1.xpose.msra.mxu0 0.0
      %1035 = vmatprep.subr.mxu0 0.0
      %1036 = vmatpush1.xpose.msra.mxu0 0.0
      %1037 = vmatprep.subr.mxu0 0.0
      %1038 = vmatpush1.xpose.msra.mxu0 0.0
      %1039 = vmatprep.subr.mxu0 0.0
      %1040 = vmatpush1.xpose.msra.mxu0 0.0
      %1041 = vmatprep.subr.mxu0 0.0
      %1042 = vmatpush1.xpose.msra.mxu0 0.0
      %1043 = vmatprep.subr.mxu0 0.0
      %1044 = vmatpush1.xpose.msra.mxu0 0.0
      %1045 = vmatprep.mubr.f32.mxu0 0.0
      %1046 = vmatmul.mubr.f32.gmra.mrb[0].mxu0 %v970
      %v1047 = vpop.f32.mrb[0].mxu0
      %v1048 = vadd.f32 0.0, %v1047
      %v1049 = vpop.f32.mrb[0].mxu0
      %1050 = vmatprep.mubr.f32.mxu0 0.0
      %1051 = vmatmul.mubr.f32.gmra.mrb[0].mxu0 %v973
      %v1052 = vpop.f32.mrb[0].mxu0
      %v1053 = vadd.f32 0.0, %v1052
      %v1054 = vpop.f32.mrb[0].mxu0
      %1055 = vdwg.mxu0
      %v1056 = vmul.f32 %v1048, 0.17677669
      %v1057 = vmul.f32 %v1053, 0.17677669
      %v1059 = vlaneseq
      %v1060 = vshrl.u32 %v1059, 7
      %v1061 = vsub.s32 0, %v1060
      %v1062 = vrot.slane %v967, %v1061
      %v1064 = vadd.f32 %v1056, %v1062
      %v1065 = vadd.f32 %v1057, %v1062
      %vm1066 = vcmask 130048
      %v1067 = vsel %vm1066, %v1064, -inf
      %1068 = vmax.xlane.f32.xlu0 %v1067
      %v1069 = vpop.xlane.xlu0 %1068
      %v1070 = vsel %vm1066, %v1065, -inf
      %1071 = vmax.xlane.f32.xlu0 %v1070
      %v1072 = vpop.xlane.xlu0 %1071
      %v1073 = vsub.f32 %v1064, %v1069
      %v1074 = vsub.f32 %v1065, %v1072
      %v1075 = vmul.f32 %v1073, 1.442695
      %v1076 = vpow.pop %v1075
      %v1077 = vmul.f32 %v1074, 1.442695
      %v1078 = vpow.pop %v1077
      %v1079 = vsel %vm1066, %v1076, 0.0
      %1080 = vadd.xlane.f32.xlu0 %v1079
      %v1081 = vpop.xlane.xlu0 %1080
      %v1082 = vsel %vm1066, %v1078, 0.0
      %1083 = vadd.xlane.f32.xlu0 %v1082
      %v1084 = vpop.xlane.xlu0 %1083
      %v1085 = vrcp.pop %v1081
      %v1086 = vrcp.pop %v1084
      %v1087 = vmul.f32 %v1076, %v1085
      %v1088 = vmul.f32 %v1078, %v1086
      %v1090 = vsel %vm1066, %v1087, 0
      %v1093 = vsel %vm1066, %v1088, 0
      %1095 = vmatprep.subr.mxu0 0.0
      %1096 = vmatpush1.msra.mxu0 %v961
      %1097 = vmatprep.subr.mxu0 0.0
      %1098 = vmatpush1.msra.mxu0 %v964
      %1099 = vmatprep.subr.mxu0 0.0
      %1100 = vmatpush1.msra.mxu0 0.0
      %1101 = vmatprep.subr.mxu0 0.0
      %1102 = vmatpush1.msra.mxu0 0.0
      %1103 = vmatprep.subr.mxu0 0.0
      %1104 = vmatpush1.msra.mxu0 0.0
      %1105 = vmatprep.subr.mxu0 0.0
      %1106 = vmatpush1.msra.mxu0 0.0
      %1107 = vmatprep.subr.mxu0 0.0
      %1108 = vmatpush1.msra.mxu0 0.0
      %1109 = vmatprep.subr.mxu0 0.0
      %1110 = vmatpush1.msra.mxu0 0.0
      %1111 = vmatprep.subr.mxu0 0.0
      %1112 = vmatpush1.msra.mxu0 0.0
      %1113 = vmatprep.subr.mxu0 0.0
      %1114 = vmatpush1.msra.mxu0 0.0
      %1115 = vmatprep.subr.mxu0 0.0
      %1116 = vmatpush1.msra.mxu0 0.0
      %1117 = vmatprep.subr.mxu0 0.0
      %1118 = vmatpush1.msra.mxu0 0.0
      %1119 = vmatprep.subr.mxu0 0.0
      %1120 = vmatpush1.msra.mxu0 0.0
      %1121 = vmatprep.subr.mxu0 0.0
      %1122 = vmatpush1.msra.mxu0 0.0
      %1123 = vmatprep.subr.mxu0 0.0
      %1124 = vmatpush1.msra.mxu0 0.0
      %1125 = vmatprep.subr.mxu0 0.0
      %1126 = vmatpush1.msra.mxu0 0.0
      %1127 = vmatprep.subr.mxu0 0.0
      %1128 = vmatpush1.msra.mxu0 0.0
      %1129 = vmatprep.subr.mxu0 0.0
      %1130 = vmatpush1.msra.mxu0 0.0
      %1131 = vmatprep.subr.mxu0 0.0
      %1132 = vmatpush1.msra.mxu0 0.0
      %1133 = vmatprep.subr.mxu0 0.0
      %1134 = vmatpush1.msra.mxu0 0.0
      %1135 = vmatprep.subr.mxu0 0.0
      %1136 = vmatpush1.msra.mxu0 0.0
      %1137 = vmatprep.subr.mxu0 0.0
      %1138 = vmatpush1.msra.mxu0 0.0
      %1139 = vmatprep.subr.mxu0 0.0
      %1140 = vmatpush1.msra.mxu0 0.0
      %1141 = vmatprep.subr.mxu0 0.0
      %1142 = vmatpush1.msra.mxu0 0.0
      %1143 = vmatprep.subr.mxu0 0.0
      %1144 = vmatpush1.msra.mxu0 0.0
      %1145 = vmatprep.subr.mxu0 0.0
      %1146 = vmatpush1.msra.mxu0 0.0
      %1147 = vmatprep.subr.mxu0 0.0
      %1148 = vmatpush1.msra.mxu0 0.0
      %1149 = vmatprep.subr.mxu0 0.0
      %1150 = vmatpush1.msra.mxu0 0.0
      %1151 = vmatprep.subr.mxu0 0.0
      %1152 = vmatpush1.msra.mxu0 0.0
      %1153 = vmatprep.subr.mxu0 0.0
      %1154 = vmatpush1.msra.mxu0 0.0
      %1155 = vmatprep.subr.mxu0 0.0
      %1156 = vmatpush1.msra.mxu0 0.0
      %1157 = vmatprep.subr.mxu0 0.0
      %1158 = vmatpush1.msra.mxu0 0.0
      %1159 = vmatprep.mubr.f32.mxu0 0.0
      %1160 = vmatmul.mubr.f32.gmra.mrb[0].mxu0 %v1090
      %v1161 = vpop.f32.mrb[0].mxu0
      %v1162 = vadd.f32 0.0, %v1161
      %v1163 = vpop.f32.mrb[0].mxu0
      %1164 = vmatprep.mubr.f32.mxu0 0.0
      %1165 = vmatmul.mubr.f32.gmra.mrb[0].mxu0 %v1093
      %v1166 = vpop.f32.mrb[0].mxu0
      %v1167 = vadd.f32 0.0, %v1166
      %v1168 = vpop.f32.mrb[0].mxu0
      %1169 = vdwg.mxu0
      %1170 = vrot.lane.b32.xlu0 %v918, 96
      %v1171 = vpop.permute.xlu0 %1170
      %1172 = vrot.lane.b32.xlu0 %v922, 96
      %v1173 = vpop.permute.xlu0 %1172
      %1174 = vrot.lane.b32.xlu0 %v920, 96
      %v1175 = vpop.permute.xlu0 %1174
      %1176 = vrot.lane.b32.xlu0 %v924, 96
      %v1177 = vpop.permute.xlu0 %1176
      %v1178 = vsel %vm968, %v1171, 0
      %v1180 = vsel %vm968, %v1173, 0
      %v1182 = vsel %vm968, %v1175, 0
      %v1184 = vsel %vm968, %v1177, 0
      %1186 = vmatprep.subr.mxu0 0.0
      %1187 = vmatpush1.xpose.msra.mxu0 %v1182
      %1188 = vmatprep.subr.mxu0 0.0
      %1189 = vmatpush1.xpose.msra.mxu0 %v1184
      %1190 = vmatprep.subr.mxu0 0.0
      %1191 = vmatpush1.xpose.msra.mxu0 0.0
      %1192 = vmatprep.subr.mxu0 0.0
      %1193 = vmatpush1.xpose.msra.mxu0 0.0
      %1194 = vmatprep.subr.mxu0 0.0
      %1195 = vmatpush1.xpose.msra.mxu0 0.0
      %1196 = vmatprep.subr.mxu0 0.0
      %1197 = vmatpush1.xpose.msra.mxu0 0.0
      %1198 = vmatprep.subr.mxu0 0.0
      %1199 = vmatpush1.xpose.msra.mxu0 0.0
      %1200 = vmatprep.subr.mxu0 0.0
      %1201 = vmatpush1.xpose.msra.mxu0 0.0
      %1202 = vmatprep.subr.mxu0 0.0
      %1203 = vmatpush1.xpose.msra.mxu0 0.0
      %1204 = vmatprep.subr.mxu0 0.0
      %1205 = vmatpush1.xpose.msra.mxu0 0.0
      %1206 = vmatprep.subr.mxu0 0.0
      %1207 = vmatpush1.xpose.msra.mxu0 0.0
      %1208 = vmatprep.subr.mxu0 0.0
      %1209 = vmatpush1.xpose.msra.mxu0 0.0
      %1210 = vmatprep.subr.mxu0 0.0
      %1211 = vmatpush1.xpose.msra.mxu0 0.0
      %1212 = vmatprep.subr.mxu0 0.0
      %1213 = vmatpush1.xpose.msra.mxu0 0.0
      %1214 = vmatprep.subr.mxu0 0.0
      %1215 = vmatpush1.xpose.msra.mxu0 0.0
      %1216 = vmatprep.subr.mxu0 0.0
      %1217 = vmatpush1.xpose.msra.mxu0 0.0
      %1218 = vmatprep.subr.mxu0 0.0
      %1219 = vmatpush1.xpose.msra.mxu0 0.0
      %1220 = vmatprep.subr.mxu0 0.0
      %1221 = vmatpush1.xpose.msra.mxu0 0.0
      %1222 = vmatprep.subr.mxu0 0.0
      %1223 = vmatpush1.xpose.msra.mxu0 0.0
      %1224 = vmatprep.subr.mxu0 0.0
      %1225 = vmatpush1.xpose.msra.mxu0 0.0
      %1226 = vmatprep.subr.mxu0 0.0
      %1227 = vmatpush1.xpose.msra.mxu0 0.0
      %1228 = vmatprep.subr.mxu0 0.0
      %1229 = vmatpush1.xpose.msra.mxu0 0.0
      %1230 = vmatprep.subr.mxu0 0.0
      %1231 = vmatpush1.xpose.msra.mxu0 0.0
      %1232 = vmatprep.subr.mxu0 0.0
      %1233 = vmatpush1.xpose.msra.mxu0 0.0
      %1234 = vmatprep.subr.mxu0 0.0
      %1235 = vmatpush1.xpose.msra.mxu0 0.0
      %1236 = vmatprep.subr.mxu0 0.0
      %1237 = vmatpush1.xpose.msra.mxu0 0.0
      %1238 = vmatprep.subr.mxu0 0.0
      %1239 = vmatpush1.xpose.msra.mxu0 0.0
      %1240 = vmatprep.subr.mxu0 0.0
      %1241 = vmatpush1.xpose.msra.mxu0 0.0
      %1242 = vmatprep.subr.mxu0 0.0
      %1243 = vmatpush1.xpose.msra.mxu0 0.0
      %1244 = vmatprep.subr.mxu0 0.0
      %1245 = vmatpush1.xpose.msra.mxu0 0.0
      %1246 = vmatprep.subr.mxu0 0.0
      %1247 = vmatpush1.xpose.msra.mxu0 0.0
      %1248 = vmatprep.subr.mxu0 0.0
      %1249 = vmatpush1.xpose.msra.mxu0 0.0
      %1250 = vmatprep.mubr.f32.mxu0 0.0
      %1251 = vmatmul.mubr.f32.gmra.mrb[0].mxu0 %v1178
      %v1252 = vpop.f32.mrb[0].mxu0
      %v1253 = vadd.f32 0.0, %v1252
      %v1254 = vpop.f32.mrb[0].mxu0
      %1255 = vmatprep.mubr.f32.mxu0 0.0
      %1256 = vmatmul.mubr.f32.gmra.mrb[0].mxu0 %v1180
      %v1257 = vpop.f32.mrb[0].mxu0
      %v1258 = vadd.f32 0.0, %v1257
      %v1259 = vpop.f32.mrb[0].mxu0
      %1260 = vdwg.mxu0
      %v1261 = vmul.f32 %v1253, 0.17677669
      %v1262 = vmul.f32 %v1258, 0.17677669
      %v1263 = vadd.f32 %v1261, %v1062
      %v1264 = vadd.f32 %v1262, %v1062
      %v1265 = vsel %vm1066, %v1263, -inf
      %1266 = vmax.xlane.f32.xlu0 %v1265
      %v1267 = vpop.xlane.xlu0 %1266
      %v1268 = vsel %vm1066, %v1264, -inf
      %1269 = vmax.xlane.f32.xlu0 %v1268
      %v1270 = vpop.xlane.xlu0 %1269
      %v1271 = vsub.f32 %v1263, %v1267
      %v1272 = vsub.f32 %v1264, %v1270
      %v1273 = vmul.f32 %v1271, 1.442695
      %v1274 = vpow.pop %v1273
      %v1275 = vmul.f32 %v1272, 1.442695
      %v1276 = vpow.pop %v1275
      %v1277 = vsel %vm1066, %v1274, 0.0
      %1278 = vadd.xlane.f32.xlu0 %v1277
      %v1279 = vpop.xlane.xlu0 %1278
      %v1280 = vsel %vm1066, %v1276, 0.0
      %1281 = vadd.xlane.f32.xlu0 %v1280
      %v1282 = vpop.xlane.xlu0 %1281
      %v1283 = vrcp.pop %v1279
      %v1284 = vrcp.pop %v1282
      %v1285 = vmul.f32 %v1274, %v1283
      %v1286 = vmul.f32 %v1276, %v1284
      %1289 = vrot.lane.b32.xlu0 %v961, 96
      %v1290 = vpop.permute.xlu0 %1289
      %1291 = vrot.lane.b32.xlu0 %v964, 96
      %v1292 = vpop.permute.xlu0 %1291
      %v1296 = vsel %vm1066, %v1285, 0
      %v1299 = vsel %vm1066, %v1286, 0
      %1301 = vmatprep.subr.mxu0 0.0
      %1302 = vmatpush1.msra.mxu0 %v1290
      %1303 = vmatprep.subr.mxu0 0.0
      %1304 = vmatpush1.msra.mxu0 %v1292
      %1305 = vmatprep.subr.mxu0 0.0
      %1306 = vmatpush1.msra.mxu0 0.0
      %1307 = vmatprep.subr.mxu0 0.0
      %1308 = vmatpush1.msra.mxu0 0.0
      %1309 = vmatprep.subr.mxu0 0.0
      %1310 = vmatpush1.msra.mxu0 0.0
      %1311 = vmatprep.subr.mxu0 0.0
      %1312 = vmatpush1.msra.mxu0 0.0
      %1313 = vmatprep.subr.mxu0 0.0
      %1314 = vmatpush1.msra.mxu0 0.0
      %1315 = vmatprep.subr.mxu0 0.0
      %1316 = vmatpush1.msra.mxu0 0.0
      %1317 = vmatprep.subr.mxu0 0.0
      %1318 = vmatpush1.msra.mxu0 0.0
      %1319 = vmatprep.subr.mxu0 0.0
      %1320 = vmatpush1.msra.mxu0 0.0
      %1321 = vmatprep.subr.mxu0 0.0
      %1322 = vmatpush1.msra.mxu0 0.0
      %1323 = vmatprep.subr.mxu0 0.0
      %1324 = vmatpush1.msra.mxu0 0.0
      %1325 = vmatprep.subr.mxu0 0.0
      %1326 = vmatpush1.msra.mxu0 0.0
      %1327 = vmatprep.subr.mxu0 0.0
      %1328 = vmatpush1.msra.mxu0 0.0
      %1329 = vmatprep.subr.mxu0 0.0
      %1330 = vmatpush1.msra.mxu0 0.0
      %1331 = vmatprep.subr.mxu0 0.0
      %1332 = vmatpush1.msra.mxu0 0.0
      %1333 = vmatprep.subr.mxu0 0.0
      %1334 = vmatpush1.msra.mxu0 0.0
      %1335 = vmatprep.subr.mxu0 0.0
      %1336 = vmatpush1.msra.mxu0 0.0
      %1337 = vmatprep.subr.mxu0 0.0
      %1338 = vmatpush1.msra.mxu0 0.0
      %1339 = vmatprep.subr.mxu0 0.0
      %1340 = vmatpush1.msra.mxu0 0.0
      %1341 = vmatprep.subr.mxu0 0.0
      %1342 = vmatpush1.msra.mxu0 0.0
      %1343 = vmatprep.subr.mxu0 0.0
      %1344 = vmatpush1.msra.mxu0 0.0
      %1345 = vmatprep.subr.mxu0 0.0
      %1346 = vmatpush1.msra.mxu0 0.0
      %1347 = vmatprep.subr.mxu0 0.0
      %1348 = vmatpush1.msra.mxu0 0.0
      %1349 = vmatprep.subr.mxu0 0.0
      %1350 = vmatpush1.msra.mxu0 0.0
      %1351 = vmatprep.subr.mxu0 0.0
      %1352 = vmatpush1.msra.mxu0 0.0
      %1353 = vmatprep.subr.mxu0 0.0
      %1354 = vmatpush1.msra.mxu0 0.0
      %1355 = vmatprep.subr.mxu0 0.0
      %1356 = vmatpush1.msra.mxu0 0.0
      %1357 = vmatprep.subr.mxu0 0.0
      %1358 = vmatpush1.msra.mxu0 0.0
      %1359 = vmatprep.subr.mxu0 0.0
      %1360 = vmatpush1.msra.mxu0 0.0
      %1361 = vmatprep.subr.mxu0 0.0
      %1362 = vmatpush1.msra.mxu0 0.0
      %1363 = vmatprep.subr.mxu0 0.0
      %1364 = vmatpush1.msra.mxu0 0.0
      %1365 = vmatprep.mubr.f32.mxu0 0.0
      %1366 = vmatmul.mubr.f32.gmra.mrb[0].mxu0 %v1296
      %v1367 = vpop.f32.mrb[0].mxu0
      %v1368 = vadd.f32 0.0, %v1367
      %v1369 = vpop.f32.mrb[0].mxu0
      %1370 = vmatprep.mubr.f32.mxu0 0.0
      %1371 = vmatmul.mubr.f32.gmra.mrb[0].mxu0 %v1299
      %v1372 = vpop.f32.mrb[0].mxu0
      %v1373 = vadd.f32 0.0, %v1372
      %v1374 = vpop.f32.mrb[0].mxu0
      %1375 = vdwg.mxu0
      %1376 = vrot.lane.b32.xlu0 %v918, 64
      %v1377 = vpop.permute.xlu0 %1376
      %1378 = vrot.lane.b32.xlu0 %v922, 64
      %v1379 = vpop.permute.xlu0 %1378
      %1380 = vrot.lane.b32.xlu0 %v920, 64
      %v1381 = vpop.permute.xlu0 %1380
      %1382 = vrot.lane.b32.xlu0 %v924, 64
      %v1383 = vpop.permute.xlu0 %1382
      %v1384 = vsel %vm968, %v1377, 0
      %v1386 = vsel %vm968, %v1379, 0
      %v1388 = vsel %vm968, %v1381, 0
      %v1390 = vsel %vm968, %v1383, 0
      %1392 = vmatprep.subr.mxu0 0.0
      %1393 = vmatpush1.xpose.msra.mxu0 %v1388
      %1394 = vmatprep.subr.mxu0 0.0
      %1395 = vmatpush1.xpose.msra.mxu0 %v1390
      %1396 = vmatprep.subr.mxu0 0.0
      %1397 = vmatpush1.xpose.msra.mxu0 0.0
      %1398 = vmatprep.subr.mxu0 0.0
      %1399 = vmatpush1.xpose.msra.mxu0 0.0
      %1400 = vmatprep.subr.mxu0 0.0
      %1401 = vmatpush1.xpose.msra.mxu0 0.0
      %1402 = vmatprep.subr.mxu0 0.0
      %1403 = vmatpush1.xpose.msra.mxu0 0.0
      %1404 = vmatprep.subr.mxu0 0.0
      %1405 = vmatpush1.xpose.msra.mxu0 0.0
      %1406 = vmatprep.subr.mxu0 0.0
      %1407 = vmatpush1.xpose.msra.mxu0 0.0
      %1408 = vmatprep.subr.mxu0 0.0
      %1409 = vmatpush1.xpose.msra.mxu0 0.0
      %1410 = vmatprep.subr.mxu0 0.0
      %1411 = vmatpush1.xpose.msra.mxu0 0.0
      %1412 = vmatprep.subr.mxu0 0.0
      %1413 = vmatpush1.xpose.msra.mxu0 0.0
      %1414 = vmatprep.subr.mxu0 0.0
      %1415 = vmatpush1.xpose.msra.mxu0 0.0
      %1416 = vmatprep.subr.mxu0 0.0
      %1417 = vmatpush1.xpose.msra.mxu0 0.0
      %1418 = vmatprep.subr.mxu0 0.0
      %1419 = vmatpush1.xpose.msra.mxu0 0.0
      %1420 = vmatprep.subr.mxu0 0.0
      %1421 = vmatpush1.xpose.msra.mxu0 0.0
      %1422 = vmatprep.subr.mxu0 0.0
      %1423 = vmatpush1.xpose.msra.mxu0 0.0
      %1424 = vmatprep.subr.mxu0 0.0
      %1425 = vmatpush1.xpose.msra.mxu0 0.0
      %1426 = vmatprep.subr.mxu0 0.0
      %1427 = vmatpush1.xpose.msra.mxu0 0.0
      %1428 = vmatprep.subr.mxu0 0.0
      %1429 = vmatpush1.xpose.msra.mxu0 0.0
      %1430 = vmatprep.subr.mxu0 0.0
      %1431 = vmatpush1.xpose.msra.mxu0 0.0
      %1432 = vmatprep.subr.mxu0 0.0
      %1433 = vmatpush1.xpose.msra.mxu0 0.0
      %1434 = vmatprep.subr.mxu0 0.0
      %1435 = vmatpush1.xpose.msra.mxu0 0.0
      %1436 = vmatprep.subr.mxu0 0.0
      %1437 = vmatpush1.xpose.msra.mxu0 0.0
      %1438 = vmatprep.subr.mxu0 0.0
      %1439 = vmatpush1.xpose.msra.mxu0 0.0
      %1440 = vmatprep.subr.mxu0 0.0
      %1441 = vmatpush1.xpose.msra.mxu0 0.0
      %1442 = vmatprep.subr.mxu0 0.0
      %1443 = vmatpush1.xpose.msra.mxu0 0.0
      %1444 = vmatprep.subr.mxu0 0.0
      %1445 = vmatpush1.xpose.msra.mxu0 0.0
      %1446 = vmatprep.subr.mxu0 0.0
      %1447 = vmatpush1.xpose.msra.mxu0 0.0
      %1448 = vmatprep.subr.mxu0 0.0
      %1449 = vmatpush1.xpose.msra.mxu0 0.0
      %1450 = vmatprep.subr.mxu0 0.0
      %1451 = vmatpush1.xpose.msra.mxu0 0.0
      %1452 = vmatprep.subr.mxu0 0.0
      %1453 = vmatpush1.xpose.msra.mxu0 0.0
      %1454 = vmatprep.subr.mxu0 0.0
      %1455 = vmatpush1.xpose.msra.mxu0 0.0
      %1456 = vmatprep.mubr.f32.mxu0 0.0
      %1457 = vmatmul.mubr.f32.gmra.mrb[0].mxu0 %v1384
      %v1458 = vpop.f32.mrb[0].mxu0
      %v1459 = vadd.f32 0.0, %v1458
      %v1460 = vpop.f32.mrb[0].mxu0
      %1461 = vmatprep.mubr.f32.mxu0 0.0
      %1462 = vmatmul.mubr.f32.gmra.mrb[0].mxu0 %v1386
      %v1463 = vpop.f32.mrb[0].mxu0
      %v1464 = vadd.f32 0.0, %v1463
      %v1465 = vpop.f32.mrb[0].mxu0
      %1466 = vdwg.mxu0
      %v1467 = vmul.f32 %v1459, 0.17677669
      %v1468 = vmul.f32 %v1464, 0.17677669
      %v1469 = vadd.f32 %v1467, %v1062
      %v1470 = vadd.f32 %v1468, %v1062
      %v1471 = vsel %vm1066, %v1469, -inf
      %1472 = vmax.xlane.f32.xlu0 %v1471
      %v1473 = vpop.xlane.xlu0 %1472
      %v1474 = vsel %vm1066, %v1470, -inf
      %1475 = vmax.xlane.f32.xlu0 %v1474
      %v1476 = vpop.xlane.xlu0 %1475
      %v1477 = vsub.f32 %v1469, %v1473
      %v1478 = vsub.f32 %v1470, %v1476
      %v1479 = vmul.f32 %v1477, 1.442695
      %v1480 = vpow.pop %v1479
      %v1481 = vmul.f32 %v1478, 1.442695
      %v1482 = vpow.pop %v1481
      %v1483 = vsel %vm1066, %v1480, 0.0
      %1484 = vadd.xlane.f32.xlu0 %v1483
      %v1485 = vpop.xlane.xlu0 %1484
      %v1486 = vsel %vm1066, %v1482, 0.0
      %1487 = vadd.xlane.f32.xlu0 %v1486
      %v1488 = vpop.xlane.xlu0 %1487
      %v1489 = vrcp.pop %v1485
      %v1490 = vrcp.pop %v1488
      %v1491 = vmul.f32 %v1480, %v1489
      %v1492 = vmul.f32 %v1482, %v1490
      %1493 = vrot.lane.b32.xlu0 %v961, 64
      %v1494 = vpop.permute.xlu0 %1493
      %1495 = vrot.lane.b32.xlu0 %v964, 64
      %v1496 = vpop.permute.xlu0 %1495
      %v1500 = vsel %vm1066, %v1491, 0
      %v1503 = vsel %vm1066, %v1492, 0
      %1505 = vmatprep.subr.mxu0 0.0
      %1506 = vmatpush1.msra.mxu0 %v1494
      %1507 = vmatprep.subr.mxu0 0.0
      %1508 = vmatpush1.msra.mxu0 %v1496
      %1509 = vmatprep.subr.mxu0 0.0
      %1510 = vmatpush1.msra.mxu0 0.0
      %1511 = vmatprep.subr.mxu0 0.0
      %1512 = vmatpush1.msra.mxu0 0.0
      %1513 = vmatprep.subr.mxu0 0.0
      %1514 = vmatpush1.msra.mxu0 0.0
      %1515 = vmatprep.subr.mxu0 0.0
      %1516 = vmatpush1.msra.mxu0 0.0
      %1517 = vmatprep.subr.mxu0 0.0
      %1518 = vmatpush1.msra.mxu0 0.0
      %1519 = vmatprep.subr.mxu0 0.0
      %1520 = vmatpush1.msra.mxu0 0.0
      %1521 = vmatprep.subr.mxu0 0.0
      %1522 = vmatpush1.msra.mxu0 0.0
      %1523 = vmatprep.subr.mxu0 0.0
      %1524 = vmatpush1.msra.mxu0 0.0
      %1525 = vmatprep.subr.mxu0 0.0
      %1526 = vmatpush1.msra.mxu0 0.0
      %1527 = vmatprep.subr.mxu0 0.0
      %1528 = vmatpush1.msra.mxu0 0.0
      %1529 = vmatprep.subr.mxu0 0.0
      %1530 = vmatpush1.msra.mxu0 0.0
      %1531 = vmatprep.subr.mxu0 0.0
      %1532 = vmatpush1.msra.mxu0 0.0
      %1533 = vmatprep.subr.mxu0 0.0
      %1534 = vmatpush1.msra.mxu0 0.0
      %1535 = vmatprep.subr.mxu0 0.0
      %1536 = vmatpush1.msra.mxu0 0.0
      %1537 = vmatprep.subr.mxu0 0.0
      %1538 = vmatpush1.msra.mxu0 0.0
      %1539 = vmatprep.subr.mxu0 0.0
      %1540 = vmatpush1.msra.mxu0 0.0
      %1541 = vmatprep.subr.mxu0 0.0
      %1542 = vmatpush1.msra.mxu0 0.0
      %1543 = vmatprep.subr.mxu0 0.0
      %1544 = vmatpush1.msra.mxu0 0.0
      %1545 = vmatprep.subr.mxu0 0.0
      %1546 = vmatpush1.msra.mxu0 0.0
      %1547 = vmatprep.subr.mxu0 0.0
      %1548 = vmatpush1.msra.mxu0 0.0
      %1549 = vmatprep.subr.mxu0 0.0
      %1550 = vmatpush1.msra.mxu0 0.0
      %1551 = vmatprep.subr.mxu0 0.0
      %1552 = vmatpush1.msra.mxu0 0.0
      %1553 = vmatprep.subr.mxu0 0.0
      %1554 = vmatpush1.msra.mxu0 0.0
      %1555 = vmatprep.subr.mxu0 0.0
      %1556 = vmatpush1.msra.mxu0 0.0
      %1557 = vmatprep.subr.mxu0 0.0
      %1558 = vmatpush1.msra.mxu0 0.0
      %1559 = vmatprep.subr.mxu0 0.0
      %1560 = vmatpush1.msra.mxu0 0.0
      %1561 = vmatprep.subr.mxu0 0.0
      %1562 = vmatpush1.msra.mxu0 0.0
      %1563 = vmatprep.subr.mxu0 0.0
      %1564 = vmatpush1.msra.mxu0 0.0
      %1565 = vmatprep.subr.mxu0 0.0
      %1566 = vmatpush1.msra.mxu0 0.0
      %1567 = vmatprep.subr.mxu0 0.0
      %1568 = vmatpush1.msra.mxu0 0.0
      %1569 = vmatprep.mubr.f32.mxu0 0.0
      %1570 = vmatmul.mubr.f32.gmra.mrb[0].mxu0 %v1500
      %v1571 = vpop.f32.mrb[0].mxu0
      %v1572 = vadd.f32 0.0, %v1571
      %v1573 = vpop.f32.mrb[0].mxu0
      %1574 = vmatprep.mubr.f32.mxu0 0.0
      %1575 = vmatmul.mubr.f32.gmra.mrb[0].mxu0 %v1503
      %v1576 = vpop.f32.mrb[0].mxu0
      %v1577 = vadd.f32 0.0, %v1576
      %v1578 = vpop.f32.mrb[0].mxu0
      %1579 = vdwg.mxu0
      %1580 = vrot.lane.b32.xlu0 %v918, 32
      %v1581 = vpop.permute.xlu0 %1580
      %1582 = vrot.lane.b32.xlu0 %v922, 32
      %v1583 = vpop.permute.xlu0 %1582
      %1584 = vrot.lane.b32.xlu0 %v920, 32
      %v1585 = vpop.permute.xlu0 %1584
      %1586 = vrot.lane.b32.xlu0 %v924, 32
      %v1587 = vpop.permute.xlu0 %1586
      %v1588 = vsel %vm968, %v1581, 0
      %v1590 = vsel %vm968, %v1583, 0
      %v1592 = vsel %vm968, %v1585, 0
      %v1594 = vsel %vm968, %v1587, 0
      %1596 = vmatprep.subr.mxu0 0.0
      %1597 = vmatpush1.xpose.msra.mxu0 %v1592
      %1598 = vmatprep.subr.mxu0 0.0
      %1599 = vmatpush1.xpose.msra.mxu0 %v1594
      %1600 = vmatprep.subr.mxu0 0.0
      %1601 = vmatpush1.xpose.msra.mxu0 0.0
      %1602 = vmatprep.subr.mxu0 0.0
      %1603 = vmatpush1.xpose.msra.mxu0 0.0
      %1604 = vmatprep.subr.mxu0 0.0
      %1605 = vmatpush1.xpose.msra.mxu0 0.0
      %1606 = vmatprep.subr.mxu0 0.0
      %1607 = vmatpush1.xpose.msra.mxu0 0.0
      %1608 = vmatprep.subr.mxu0 0.0
      %1609 = vmatpush1.xpose.msra.mxu0 0.0
      %1610 = vmatprep.subr.mxu0 0.0
      %1611 = vmatpush1.xpose.msra.mxu0 0.0
      %1612 = vmatprep.subr.mxu0 0.0
      %1613 = vmatpush1.xpose.msra.mxu0 0.0
      %1614 = vmatprep.subr.mxu0 0.0
      %1615 = vmatpush1.xpose.msra.mxu0 0.0
      %1616 = vmatprep.subr.mxu0 0.0
      %1617 = vmatpush1.xpose.msra.mxu0 0.0
      %1618 = vmatprep.subr.mxu0 0.0
      %1619 = vmatpush1.xpose.msra.mxu0 0.0
      %1620 = vmatprep.subr.mxu0 0.0
      %1621 = vmatpush1.xpose.msra.mxu0 0.0
      %1622 = vmatprep.subr.mxu0 0.0
      %1623 = vmatpush1.xpose.msra.mxu0 0.0
      %1624 = vmatprep.subr.mxu0 0.0
      %1625 = vmatpush1.xpose.msra.mxu0 0.0
      %1626 = vmatprep.subr.mxu0 0.0
      %1627 = vmatpush1.xpose.msra.mxu0 0.0
      %1628 = vmatprep.subr.mxu0 0.0
      %1629 = vmatpush1.xpose.msra.mxu0 0.0
      %1630 = vmatprep.subr.mxu0 0.0
      %1631 = vmatpush1.xpose.msra.mxu0 0.0
      %1632 = vmatprep.subr.mxu0 0.0
      %1633 = vmatpush1.xpose.msra.mxu0 0.0
      %1634 = vmatprep.subr.mxu0 0.0
      %1635 = vmatpush1.xpose.msra.mxu0 0.0
      %1636 = vmatprep.subr.mxu0 0.0
      %1637 = vmatpush1.xpose.msra.mxu0 0.0
      %1638 = vmatprep.subr.mxu0 0.0
      %1639 = vmatpush1.xpose.msra.mxu0 0.0
      %1640 = vmatprep.subr.mxu0 0.0
      %1641 = vmatpush1.xpose.msra.mxu0 0.0
      %1642 = vmatprep.subr.mxu0 0.0
      %1643 = vmatpush1.xpose.msra.mxu0 0.0
      %1644 = vmatprep.subr.mxu0 0.0
      %1645 = vmatpush1.xpose.msra.mxu0 0.0
      %1646 = vmatprep.subr.mxu0 0.0
      %1647 = vmatpush1.xpose.msra.mxu0 0.0
      %1648 = vmatprep.subr.mxu0 0.0
      %1649 = vmatpush1.xpose.msra.mxu0 0.0
      %1650 = vmatprep.subr.mxu0 0.0
      %1651 = vmatpush1.xpose.msra.mxu0 0.0
      %1652 = vmatprep.subr.mxu0 0.0
      %1653 = vmatpush1.xpose.msra.mxu0 0.0
      %1654 = vmatprep.subr.mxu0 0.0
      %1655 = vmatpush1.xpose.msra.mxu0 0.0
      %1656 = vmatprep.subr.mxu0 0.0
      %1657 = vmatpush1.xpose.msra.mxu0 0.0
      %1658 = vmatprep.subr.mxu0 0.0
      %1659 = vmatpush1.xpose.msra.mxu0 0.0
      %1660 = vmatprep.mubr.f32.mxu0 0.0
      %1661 = vmatmul.mubr.f32.gmra.mrb[0].mxu0 %v1588
      %v1662 = vpop.f32.mrb[0].mxu0
      %v1663 = vadd.f32 0.0, %v1662
      %v1664 = vpop.f32.mrb[0].mxu0
      %1665 = vmatprep.mubr.f32.mxu0 0.0
      %1666 = vmatmul.mubr.f32.gmra.mrb[0].mxu0 %v1590
      %v1667 = vpop.f32.mrb[0].mxu0
      %v1668 = vadd.f32 0.0, %v1667
      %v1669 = vpop.f32.mrb[0].mxu0
      %1670 = vdwg.mxu0
      %v1671 = vmul.f32 %v1663, 0.17677669
      %v1672 = vmul.f32 %v1668, 0.17677669
      %v1673 = vadd.f32 %v1671, %v1062
      %v1674 = vadd.f32 %v1672, %v1062
      %v1675 = vsel %vm1066, %v1673, -inf
      %1676 = vmax.xlane.f32.xlu0 %v1675
      %v1677 = vpop.xlane.xlu0 %1676
      %v1678 = vsel %vm1066, %v1674, -inf
      %1679 = vmax.xlane.f32.xlu0 %v1678
      %v1680 = vpop.xlane.xlu0 %1679
      %v1681 = vsub.f32 %v1673, %v1677
      %v1682 = vsub.f32 %v1674, %v1680
      %v1683 = vmul.f32 %v1681, 1.442695
      %v1684 = vpow.pop %v1683
      %v1685 = vmul.f32 %v1682, 1.442695
      %v1686 = vpow.pop %v1685
      %v1687 = vsel %vm1066, %v1684, 0.0
      %1688 = vadd.xlane.f32.xlu0 %v1687
      %v1689 = vpop.xlane.xlu0 %1688
      %v1690 = vsel %vm1066, %v1686, 0.0
      %1691 = vadd.xlane.f32.xlu0 %v1690
      %v1692 = vpop.xlane.xlu0 %1691
      %v1693 = vrcp.pop %v1689
      %v1694 = vrcp.pop %v1692
      %v1695 = vmul.f32 %v1684, %v1693
      %v1696 = vmul.f32 %v1686, %v1694
      %1697 = vrot.lane.b32.xlu0 %v961, 32
      %v1698 = vpop.permute.xlu0 %1697
      %1699 = vrot.lane.b32.xlu0 %v964, 32
      %v1700 = vpop.permute.xlu0 %1699
      %v1704 = vsel %vm1066, %v1695, 0
      %v1707 = vsel %vm1066, %v1696, 0
      %1709 = vmatprep.subr.mxu0 0.0
      %1710 = vmatpush1.msra.mxu0 %v1698
      %1711 = vmatprep.subr.mxu0 0.0
      %1712 = vmatpush1.msra.mxu0 %v1700
      %1713 = vmatprep.subr.mxu0 0.0
      %1714 = vmatpush1.msra.mxu0 0.0
      %1715 = vmatprep.subr.mxu0 0.0
      %1716 = vmatpush1.msra.mxu0 0.0
      %1717 = vmatprep.subr.mxu0 0.0
      %1718 = vmatpush1.msra.mxu0 0.0
      %1719 = vmatprep.subr.mxu0 0.0
      %1720 = vmatpush1.msra.mxu0 0.0
      %1721 = vmatprep.subr.mxu0 0.0
      %1722 = vmatpush1.msra.mxu0 0.0
      %1723 = vmatprep.subr.mxu0 0.0
      %1724 = vmatpush1.msra.mxu0 0.0
      %1725 = vmatprep.subr.mxu0 0.0
      %1726 = vmatpush1.msra.mxu0 0.0
      %1727 = vmatprep.subr.mxu0 0.0
      %1728 = vmatpush1.msra.mxu0 0.0
      %1729 = vmatprep.subr.mxu0 0.0
      %1730 = vmatpush1.msra.mxu0 0.0
      %1731 = vmatprep.subr.mxu0 0.0
      %1732 = vmatpush1.msra.mxu0 0.0
      %1733 = vmatprep.subr.mxu0 0.0
      %1734 = vmatpush1.msra.mxu0 0.0
      %1735 = vmatprep.subr.mxu0 0.0
      %1736 = vmatpush1.msra.mxu0 0.0
      %1737 = vmatprep.subr.mxu0 0.0
      %1738 = vmatpush1.msra.mxu0 0.0
      %1739 = vmatprep.subr.mxu0 0.0
      %1740 = vmatpush1.msra.mxu0 0.0
      %1741 = vmatprep.subr.mxu0 0.0
      %1742 = vmatpush1.msra.mxu0 0.0
      %1743 = vmatprep.subr.mxu0 0.0
      %1744 = vmatpush1.msra.mxu0 0.0
      %1745 = vmatprep.subr.mxu0 0.0
      %1746 = vmatpush1.msra.mxu0 0.0
      %1747 = vmatprep.subr.mxu0 0.0
      %1748 = vmatpush1.msra.mxu0 0.0
      %1749 = vmatprep.subr.mxu0 0.0
      %1750 = vmatpush1.msra.mxu0 0.0
      %1751 = vmatprep.subr.mxu0 0.0
      %1752 = vmatpush1.msra.mxu0 0.0
      %1753 = vmatprep.subr.mxu0 0.0
      %1754 = vmatpush1.msra.mxu0 0.0
      %1755 = vmatprep.subr.mxu0 0.0
      %1756 = vmatpush1.msra.mxu0 0.0
      %1757 = vmatprep.subr.mxu0 0.0
      %1758 = vmatpush1.msra.mxu0 0.0
      %1759 = vmatprep.subr.mxu0 0.0
      %1760 = vmatpush1.msra.mxu0 0.0
      %1761 = vmatprep.subr.mxu0 0.0
      %1762 = vmatpush1.msra.mxu0 0.0
      %1763 = vmatprep.subr.mxu0 0.0
      %1764 = vmatpush1.msra.mxu0 0.0
      %1765 = vmatprep.subr.mxu0 0.0
      %1766 = vmatpush1.msra.mxu0 0.0
      %1767 = vmatprep.subr.mxu0 0.0
      %1768 = vmatpush1.msra.mxu0 0.0
      %1769 = vmatprep.subr.mxu0 0.0
      %1770 = vmatpush1.msra.mxu0 0.0
      %1771 = vmatprep.subr.mxu0 0.0
      %1772 = vmatpush1.msra.mxu0 0.0
      %1773 = vmatprep.mubr.f32.mxu0 0.0
      %1774 = vmatmul.mubr.f32.gmra.mrb[0].mxu0 %v1704
      %v1775 = vpop.f32.mrb[0].mxu0
      %v1776 = vadd.f32 0.0, %v1775
      %v1777 = vpop.f32.mrb[0].mxu0
      %1778 = vmatprep.mubr.f32.mxu0 0.0
      %1779 = vmatmul.mubr.f32.gmra.mrb[0].mxu0 %v1707
      %v1780 = vpop.f32.mrb[0].mxu0
      %v1781 = vadd.f32 0.0, %v1780
      %v1782 = vpop.f32.mrb[0].mxu0
      %1783 = vdwg.mxu0
      %1786 = vrot.lane.b32.xlu0 %v1368, 32
      %v1787 = vpop.permute.xlu0 %1786
      %1788 = vrot.lane.b32.xlu0 %v1373, 32
      %v1789 = vpop.permute.xlu0 %1788
      %1794 = vrot.lane.b32.xlu0 %v1572, 64
      %v1795 = vpop.permute.xlu0 %1794
      %1796 = vrot.lane.b32.xlu0 %v1577, 64
      %v1797 = vpop.permute.xlu0 %1796
      %1802 = vrot.lane.b32.xlu0 %v1776, 96
      %v1803 = vpop.permute.xlu0 %1802
      %1804 = vrot.lane.b32.xlu0 %v1781, 96
      %v1805 = vpop.permute.xlu0 %1804
      %v1808 = vsel %vm968, %v1162, %v1787
      %v1809 = vsel %vm968, %v1167, %v1789
      %vm1810 = vcmask 523264
      %v1811 = vsel %vm1810, %v1808, %v1795
      %v1812 = vsel %vm1810, %v1809, %v1797
      %vm1813 = vcmask 785408
      %v1814 = vsel %vm1813, %v1811, %v1803
      %v1815 = vsel %vm1813, %v1812, %v1805
      %v1816 = vpack.c.bf16 %v1815, %v1814
      %v1817 = vld [vmem:[%s654] sm:$0xf]
      %v1818 = vld [vmem:[%s654 + $0x4] sm:$0xf]
      %v1819 = vld [vmem:[%s654 + $0x8] sm:$0xf]
      %v1820 = vld [vmem:[%s654 + $0xc] sm:$0xf]
      %v1821 = vld [vmem:[%s654 + $0x10] sm:$0xf]
      %v1822 = vld [vmem:[%s654 + $0x14] sm:$0xf]
      %v1823 = vld [vmem:[%s654 + $0x18] sm:$0xf]
      %v1824 = vld [vmem:[%s654 + $0x1c] sm:$0xf]
      %v1825 = vld [vmem:[%s654 + $0x20] sm:$0xf]
      %v1826 = vld [vmem:[%s654 + $0x24] sm:$0xf]
      %v1827 = vld [vmem:[%s654 + $0x28] sm:$0xf]
      %v1828 = vld [vmem:[%s654 + $0x2c] sm:$0xf]
      %v1829 = vld [vmem:[%s654 + $0x30] sm:$0xf]
      %v1830 = vld [vmem:[%s654 + $0x34] sm:$0xf]
      %v1831 = vld [vmem:[%s654 + $0x38] sm:$0xf]
      %v1832 = vld [vmem:[%s654 + $0x3c] sm:$0xf]
      %v1833 = vld [vmem:[%s657] sm:$0x1]
      %v1835 = vlaneseq
      %v1836 = vshrl.u32 %v1835, 7
      %v1837 = vsub.s32 0, %v1836
      %v1838 = vrot.slane %v1833, %v1837
      %v1856 = vunpack.c.l.b16 %v1817
      %v1857 = vunpack.c.l.b16 %v1818
      %v1858 = vunpack.c.l.b16 %v1819
      %v1859 = vunpack.c.l.b16 %v1820
      %v1860 = vunpack.c.l.b16 %v1821
      %v1861 = vunpack.c.l.b16 %v1822
      %v1862 = vunpack.c.l.b16 %v1823
      %v1863 = vunpack.c.l.b16 %v1824
      %v1864 = vunpack.c.l.b16 %v1825
      %v1865 = vunpack.c.l.b16 %v1826
      %v1866 = vunpack.c.l.b16 %v1827
      %v1867 = vunpack.c.l.b16 %v1828
      %v1868 = vunpack.c.l.b16 %v1829
      %v1869 = vunpack.c.l.b16 %v1830
      %v1870 = vunpack.c.l.b16 %v1831
      %v1871 = vunpack.c.l.b16 %v1832
      %v1872 = vpack.c.b16 %v1857, %v1856
      %v1873 = vpack.c.b16 %v1859, %v1858
      %v1874 = vpack.c.b16 %v1861, %v1860
      %v1875 = vpack.c.b16 %v1863, %v1862
      %v1876 = vpack.c.b16 %v1865, %v1864
      %v1877 = vpack.c.b16 %v1867, %v1866
      %v1878 = vpack.c.b16 %v1869, %v1868
      %v1879 = vpack.c.b16 %v1871, %v1870
      %1888 = vmatprep.subr.bf16.mxu0 0
      %1889 = vmatpush1.bf16.msra.mxu0 %v1872
      %1890 = vmatprep.subr.bf16.mxu0 0
      %1891 = vmatpush1.bf16.msra.mxu0 %v1873
      %1892 = vmatprep.subr.bf16.mxu0 0
      %1893 = vmatpush1.bf16.msra.mxu0 %v1874
      %1894 = vmatprep.subr.bf16.mxu0 0
      %1895 = vmatpush1.bf16.msra.mxu0 %v1875
      %1896 = vmatprep.subr.bf16.mxu0 0
      %1897 = vmatpush1.bf16.msra.mxu0 %v1876
      %1898 = vmatprep.subr.bf16.mxu0 0
      %1899 = vmatpush1.bf16.msra.mxu0 %v1877
      %1900 = vmatprep.subr.bf16.mxu0 0
      %1901 = vmatpush1.bf16.msra.mxu0 %v1878
      %1902 = vmatprep.subr.bf16.mxu0 0
      %1903 = vmatpush1.bf16.msra.mxu0 %v1879
      %1904 = vmatprep.subr.bf16.mxu0 0
      %1905 = vmatpush1.bf16.msra.mxu0 0
      %1906 = vmatprep.subr.bf16.mxu0 0
      %1907 = vmatpush1.bf16.msra.mxu0 0
      %1908 = vmatprep.subr.bf16.mxu0 0
      %1909 = vmatpush1.bf16.msra.mxu0 0
      %1910 = vmatprep.subr.bf16.mxu0 0
      %1911 = vmatpush1.bf16.msra.mxu0 0
      %1912 = vmatprep.subr.bf16.mxu0 0
      %1913 = vmatpush1.bf16.msra.mxu0 0
      %1914 = vmatprep.subr.bf16.mxu0 0
      %1915 = vmatpush1.bf16.msra.mxu0 0
      %1916 = vmatprep.subr.bf16.mxu0 0
      %1917 = vmatpush1.bf16.msra.mxu0 0
      %1918 = vmatprep.subr.bf16.mxu0 0
      %1919 = vmatpush1.bf16.msra.mxu0 0
      %1920 = vmatprep.mubr.bf16.mxu0 0
      %1921 = vmatmul.mubr.bf16.gmra.mrb[0].mxu0 %v1816
      %v1922 = vpop.f32.mrb[0].mxu0
      %v1923 = vadd.f32 %v1838, %v1922
      %v1924 = vpop.f32.mrb[0].mxu0
      %v1925 = vpop.f32.mrb[0].mxu0
      %v1926 = vadd.f32 %v1838, %v1925
      %v1927 = vpop.f32.mrb[0].mxu0
      %1928 = vdwg.mxu0
      %v1929 = vadd.f32 %v703, %v1923
      %v1930 = vadd.f32 %v704, %v1926
      %v1931 = vld [vmem:[%s660] sm:$0x1]
      %v1932 = vld [vmem:[%s663] sm:$0x1]
      %1933 = vadd.xlane.f32.xlu0 %v1929
      %v1934 = vpop.xlane.xlu0 %1933
      %1935 = vadd.xlane.f32.xlu0 %v1930
      %v1936 = vpop.xlane.xlu0 %1935
      %v1937 = vrcp.pop 128.0
      %v1938 = vmul.f32 %v1934, %v1937
      %v1939 = vmul.f32 %v1936, %v1937
      %v1940 = vsub.f32 %v1929, %v1938
      %v1941 = vsub.f32 %v1930, %v1939
      %v1942 = vmul.f32 %v1940, %v1940
      %v1943 = vmul.f32 %v1941, %v1941
      %1944 = vadd.xlane.f32.xlu0 %v1942
      %v1945 = vpop.xlane.xlu0 %1944
      %1946 = vadd.xlane.f32.xlu0 %v1943
      %v1947 = vpop.xlane.xlu0 %1946
      %v1948 = vmul.f32 %v1945, %v1937
      %v1949 = vmul.f32 %v1947, %v1937
      %v1950 = vadd.f32 %v1948, 1e-12
      %v1951 = vadd.f32 %v1949, 1e-12
      %v1952 = vrsqrt.pop %v1950
      %v1953 = vrsqrt.pop %v1951
      %v1954 = vmul.f32 %v1940, %v1952
      %v1955 = vmul.f32 %v1941, %v1953
      %v1957 = vlaneseq
      %v1958 = vshrl.u32 %v1957, 7
      %v1959 = vsub.s32 0, %v1958
      %v1960 = vrot.slane %v1931, %v1959
      %v1962 = vmul.f32 %v1954, %v1960
      %v1963 = vmul.f32 %v1955, %v1960
      %v1965 = vlaneseq
      %v1966 = vshrl.u32 %v1965, 7
      %v1967 = vsub.s32 0, %v1966
      %v1968 = vrot.slane %v1932, %v1967
      %v1970 = vadd.f32 %v1962, %v1968
      %v1971 = vadd.f32 %v1963, %v1968
      %v1972 = vpack.c.bf16 %v1971, %v1970
      %v1973 = vld [vmem:[%s668] sm:$0xff]
      %v1974 = vld [vmem:[%s668 + $0x8] sm:$0xff]
      %v1975 = vld [vmem:[%s668 + $0x10] sm:$0xff]
      %v1976 = vld [vmem:[%s668 + $0x18] sm:$0xff]
      %v1977 = vld [vmem:[%s668 + $0x20] sm:$0xff]
      %v1978 = vld [vmem:[%s668 + $0x28] sm:$0xff]
      %v1979 = vld [vmem:[%s668 + $0x30] sm:$0xff]
      %v1980 = vld [vmem:[%s668 + $0x38] sm:$0xff]
      %v1981 = vld [vmem:[%s668 + $0x40] sm:$0xff]
      %v1982 = vld [vmem:[%s668 + $0x48] sm:$0xff]
      %v1983 = vld [vmem:[%s668 + $0x50] sm:$0xff]
      %v1984 = vld [vmem:[%s668 + $0x58] sm:$0xff]
      %v1985 = vld [vmem:[%s668 + $0x60] sm:$0xff]
      %v1986 = vld [vmem:[%s668 + $0x68] sm:$0xff]
      %v1987 = vld [vmem:[%s668 + $0x70] sm:$0xff]
      %v1988 = vld [vmem:[%s668 + $0x78] sm:$0xff]
      %v1989 = vld [vmem:[%s672] sm:$0x3]
      %v1991 = vlaneseq
      %v1992 = vshrl.u32 %v1991, 7
      %v1993 = vsub.s32 0, %v1992
      %v1994 = vrot.slane %v1989, %v1993
      %v1995 = vlaneseq
      %v1996 = vshrl.u32 %v1995, 7
      %v1997 = vsub.s32 1, %v1996
      %v1998 = vrot.slane %v1989, %v1997
      %v2017 = vunpack.c.l.b16 %v1973
      %v2018 = vunpack.c.h.b16 %v1973
      %v2019 = vunpack.c.l.b16 %v1974
      %v2020 = vunpack.c.h.b16 %v1974
      %v2021 = vunpack.c.l.b16 %v1975
      %v2022 = vunpack.c.h.b16 %v1975
      %v2023 = vunpack.c.l.b16 %v1976
      %v2024 = vunpack.c.h.b16 %v1976
      %v2025 = vunpack.c.l.b16 %v1977
      %v2026 = vunpack.c.h.b16 %v1977
      %v2027 = vunpack.c.l.b16 %v1978
      %v2028 = vunpack.c.h.b16 %v1978
      %v2029 = vunpack.c.l.b16 %v1979
      %v2030 = vunpack.c.h.b16 %v1979
      %v2031 = vunpack.c.l.b16 %v1980
      %v2032 = vunpack.c.h.b16 %v1980
      %v2033 = vunpack.c.l.b16 %v1981
      %v2034 = vunpack.c.h.b16 %v1981
      %v2035 = vunpack.c.l.b16 %v1982
      %v2036 = vunpack.c.h.b16 %v1982
      %v2037 = vunpack.c.l.b16 %v1983
      %v2038 = vunpack.c.h.b16 %v1983
      %v2039 = vunpack.c.l.b16 %v1984
      %v2040 = vunpack.c.h.b16 %v1984
      %v2041 = vunpack.c.l.b16 %v1985
      %v2042 = vunpack.c.h.b16 %v1985
      %v2043 = vunpack.c.l.b16 %v1986
      %v2044 = vunpack.c.h.b16 %v1986
      %v2045 = vunpack.c.l.b16 %v1987
      %v2046 = vunpack.c.h.b16 %v1987
      %v2047 = vunpack.c.l.b16 %v1988
      %v2048 = vunpack.c.h.b16 %v1988
      %v2049 = vpack.c.b16 %v2019, %v2017
      %v2050 = vpack.c.b16 %v2020, %v2018
      %v2051 = vpack.c.b16 %v2023, %v2021
      %v2052 = vpack.c.b16 %v2024, %v2022
      %v2053 = vpack.c.b16 %v2027, %v2025
      %v2054 = vpack.c.b16 %v2028, %v2026
      %v2055 = vpack.c.b16 %v2031, %v2029
      %v2056 = vpack.c.b16 %v2032, %v2030
      %v2057 = vpack.c.b16 %v2035, %v2033
      %v2058 = vpack.c.b16 %v2036, %v2034
      %v2059 = vpack.c.b16 %v2039, %v2037
      %v2060 = vpack.c.b16 %v2040, %v2038
      %v2061 = vpack.c.b16 %v2043, %v2041
      %v2062 = vpack.c.b16 %v2044, %v2042
      %v2063 = vpack.c.b16 %v2047, %v2045
      %v2064 = vpack.c.b16 %v2048, %v2046
      %2081 = vmatprep.subr.bf16.mxu0 %v2050
      %2082 = vmatpush1.bf16.msra.mxu0 %v2049
      %2083 = vmatprep.subr.bf16.mxu0 %v2052
      %2084 = vmatpush1.bf16.msra.mxu0 %v2051
      %2085 = vmatprep.subr.bf16.mxu0 %v2054
      %2086 = vmatpush1.bf16.msra.mxu0 %v2053
      %2087 = vmatprep.subr.bf16.mxu0 %v2056
      %2088 = vmatpush1.bf16.msra.mxu0 %v2055
      %2089 = vmatprep.subr.bf16.mxu0 %v2058
      %2090 = vmatpush1.bf16.msra.mxu0 %v2057
      %2091 = vmatprep.subr.bf16.mxu0 %v2060
      %2092 = vmatpush1.bf16.msra.mxu0 %v2059
      %2093 = vmatprep.subr.bf16.mxu0 %v2062
      %2094 = vmatpush1.bf16.msra.mxu0 %v2061
      %2095 = vmatprep.subr.bf16.mxu0 %v2064
      %2096 = vmatpush1.bf16.msra.mxu0 %v2063
      %2097 = vmatprep.subr.bf16.mxu0 0
      %2098 = vmatpush1.bf16.msra.mxu0 0
      %2099 = vmatprep.subr.bf16.mxu0 0
      %2100 = vmatpush1.bf16.msra.mxu0 0
      %2101 = vmatprep.subr.bf16.mxu0 0
      %2102 = vmatpush1.bf16.msra.mxu0 0
      %2103 = vmatprep.subr.bf16.mxu0 0
      %2104 = vmatpush1.bf16.msra.mxu0 0
      %2105 = vmatprep.subr.bf16.mxu0 0
      %2106 = vmatpush1.bf16.msra.mxu0 0
      %2107 = vmatprep.subr.bf16.mxu0 0
      %2108 = vmatpush1.bf16.msra.mxu0 0
      %2109 = vmatprep.subr.bf16.mxu0 0
      %2110 = vmatpush1.bf16.msra.mxu0 0
      %2111 = vmatprep.subr.bf16.mxu0 0
      %2112 = vmatpush1.bf16.msra.mxu0 0
      %2113 = vmatprep.mubr.bf16.mxu0 0
      %2114 = vmatmul.mubr.bf16.gmra.mrb[0].mxu0 %v1972
      %v2115 = vpop.f32.mrb[0].mxu0
      %v2116 = vadd.f32 %v1994, %v2115
      %v2117 = vpop.f32.mrb[0].mxu0
      %v2118 = vadd.f32 %v1998, %v2117
      %v2119 = vpop.f32.mrb[0].mxu0
      %v2120 = vadd.f32 %v1994, %v2119
      %v2121 = vpop.f32.mrb[0].mxu0
      %v2122 = vadd.f32 %v1998, %v2121
      %2123 = vdwg.mxu0
      %v2124 = vmul.f32 %v2116, %v2116
      %v2125 = vmul.f32 %v2118, %v2118
      %v2126 = vmul.f32 %v2120, %v2120
      %v2127 = vmul.f32 %v2122, %v2122
      %v2128 = vmul.f32 %v2116, %v2124
      %v2129 = vmul.f32 %v2118, %v2125
      %v2130 = vmul.f32 %v2120, %v2126
      %v2131 = vmul.f32 %v2122, %v2127
      %v2132 = vmul.f32 %v2128, 0.044715
      %v2133 = vmul.f32 %v2129, 0.044715
      %v2134 = vmul.f32 %v2130, 0.044715
      %v2135 = vmul.f32 %v2131, 0.044715
      %v2136 = vadd.f32 %v2116, %v2132
      %v2137 = vadd.f32 %v2118, %v2133
      %v2138 = vadd.f32 %v2120, %v2134
      %v2139 = vadd.f32 %v2122, %v2135
      %v2140 = vmul.f32 %v2136, 0.7978846
      %v2141 = vmul.f32 %v2137, 0.7978846
      %v2142 = vmul.f32 %v2138, 0.7978846
      %v2143 = vmul.f32 %v2139, 0.7978846
      %v2144 = vtanh.pop %v2140
      %v2145 = vtanh.pop %v2141
      %v2146 = vtanh.pop %v2142
      %v2147 = vtanh.pop %v2143
      %v2148 = vadd.f32 %v2144, 1.0
      %v2149 = vadd.f32 %v2145, 1.0
      %v2150 = vadd.f32 %v2146, 1.0
      %v2151 = vadd.f32 %v2147, 1.0
      %v2152 = vmul.f32 %v2148, 0.5
      %v2153 = vmul.f32 %v2149, 0.5
      %v2154 = vmul.f32 %v2150, 0.5
      %v2155 = vmul.f32 %v2151, 0.5
      %v2156 = vmul.f32 %v2116, %v2152
      %v2157 = vmul.f32 %v2118, %v2153
      %v2158 = vmul.f32 %v2120, %v2154
      %v2159 = vmul.f32 %v2122, %v2155
      %v2160 = vpack.c.bf16 %v2158, %v2156
      %v2161 = vpack.c.bf16 %v2159, %v2157
      %v2162 = vld [vmem:[%s677] sm:$0xf]
      %v2163 = vld [vmem:[%s677 + $0x4] sm:$0xf]
      %v2164 = vld [vmem:[%s677 + $0x8] sm:$0xf]
      %v2165 = vld [vmem:[%s677 + $0xc] sm:$0xf]
      %v2166 = vld [vmem:[%s677 + $0x10] sm:$0xf]
      %v2167 = vld [vmem:[%s677 + $0x14] sm:$0xf]
      %v2168 = vld [vmem:[%s677 + $0x18] sm:$0xf]
      %v2169 = vld [vmem:[%s677 + $0x1c] sm:$0xf]
      %v2170 = vld [vmem:[%s677 + $0x20] sm:$0xf]
      %v2171 = vld [vmem:[%s677 + $0x24] sm:$0xf]
      %v2172 = vld [vmem:[%s677 + $0x28] sm:$0xf]
      %v2173 = vld [vmem:[%s677 + $0x2c] sm:$0xf]
      %v2174 = vld [vmem:[%s677 + $0x30] sm:$0xf]
      %v2175 = vld [vmem:[%s677 + $0x34] sm:$0xf]
      %v2176 = vld [vmem:[%s677 + $0x38] sm:$0xf]
      %v2177 = vld [vmem:[%s677 + $0x3c] sm:$0xf]
      %v2178 = vld [vmem:[%s677 + $0x40] sm:$0xf]
      %v2179 = vld [vmem:[%s677 + $0x44] sm:$0xf]
      %v2180 = vld [vmem:[%s677 + $0x48] sm:$0xf]
      %v2181 = vld [vmem:[%s677 + $0x4c] sm:$0xf]
      %v2182 = vld [vmem:[%s677 + $0x50] sm:$0xf]
      %v2183 = vld [vmem:[%s677 + $0x54] sm:$0xf]
      %v2184 = vld [vmem:[%s677 + $0x58] sm:$0xf]
      %v2185 = vld [vmem:[%s677 + $0x5c] sm:$0xf]
      %v2186 = vld [vmem:[%s677 + $0x60] sm:$0xf]
      %v2187 = vld [vmem:[%s677 + $0x64] sm:$0xf]
      %v2188 = vld [vmem:[%s677 + $0x68] sm:$0xf]
      %v2189 = vld [vmem:[%s677 + $0x6c] sm:$0xf]
      %v2190 = vld [vmem:[%s677 + $0x70] sm:$0xf]
      %v2191 = vld [vmem:[%s677 + $0x74] sm:$0xf]
      %v2192 = vld [vmem:[%s677 + $0x78] sm:$0xf]
      %v2193 = vld [vmem:[%s677 + $0x7c] sm:$0xf]
      %v2194 = vld [vmem:[%s680] sm:$0x1]
      %v2196 = vlaneseq
      %v2197 = vshrl.u32 %v2196, 7
      %v2198 = vsub.s32 0, %v2197
      %v2199 = vrot.slane %v2194, %v2198
      %v2233 = vunpack.c.l.b16 %v2162
      %v2234 = vunpack.c.l.b16 %v2163
      %v2235 = vunpack.c.l.b16 %v2164
      %v2236 = vunpack.c.l.b16 %v2165
      %v2237 = vunpack.c.l.b16 %v2166
      %v2238 = vunpack.c.l.b16 %v2167
      %v2239 = vunpack.c.l.b16 %v2168
      %v2240 = vunpack.c.l.b16 %v2169
      %v2241 = vunpack.c.l.b16 %v2170
      %v2242 = vunpack.c.l.b16 %v2171
      %v2243 = vunpack.c.l.b16 %v2172
      %v2244 = vunpack.c.l.b16 %v2173
      %v2245 = vunpack.c.l.b16 %v2174
      %v2246 = vunpack.c.l.b16 %v2175
      %v2247 = vunpack.c.l.b16 %v2176
      %v2248 = vunpack.c.l.b16 %v2177
      %v2249 = vunpack.c.l.b16 %v2178
      %v2250 = vunpack.c.l.b16 %v2179
      %v2251 = vunpack.c.l.b16 %v2180
      %v2252 = vunpack.c.l.b16 %v2181
      %v2253 = vunpack.c.l.b16 %v2182
      %v2254 = vunpack.c.l.b16 %v2183
      %v2255 = vunpack.c.l.b16 %v2184
      %v2256 = vunpack.c.l.b16 %v2185
      %v2257 = vunpack.c.l.b16 %v2186
      %v2258 = vunpack.c.l.b16 %v2187
      %v2259 = vunpack.c.l.b16 %v2188
      %v2260 = vunpack.c.l.b16 %v2189
      %v2261 = vunpack.c.l.b16 %v2190
      %v2262 = vunpack.c.l.b16 %v2191
      %v2263 = vunpack.c.l.b16 %v2192
      %v2264 = vunpack.c.l.b16 %v2193
      %v2265 = vpack.c.b16 %v2234, %v2233
      %v2266 = vpack.c.b16 %v2236, %v2235
      %v2267 = vpack.c.b16 %v2238, %v2237
      %v2268 = vpack.c.b16 %v2240, %v2239
      %v2269 = vpack.c.b16 %v2242, %v2241
      %v2270 = vpack.c.b16 %v2244, %v2243
      %v2271 = vpack.c.b16 %v2246, %v2245
      %v2272 = vpack.c.b16 %v2248, %v2247
      %v2273 = vpack.c.b16 %v2250, %v2249
      %v2274 = vpack.c.b16 %v2252, %v2251
      %v2275 = vpack.c.b16 %v2254, %v2253
      %v2276 = vpack.c.b16 %v2256, %v2255
      %v2277 = vpack.c.b16 %v2258, %v2257
      %v2278 = vpack.c.b16 %v2260, %v2259
      %v2279 = vpack.c.b16 %v2262, %v2261
      %v2280 = vpack.c.b16 %v2264, %v2263
      %2297 = vmatprep.subr.bf16.mxu0 0
      %2298 = vmatpush1.bf16.msra.mxu0 %v2265
      %2299 = vmatprep.subr.bf16.mxu0 0
      %2300 = vmatpush1.bf16.msra.mxu0 %v2266
      %2301 = vmatprep.subr.bf16.mxu0 0
      %2302 = vmatpush1.bf16.msra.mxu0 %v2267
      %2303 = vmatprep.subr.bf16.mxu0 0
      %2304 = vmatpush1.bf16.msra.mxu0 %v2268
      %2305 = vmatprep.subr.bf16.mxu0 0
      %2306 = vmatpush1.bf16.msra.mxu0 %v2269
      %2307 = vmatprep.subr.bf16.mxu0 0
      %2308 = vmatpush1.bf16.msra.mxu0 %v2270
      %2309 = vmatprep.subr.bf16.mxu0 0
      %2310 = vmatpush1.bf16.msra.mxu0 %v2271
      %2311 = vmatprep.subr.bf16.mxu0 0
      %2312 = vmatpush1.bf16.msra.mxu0 %v2272
      %2313 = vmatprep.subr.bf16.mxu0 0
      %2314 = vmatpush1.bf16.msra.mxu0 %v2273
      %2315 = vmatprep.subr.bf16.mxu0 0
      %2316 = vmatpush1.bf16.msra.mxu0 %v2274
      %2317 = vmatprep.subr.bf16.mxu0 0
      %2318 = vmatpush1.bf16.msra.mxu0 %v2275
      %2319 = vmatprep.subr.bf16.mxu0 0
      %2320 = vmatpush1.bf16.msra.mxu0 %v2276
      %2321 = vmatprep.subr.bf16.mxu0 0
      %2322 = vmatpush1.bf16.msra.mxu0 %v2277
      %2323 = vmatprep.subr.bf16.mxu0 0
      %2324 = vmatpush1.bf16.msra.mxu0 %v2278
      %2325 = vmatprep.subr.bf16.mxu0 0
      %2326 = vmatpush1.bf16.msra.mxu0 %v2279
      %2327 = vmatprep.subr.bf16.mxu0 0
      %2328 = vmatpush1.bf16.msra.mxu0 %v2280
      %2329 = vmatprep.mubr.bf16.mxu0 %v2161
      %2330 = vmatmul.mubr.bf16.gmra.mrb[0].mxu0 %v2160
      %v2331 = vpop.f32.mrb[0].mxu0
      %v2332 = vadd.f32 %v2199, %v2331
      %v2333 = vpop.f32.mrb[0].mxu0
      %v2334 = vpop.f32.mrb[0].mxu0
      %v2335 = vadd.f32 %v2199, %v2334
      %v2336 = vpop.f32.mrb[0].mxu0
      %2337 = vdwg.mxu0
      %v2338 = vadd.f32 %v1970, %v2332
      %v2339 = vadd.f32 %v1971, %v2335
      %v2340 = vld [vmem:[%s683] sm:$0x1]
      %v2341 = vld [vmem:[%s686] sm:$0x1]
      %2342 = vadd.xlane.f32.xlu0 %v2338
      %v2343 = vpop.xlane.xlu0 %2342
      %2344 = vadd.xlane.f32.xlu0 %v2339
      %v2345 = vpop.xlane.xlu0 %2344
      %v2346 = vmul.f32 %v2343, %v1937
      %v2347 = vmul.f32 %v2345, %v1937
      %v2348 = vsub.f32 %v2338, %v2346
      %v2349 = vsub.f32 %v2339, %v2347
      %v2350 = vmul.f32 %v2348, %v2348
      %v2351 = vmul.f32 %v2349, %v2349
      %2352 = vadd.xlane.f32.xlu0 %v2350
      %v2353 = vpop.xlane.xlu0 %2352
      %2354 = vadd.xlane.f32.xlu0 %v2351
      %v2355 = vpop.xlane.xlu0 %2354
      %v2356 = vmul.f32 %v2353, %v1937
      %v2357 = vmul.f32 %v2355, %v1937
      %v2358 = vadd.f32 %v2356, 1e-12
      %v2359 = vadd.f32 %v2357, 1e-12
      %v2360 = vrsqrt.pop %v2358
      %v2361 = vrsqrt.pop %v2359
      %v2362 = vmul.f32 %v2348, %v2360
      %v2363 = vmul.f32 %v2349, %v2361
      %v2365 = vlaneseq
      %v2366 = vshrl.u32 %v2365, 7
      %v2367 = vsub.s32 0, %v2366
      %v2368 = vrot.slane %v2340, %v2367
      %v2370 = vmul.f32 %v2362, %v2368
      %v2371 = vmul.f32 %v2363, %v2368
      %v2373 = vlaneseq
      %v2374 = vshrl.u32 %v2373, 7
      %v2375 = vsub.s32 0, %v2374
      %v2376 = vrot.slane %v2341, %v2375
      %v2378 = vadd.f32 %v2370, %v2376
      %v2379 = vadd.f32 %v2371, %v2376
      %2380 = vst [vmem:[#allocation2] sm:$0xff] %v2378
      %2381 = vst [vmem:[#allocation2 + $0x8] sm:$0xff] %v2379
      %p2382 = scmp.eq.s32.totalorder %s30, 1
      // Predicated region
      $region81: #{_forward_impl.2} parent=75 // pred_check
        %p2383 = pneg %p2382
      $region82: #{_forward_impl.2} parent=75 // pred_check_branch
        %2385 = sbr.rel (%p2383) target = $region84
      $region83: #{_forward_impl.2} parent=75 // pred_region
        %v2386 = vpack.c.bf16 %v2379, %v2378
        %v2388 = vunpack.c.l.b16 %v2386
        %v2389 = vunpack.c.h.b16 %v2386
        %v2390 = vpack.c.b16 %v2388, %v2388
        %v2391 = vpack.c.b16 %v2389, %v2389
        %2394 = vst [vmem:[%s691] sm:$0xf] %v2390
        %2395 = vst [vmem:[%s691 + $0x4] sm:$0xf] %v2391
      $region84: #{_forward_impl.2} parent=75 // pred_fallthru
        _
      %p2396 = scmp.lt.s32.totalorder %s29, 1
      %s2397 = scalar_select %p2396, %s29, 1
      %s2398 = smul.addr %s2397, 2
      %s2399 = smul.addr %s2398, 4
      %s2400 = scalar_lea.vmem %s14, %s2399
      // Predicated region
      $region85: #{_forward_impl.2} parent=75 // pred_check
        %p2401 = pneg %p419
      $region86: #{_forward_impl.2} parent=75 // pred_check_branch
        %2403 = sbr.rel (%p2401) target = $region88
      $region87: #{_forward_impl.2} parent=75 // pred_region
        _
      $region88: #{_forward_impl.2} parent=75 // pred_fallthru
        _
    $region76: #{_forward_impl.2} parent=5 // pred_fallthru
      _
    %p2404 = scmp.le.s32.totalorder 2, %s20
    // Predicated region
    $region89: #{_forward_impl.2} parent=5 // pred_check
      %p2405 = pneg %p2404
    $region90: #{_forward_impl.2} parent=5 // pred_check_branch
      %2407 = sbr.rel (%p2405) target = $region92
    $region91: #{_forward_impl.2} parent=5 // pred_region
      %s2408 = ssub.s32 %s20, 2
      // Predicated region
      $region93: #{_forward_impl.2} parent=91 // pred_check
        %p2409 = pneg %p425
      $region94: #{_forward_impl.2} parent=91 // pred_check_branch
        %2411 = sbr.rel (%p2409) target = $region96
      $region95: #{_forward_impl.2} parent=91 // pred_region
        %p2412 = scmp.lt.s32.totalorder %s31, 1
        %s2413 = scalar_select %p2412, %s31, 1
        %s2414 = smul.addr %s2413, 2
        %s2415 = smul.addr %s2414, 4
        %s2416 = scalar_lea.vmem %s14, %s2415
      $region96: #{_forward_impl.2} parent=91 // pred_fallthru
        _
    $region92: #{_forward_impl.2} parent=5 // pred_fallthru
      _
  $region6: #{_forward_impl.2} parent=0 // loop_footer
    %s24 = sadd.s32 1, %s20
  $region7: #{_forward_impl.2} parent=0 // loop_footer_branch
    %19 = sbr.rel target = $region3
  $region8: #{_forward_impl.2} parent=0 // loop_exit
    _

</llo_original>
